<compile_context>
chip_gen: v6e
topology: v6e:2x2x1
jax: 0.10.0
libtpu: 0.0.40
codegen_flags: <defaults>
</compile_context>

<pallas_src>
import jax
import jax.numpy as jnp
from jax.experimental import pallas as pl
from jax.experimental.pallas import tpu as pltpu

EPS = 1e-5


def _batchnorm(x, g, b):
    """Training-mode BN over rows of (M, P): single-pass stats, f32."""
    inv_m = 1.0 / x.shape[0]
    mean = jnp.sum(x, axis=0, keepdims=True) * inv_m
    meansq = jnp.sum(x * x, axis=0, keepdims=True) * inv_m
    var = meansq - mean * mean
    return (x - mean) * jax.lax.rsqrt(var + EPS) * g + b


def _make_kernel(*, N, Ho, Wo, Cin, P, tap_plan, proj):
    M = N * Ho * Wo
    f32, bf16 = jnp.float32, jnp.bfloat16
    Pout = 2 * P if proj else P

    def compute(grids_ref, w1_ref, g1_ref, be1_ref, w2_ref, g2_ref, be2_ref,
                gs_ref, bs_ref, out_ref, pad_ref):
        # ---- conv1 (+ fused 1x1 projection columns): 9 accumulating MXU
        #      matmuls straight from the parity grids (no im2col slab) -------
        acc1 = jnp.zeros((M, Pout), f32)
        x_center = None
        for k, (g, r0, c0) in enumerate(tap_plan):
            tap = grids_ref[g * N:(g + 1) * N,
                            r0:r0 + Ho, c0:c0 + Wo, :].reshape(M, Cin)
            if k == 4:                      # centre tap == x[:, ::s, ::s, :]
                x_center = tap
            acc1 = acc1 + jnp.dot(tap.astype(bf16), w1_ref[k],
                                  preferred_element_type=f32)
        out1 = jnp.maximum(
            _batchnorm(acc1[:, :P], g1_ref[...], be1_ref[...]), 0.0)

        # ---- shortcut ------------------------------------------------------
        if proj:      # option 'B': 1x1 strided conv (fused into acc1) + BN
            sc = _batchnorm(acc1[:, P:], gs_ref[...], bs_ref[...])
        else:         # identity (Cin == P), exact f32
            sc = x_center

        # ---- conv2: border-only zeroing of padded scratch, single interior
        #      store, then 9 accumulating matmuls from static windows --------
        pad_ref[:, 0:1, :, :] = jnp.zeros((N, 1, Wo + 2, P), f32)
        pad_ref[:, Ho + 1:Ho + 2, :, :] = jnp.zeros((N, 1, Wo + 2, P), f32)
        pad_ref[:, :, 0:1, :] = jnp.zeros((N, Ho + 2, 1, P), f32)
        pad_ref[:, :, Wo + 1:Wo + 2, :] = jnp.zeros((N, Ho + 2, 1, P), f32)
        pad_ref[:, 1:1 + Ho, 1:1 + Wo, :] = out1.reshape(N, Ho, Wo, P)

        acc2 = jnp.zeros((M, P), f32)
        for k in range(9):
            kh, kw = k // 3, k % 3
            tap2 = pad_ref[:, kh:kh + Ho, kw:kw + Wo, :].reshape(M, P)
            acc2 = acc2 + jnp.dot(tap2.astype(bf16), w2_ref[k],
                                  preferred_element_type=f32)
        o2 = _batchnorm(acc2, g2_ref[...], be2_ref[...])

        out_ref[...] = jnp.maximum(o2 + sc, 0.0)

    if proj:
        def body(grids_ref, w1_ref, g1_ref, be1_ref, w2_ref, g2_ref, be2_ref,
                 gs_ref, bs_ref, out_ref, pad_ref):
            compute(grids_ref, w1_ref, g1_ref, be1_ref, w2_ref, g2_ref,
                    be2_ref, gs_ref, bs_ref, out_ref, pad_ref)
    else:
        def body(grids_ref, w1_ref, g1_ref, be1_ref, w2_ref, g2_ref, be2_ref,
                 out_ref, pad_ref):
            compute(grids_ref, w1_ref, g1_ref, be1_ref, w2_ref, g2_ref,
                    be2_ref, None, None, out_ref, pad_ref)
    return body


def basic_block(x_nchw, params, *, stride, in_planes, planes):
    """Pallas forward of BasicBlock.  x_nchw: (N, in_planes, H, W) float32."""
    proj = (stride != 1) or (in_planes != planes)
    N, Cin, H, W = x_nchw.shape
    assert Cin == in_planes
    assert stride in (1, 2)
    if not proj:
        assert Cin == planes
    P = planes
    s = stride
    Ho = (H - 1) // s + 1
    Wo = (W - 1) // s + 1
    M = N * Ho * Wo
    f32, bf16 = jnp.float32, jnp.bfloat16

    # TODO(synk): these wrapper-side passes (transpose/pad/parity grids) are
    # extra HBM traffic on v5e; fold into the kernel in the gridded version.
    x = jnp.transpose(x_nchw, (0, 2, 3, 1)).astype(f32)        # NHWC
    xp = jnp.pad(x, ((0, 0), (1, 1), (1, 1), (0, 0)))          # zero pad 1px

    # Stride-parity sub-grids of the padded input (total bytes ~= |xp|, no 9x
    # im2col duplication through HBM); each conv1 tap is a static slice.
    parities = sorted({k % s for k in range(3)})
    npar = len(parities)
    # Needed grid extent: Ho + max_kh(kh // s) = Ho + (2 // s)  for s in {1,2}.
    Hg, Wg = Ho + (2 // s), Wo + (2 // s)
    grid_list = []
    for a in parities:
        for b in parities:
            g = xp[:, a::s, b::s, :][:, :Hg, :Wg, :]
            ph, pw = Hg - g.shape[1], Wg - g.shape[2]
            if ph or pw:
                g = jnp.pad(g, ((0, 0), (0, ph), (0, pw), (0, 0)))
            grid_list.append(g)
    grids = jnp.concatenate(grid_list, axis=0)                 # (G*N,Hg,Wg,Cin)
    tap_plan = tuple(
        (parities.index(kh % s) * npar + parities.index(kw % s),
         kh // s, kw // s)
        for kh in range(3) for kw in range(3))

    # PyTorch OIHW -> (9, Cin, Pout); the 1x1 projection is fused into the
    # centre-tap's extra P columns so conv1 + shortcut share one matmul chain.
    Pout = 2 * P if proj else P
    w1 = jnp.transpose(params['w1'], (2, 3, 1, 0)).reshape(9, Cin, P)
    if proj:
        ws = jnp.transpose(params['ws'][:, :, 0, 0], (1, 0))   # (Cin, P)
        w1f = jnp.zeros((9, Cin, 2 * P), f32)
        w1f = w1f.at[:, :, :P].set(w1)
        w1f = w1f.at[4, :, P:].set(ws)
        w1 = w1f
    w1 = w1.astype(bf16)
    w2 = jnp.transpose(params['w2'], (2, 3, 1, 0)).reshape(9, P, P).astype(bf16)
    row = lambda v: v.reshape(1, P).astype(f32)
    # conv biases b1/b2 dropped: cancelled exactly by training-mode BN.

    args = [grids, w1, row(params['g1']), row(params['be1']),
            w2, row(params['g2']), row(params['be2'])]
    if proj:
        args += [row(params['gs']), row(params['bs'])]

    kernel = _make_kernel(N=N, Ho=Ho, Wo=Wo, Cin=Cin, P=P,
                          tap_plan=tap_plan, proj=proj)
    vmem = pl.BlockSpec(memory_space=pltpu.MemorySpace.VMEM)

    out_flat = pl.pallas_call(
        kernel,
        out_shape=jax.ShapeDtypeStruct((M, P), f32),
        in_specs=[vmem] * len(args),
        out_specs=vmem,
        scratch_shapes=[
            pltpu.VMEM((N, Ho + 2, Wo + 2, P), f32),   # zero-padded out1
        ],
        compiler_params=pltpu.CompilerParams(
            vmem_limit_bytes=32 * 1024 * 1024),
    )(*args)

    out = out_flat.reshape(N, Ho, Wo, P)
    return jnp.transpose(out, (0, 3, 1, 2))                    # NCHW


# ----------------------------- pure-JAX reference ---------------------------
def reference_forward(x, p, *, stride, proj):
    def conv(x, w, b, s, pad):
        out = jax.lax.conv_general_dilated(
            x, w, window_strides=(s, s), padding=[(pad, pad), (pad, pad)],
            dimension_numbers=('NCHW', 'OIHW', 'NCHW'))
        if b is not None:
            out = out + b[None, :, None, None]
        return out

    def bn(x, g, b):
        mean = jnp.mean(x, axis=(0, 2, 3), keepdims=True)
        var = jnp.mean((x - mean) ** 2, axis=(0, 2, 3), keepdims=True)
        return ((x - mean) * jax.lax.rsqrt(var + EPS)
                * g[None, :, None, None] + b[None, :, None, None])

    out = jax.nn.relu(bn(conv(x, p['w1'], p['b1'], stride, 1), p['g1'], p['be1']))
    out = bn(conv(out, p['w2'], p['b2'], 1, 1), p['g2'], p['be2'])
    sc = bn(conv(x, p['ws'], None, stride, 0), p['gs'], p['bs']) if proj else x
    return jax.nn.relu(out + sc)


def make_params(key, in_planes, planes):
    k = jax.random.split(key, 11)
    f32 = jnp.float32
    return {
        'w1': 0.2 * jax.random.normal(k[0], (planes, in_planes, 3, 3), f32),
        'b1': 0.1 * jax.random.normal(k[1], (planes,), f32),
        'g1': 1.0 + 0.1 * jax.random.normal(k[2], (planes,), f32),
        'be1': 0.1 * jax.random.normal(k[3], (planes,), f32),
        'w2': 0.2 * jax.random.normal(k[4], (planes, planes, 3, 3), f32),
        'b2': 0.1 * jax.random.normal(k[5], (planes,), f32),
        'g2': 1.0 + 0.1 * jax.random.normal(k[6], (planes,), f32),
        'be2': 0.1 * jax.random.normal(k[7], (planes,), f32),
        'ws': 0.2 * jax.random.normal(k[8], (planes, in_planes, 1, 1), f32),
        'gs': 1.0 + 0.1 * jax.random.normal(k[9], (planes,), f32),
        'bs': 0.1 * jax.random.normal(k[10], (planes,), f32),
    }


if __name__ == "__main__":
    key = jax.random.PRNGKey(0)
    k_x1, k_p1, k_x2, k_p2 = jax.random.split(key, 4)

    # Case 1: BasicBlock(in_planes=4, planes=8, stride=2, option='B')  (proj)
    N, Cin, P, H, W, stride = 2, 4, 8, 16, 16, 2
    x = jax.random.normal(k_x1, (N, Cin, H, W), jnp.float32)
    params = make_params(k_p1, Cin, P)
    out = jax.block_until_ready(
        basic_block(x, params, stride=stride, in_planes=Cin, planes=P))
    ref = reference_forward(x, params, stride=stride, proj=True)
    assert out.shape == ref.shape == (N, P, H // 2, W // 2)
    assert float(jnp.max(jnp.abs(out - ref))) < 5e-2

    # Case 2: BasicBlock(in_planes=8, planes=8, stride=1)  (identity shortcut)
    N2, C2, H2 = 2, 8, 8
    x2 = jax.random.normal(k_x2, (N2, C2, H2, H2), jnp.float32)
    params2 = make_params(k_p2, C2, C2)
    out2 = jax.block_until_ready(
        basic_block(x2, params2, stride=1, in_planes=C2, planes=C2))
    ref2 = reference_forward(x2, params2, stride=1, proj=False)
    assert out2.shape == ref2.shape == (N2, C2, H2, H2)
    assert float(jnp.max(jnp.abs(out2 - ref2))) < 5e-2

    print("KERNEL_OK")
</pallas_src>

<mosaic_0001>
module attributes {stable_mosaic.version = 11 : i64} {
  func.func @body(%arg0: memref<8x9x9x4xf32, #tpu.memory_space<vmem>>, %arg1: memref<9x4x16xbf16, #tpu.memory_space<vmem>>, %arg2: memref<1x8xf32, #tpu.memory_space<vmem>>, %arg3: memref<1x8xf32, #tpu.memory_space<vmem>>, %arg4: memref<9x8x8xbf16, #tpu.memory_space<vmem>>, %arg5: memref<1x8xf32, #tpu.memory_space<vmem>>, %arg6: memref<1x8xf32, #tpu.memory_space<vmem>>, %arg7: memref<1x8xf32, #tpu.memory_space<vmem>>, %arg8: memref<1x8xf32, #tpu.memory_space<vmem>>, %arg9: memref<128x8xf32, #tpu.memory_space<vmem>>, %arg10: memref<2x10x10x8xf32, #tpu.memory_space<vmem>>) attributes {dimension_semantics = [], scalar_prefetch = 0 : i64, scratch_operands = 1 : i64, tpu.core_type = #tpu.core_type<tc>} {
    %cst = arith.constant 0.000000e+00 : f32
    %0 = vector.broadcast %cst : f32 to vector<128x16xf32>
    %c0 = arith.constant 0 : index
    %c0_0 = arith.constant 0 : index
    %c0_1 = arith.constant 0 : index
    %c0_2 = arith.constant 0 : index
    %1 = vector.load %arg0[%c0, %c0_0, %c0_1, %c0_2] : memref<8x9x9x4xf32, #tpu.memory_space<vmem>>, vector<2x8x8x4xf32>
    %2 = vector.shape_cast %1 : vector<2x8x8x4xf32> to vector<128x4xf32>
    %3 = arith.truncf %2 : vector<128x4xf32> to vector<128x4xbf16>
    %c0_3 = arith.constant 0 : index
    %c0_4 = arith.constant 0 : index
    %c0_5 = arith.constant 0 : index
    %4 = vector.load %arg1[%c0_3, %c0_4, %c0_5] : memref<9x4x16xbf16, #tpu.memory_space<vmem>>, vector<1x4x16xbf16>
    %5 = vector.shape_cast %4 : vector<1x4x16xbf16> to vector<4x16xbf16>
    %cst_6 = arith.constant dense<0.000000e+00> : vector<128x16xf32>
    %6 = tpu.matmul %3, %5, %cst_6 {dimension_numbers = #tpu.dot_dimension_numbers<[1], [0], [0], [1], [0, 0, 1, 1], [], []>} : vector<128x4xbf16>, vector<4x16xbf16>, vector<128x16xf32> -> vector<128x16xf32>
    %7 = arith.addf %0, %6 : vector<128x16xf32>
    %c2 = arith.constant 2 : index
    %c0_7 = arith.constant 0 : index
    %c0_8 = arith.constant 0 : index
    %c0_9 = arith.constant 0 : index
    %8 = vector.load %arg0[%c2, %c0_7, %c0_8, %c0_9] : memref<8x9x9x4xf32, #tpu.memory_space<vmem>>, vector<2x8x8x4xf32>
    %9 = vector.shape_cast %8 : vector<2x8x8x4xf32> to vector<128x4xf32>
    %10 = arith.truncf %9 : vector<128x4xf32> to vector<128x4xbf16>
    %c1 = arith.constant 1 : index
    %c0_10 = arith.constant 0 : index
    %c0_11 = arith.constant 0 : index
    %11 = vector.load %arg1[%c1, %c0_10, %c0_11] : memref<9x4x16xbf16, #tpu.memory_space<vmem>>, vector<1x4x16xbf16>
    %12 = vector.shape_cast %11 : vector<1x4x16xbf16> to vector<4x16xbf16>
    %cst_12 = arith.constant dense<0.000000e+00> : vector<128x16xf32>
    %13 = tpu.matmul %10, %12, %cst_12 {dimension_numbers = #tpu.dot_dimension_numbers<[1], [0], [0], [1], [0, 0, 1, 1], [], []>} : vector<128x4xbf16>, vector<4x16xbf16>, vector<128x16xf32> -> vector<128x16xf32>
    %14 = arith.addf %7, %13 : vector<128x16xf32>
    %c0_13 = arith.constant 0 : index
    %c0_14 = arith.constant 0 : index
    %c1_15 = arith.constant 1 : index
    %c0_16 = arith.constant 0 : index
    %15 = vector.load %arg0[%c0_13, %c0_14, %c1_15, %c0_16] : memref<8x9x9x4xf32, #tpu.memory_space<vmem>>, vector<2x8x8x4xf32>
    %16 = vector.shape_cast %15 : vector<2x8x8x4xf32> to vector<128x4xf32>
    %17 = arith.truncf %16 : vector<128x4xf32> to vector<128x4xbf16>
    %c2_17 = arith.constant 2 : index
    %c0_18 = arith.constant 0 : index
    %c0_19 = arith.constant 0 : index
    %18 = vector.load %arg1[%c2_17, %c0_18, %c0_19] : memref<9x4x16xbf16, #tpu.memory_space<vmem>>, vector<1x4x16xbf16>
    %19 = vector.shape_cast %18 : vector<1x4x16xbf16> to vector<4x16xbf16>
    %cst_20 = arith.constant dense<0.000000e+00> : vector<128x16xf32>
    %20 = tpu.matmul %17, %19, %cst_20 {dimension_numbers = #tpu.dot_dimension_numbers<[1], [0], [0], [1], [0, 0, 1, 1], [], []>} : vector<128x4xbf16>, vector<4x16xbf16>, vector<128x16xf32> -> vector<128x16xf32>
    %21 = arith.addf %14, %20 : vector<128x16xf32>
    %c4 = arith.constant 4 : index
    %c0_21 = arith.constant 0 : index
    %c0_22 = arith.constant 0 : index
    %c0_23 = arith.constant 0 : index
    %22 = vector.load %arg0[%c4, %c0_21, %c0_22, %c0_23] : memref<8x9x9x4xf32, #tpu.memory_space<vmem>>, vector<2x8x8x4xf32>
    %23 = vector.shape_cast %22 : vector<2x8x8x4xf32> to vector<128x4xf32>
    %24 = arith.truncf %23 : vector<128x4xf32> to vector<128x4xbf16>
    %c3 = arith.constant 3 : index
    %c0_24 = arith.constant 0 : index
    %c0_25 = arith.constant 0 : index
    %25 = vector.load %arg1[%c3, %c0_24, %c0_25] : memref<9x4x16xbf16, #tpu.memory_space<vmem>>, vector<1x4x16xbf16>
    %26 = vector.shape_cast %25 : vector<1x4x16xbf16> to vector<4x16xbf16>
    %cst_26 = arith.constant dense<0.000000e+00> : vector<128x16xf32>
    %27 = tpu.matmul %24, %26, %cst_26 {dimension_numbers = #tpu.dot_dimension_numbers<[1], [0], [0], [1], [0, 0, 1, 1], [], []>} : vector<128x4xbf16>, vector<4x16xbf16>, vector<128x16xf32> -> vector<128x16xf32>
    %28 = arith.addf %21, %27 : vector<128x16xf32>
    %c6 = arith.constant 6 : index
    %c0_27 = arith.constant 0 : index
    %c0_28 = arith.constant 0 : index
    %c0_29 = arith.constant 0 : index
    %29 = vector.load %arg0[%c6, %c0_27, %c0_28, %c0_29] : memref<8x9x9x4xf32, #tpu.memory_space<vmem>>, vector<2x8x8x4xf32>
    %30 = vector.shape_cast %29 : vector<2x8x8x4xf32> to vector<128x4xf32>
    %31 = arith.truncf %30 : vector<128x4xf32> to vector<128x4xbf16>
    %c4_30 = arith.constant 4 : index
    %c0_31 = arith.constant 0 : index
    %c0_32 = arith.constant 0 : index
    %32 = vector.load %arg1[%c4_30, %c0_31, %c0_32] : memref<9x4x16xbf16, #tpu.memory_space<vmem>>, vector<1x4x16xbf16>
    %33 = vector.shape_cast %32 : vector<1x4x16xbf16> to vector<4x16xbf16>
    %cst_33 = arith.constant dense<0.000000e+00> : vector<128x16xf32>
    %34 = tpu.matmul %31, %33, %cst_33 {dimension_numbers = #tpu.dot_dimension_numbers<[1], [0], [0], [1], [0, 0, 1, 1], [], []>} : vector<128x4xbf16>, vector<4x16xbf16>, vector<128x16xf32> -> vector<128x16xf32>
    %35 = arith.addf %28, %34 : vector<128x16xf32>
    %c4_34 = arith.constant 4 : index
    %c0_35 = arith.constant 0 : index
    %c1_36 = arith.constant 1 : index
    %c0_37 = arith.constant 0 : index
    %36 = vector.load %arg0[%c4_34, %c0_35, %c1_36, %c0_37] : memref<8x9x9x4xf32, #tpu.memory_space<vmem>>, vector<2x8x8x4xf32>
    %37 = vector.shape_cast %36 : vector<2x8x8x4xf32> to vector<128x4xf32>
    %38 = arith.truncf %37 : vector<128x4xf32> to vector<128x4xbf16>
    %c5 = arith.constant 5 : index
    %c0_38 = arith.constant 0 : index
    %c0_39 = arith.constant 0 : index
    %39 = vector.load %arg1[%c5, %c0_38, %c0_39] : memref<9x4x16xbf16, #tpu.memory_space<vmem>>, vector<1x4x16xbf16>
    %40 = vector.shape_cast %39 : vector<1x4x16xbf16> to vector<4x16xbf16>
    %cst_40 = arith.constant dense<0.000000e+00> : vector<128x16xf32>
    %41 = tpu.matmul %38, %40, %cst_40 {dimension_numbers = #tpu.dot_dimension_numbers<[1], [0], [0], [1], [0, 0, 1, 1], [], []>} : vector<128x4xbf16>, vector<4x16xbf16>, vector<128x16xf32> -> vector<128x16xf32>
    %42 = arith.addf %35, %41 : vector<128x16xf32>
    %c0_41 = arith.constant 0 : index
    %c1_42 = arith.constant 1 : index
    %c0_43 = arith.constant 0 : index
    %c0_44 = arith.constant 0 : index
    %43 = vector.load %arg0[%c0_41, %c1_42, %c0_43, %c0_44] : memref<8x9x9x4xf32, #tpu.memory_space<vmem>>, vector<2x8x8x4xf32>
    %44 = vector.shape_cast %43 : vector<2x8x8x4xf32> to vector<128x4xf32>
    %45 = arith.truncf %44 : vector<128x4xf32> to vector<128x4xbf16>
    %c6_45 = arith.constant 6 : index
    %c0_46 = arith.constant 0 : index
    %c0_47 = arith.constant 0 : index
    %46 = vector.load %arg1[%c6_45, %c0_46, %c0_47] : memref<9x4x16xbf16, #tpu.memory_space<vmem>>, vector<1x4x16xbf16>
    %47 = vector.shape_cast %46 : vector<1x4x16xbf16> to vector<4x16xbf16>
    %cst_48 = arith.constant dense<0.000000e+00> : vector<128x16xf32>
    %48 = tpu.matmul %45, %47, %cst_48 {dimension_numbers = #tpu.dot_dimension_numbers<[1], [0], [0], [1], [0, 0, 1, 1], [], []>} : vector<128x4xbf16>, vector<4x16xbf16>, vector<128x16xf32> -> vector<128x16xf32>
    %49 = arith.addf %42, %48 : vector<128x16xf32>
    %c2_49 = arith.constant 2 : index
    %c1_50 = arith.constant 1 : index
    %c0_51 = arith.constant 0 : index
    %c0_52 = arith.constant 0 : index
    %50 = vector.load %arg0[%c2_49, %c1_50, %c0_51, %c0_52] : memref<8x9x9x4xf32, #tpu.memory_space<vmem>>, vector<2x8x8x4xf32>
    %51 = vector.shape_cast %50 : vector<2x8x8x4xf32> to vector<128x4xf32>
    %52 = arith.truncf %51 : vector<128x4xf32> to vector<128x4xbf16>
    %c7 = arith.constant 7 : index
    %c0_53 = arith.constant 0 : index
    %c0_54 = arith.constant 0 : index
    %53 = vector.load %arg1[%c7, %c0_53, %c0_54] : memref<9x4x16xbf16, #tpu.memory_space<vmem>>, vector<1x4x16xbf16>
    %54 = vector.shape_cast %53 : vector<1x4x16xbf16> to vector<4x16xbf16>
    %cst_55 = arith.constant dense<0.000000e+00> : vector<128x16xf32>
    %55 = tpu.matmul %52, %54, %cst_55 {dimension_numbers = #tpu.dot_dimension_numbers<[1], [0], [0], [1], [0, 0, 1, 1], [], []>} : vector<128x4xbf16>, vector<4x16xbf16>, vector<128x16xf32> -> vector<128x16xf32>
    %56 = arith.addf %49, %55 : vector<128x16xf32>
    %c0_56 = arith.constant 0 : index
    %c1_57 = arith.constant 1 : index
    %c1_58 = arith.constant 1 : index
    %c0_59 = arith.constant 0 : index
    %57 = vector.load %arg0[%c0_56, %c1_57, %c1_58, %c0_59] : memref<8x9x9x4xf32, #tpu.memory_space<vmem>>, vector<2x8x8x4xf32>
    %58 = vector.shape_cast %57 : vector<2x8x8x4xf32> to vector<128x4xf32>
    %59 = arith.truncf %58 : vector<128x4xf32> to vector<128x4xbf16>
    %c8 = arith.constant 8 : index
    %c0_60 = arith.constant 0 : index
    %c0_61 = arith.constant 0 : index
    %60 = vector.load %arg1[%c8, %c0_60, %c0_61] : memref<9x4x16xbf16, #tpu.memory_space<vmem>>, vector<1x4x16xbf16>
    %61 = vector.shape_cast %60 : vector<1x4x16xbf16> to vector<4x16xbf16>
    %cst_62 = arith.constant dense<0.000000e+00> : vector<128x16xf32>
    %62 = tpu.matmul %59, %61, %cst_62 {dimension_numbers = #tpu.dot_dimension_numbers<[1], [0], [0], [1], [0, 0, 1, 1], [], []>} : vector<128x4xbf16>, vector<4x16xbf16>, vector<128x16xf32> -> vector<128x16xf32>
    %63 = arith.addf %56, %62 : vector<128x16xf32>
    %64 = vector.extract_strided_slice %63 {offsets = [0, 0], sizes = [128, 8], strides = [1, 1]} : vector<128x16xf32> to vector<128x8xf32>
    %c0_63 = arith.constant 0 : index
    %c0_64 = arith.constant 0 : index
    %65 = vector.load %arg2[%c0_63, %c0_64] : memref<1x8xf32, #tpu.memory_space<vmem>>, vector<1x8xf32>
    %c0_65 = arith.constant 0 : index
    %c0_66 = arith.constant 0 : index
    %66 = vector.load %arg3[%c0_65, %c0_66] : memref<1x8xf32, #tpu.memory_space<vmem>>, vector<1x8xf32>
    %cst_67 = arith.constant dense<0.000000e+00> : vector<8xf32>
    %67 = vector.multi_reduction <add>, %64, %cst_67 [0] : vector<128x8xf32> to vector<8xf32>
    %68 = vector.shape_cast %67 : vector<8xf32> to vector<1x8xf32>
    %cst_68 = arith.constant 7.812500e-03 : f32
    %69 = vector.broadcast %cst_68 : f32 to vector<1x8xf32>
    %70 = arith.mulf %68, %69 : vector<1x8xf32>
    %71 = arith.mulf %64, %64 : vector<128x8xf32>
    %cst_69 = arith.constant dense<0.000000e+00> : vector<8xf32>
    %72 = vector.multi_reduction <add>, %71, %cst_69 [0] : vector<128x8xf32> to vector<8xf32>
    %73 = vector.shape_cast %72 : vector<8xf32> to vector<1x8xf32>
    %cst_70 = arith.constant 7.812500e-03 : f32
    %74 = vector.broadcast %cst_70 : f32 to vector<1x8xf32>
    %75 = arith.mulf %73, %74 : vector<1x8xf32>
    %76 = arith.mulf %70, %70 : vector<1x8xf32>
    %77 = arith.subf %75, %76 : vector<1x8xf32>
    %78 = vector.broadcast %70 : vector<1x8xf32> to vector<128x8xf32>
    %79 = arith.subf %64, %78 : vector<128x8xf32>
    %cst_71 = arith.constant 9.99999974E-6 : f32
    %80 = vector.broadcast %cst_71 : f32 to vector<1x8xf32>
    %81 = arith.addf %77, %80 : vector<1x8xf32>
    %82 = math.rsqrt %81 : vector<1x8xf32>
    %83 = vector.broadcast %82 : vector<1x8xf32> to vector<128x8xf32>
    %84 = arith.mulf %79, %83 : vector<128x8xf32>
    %85 = vector.broadcast %65 : vector<1x8xf32> to vector<128x8xf32>
    %86 = arith.mulf %84, %85 : vector<128x8xf32>
    %87 = vector.broadcast %66 : vector<1x8xf32> to vector<128x8xf32>
    %88 = arith.addf %86, %87 : vector<128x8xf32>
    %cst_72 = arith.constant 0.000000e+00 : f32
    %89 = vector.broadcast %cst_72 : f32 to vector<128x8xf32>
    %90 = arith.maximumf %88, %89 : vector<128x8xf32>
    %91 = vector.extract_strided_slice %63 {offsets = [0, 8], sizes = [128, 8], strides = [1, 1]} : vector<128x16xf32> to vector<128x8xf32>
    %c0_73 = arith.constant 0 : index
    %c0_74 = arith.constant 0 : index
    %92 = vector.load %arg7[%c0_73, %c0_74] : memref<1x8xf32, #tpu.memory_space<vmem>>, vector<1x8xf32>
    %c0_75 = arith.constant 0 : index
    %c0_76 = arith.constant 0 : index
    %93 = vector.load %arg8[%c0_75, %c0_76] : memref<1x8xf32, #tpu.memory_space<vmem>>, vector<1x8xf32>
    %cst_77 = arith.constant dense<0.000000e+00> : vector<8xf32>
    %94 = vector.multi_reduction <add>, %91, %cst_77 [0] : vector<128x8xf32> to vector<8xf32>
    %95 = vector.shape_cast %94 : vector<8xf32> to vector<1x8xf32>
    %cst_78 = arith.constant 7.812500e-03 : f32
    %96 = vector.broadcast %cst_78 : f32 to vector<1x8xf32>
    %97 = arith.mulf %95, %96 : vector<1x8xf32>
    %98 = arith.mulf %91, %91 : vector<128x8xf32>
    %cst_79 = arith.constant dense<0.000000e+00> : vector<8xf32>
    %99 = vector.multi_reduction <add>, %98, %cst_79 [0] : vector<128x8xf32> to vector<8xf32>
    %100 = vector.shape_cast %99 : vector<8xf32> to vector<1x8xf32>
    %cst_80 = arith.constant 7.812500e-03 : f32
    %101 = vector.broadcast %cst_80 : f32 to vector<1x8xf32>
    %102 = arith.mulf %100, %101 : vector<1x8xf32>
    %103 = arith.mulf %97, %97 : vector<1x8xf32>
    %104 = arith.subf %102, %103 : vector<1x8xf32>
    %105 = vector.broadcast %97 : vector<1x8xf32> to vector<128x8xf32>
    %106 = arith.subf %91, %105 : vector<128x8xf32>
    %cst_81 = arith.constant 9.99999974E-6 : f32
    %107 = vector.broadcast %cst_81 : f32 to vector<1x8xf32>
    %108 = arith.addf %104, %107 : vector<1x8xf32>
    %109 = math.rsqrt %108 : vector<1x8xf32>
    %110 = vector.broadcast %109 : vector<1x8xf32> to vector<128x8xf32>
    %111 = arith.mulf %106, %110 : vector<128x8xf32>
    %112 = vector.broadcast %92 : vector<1x8xf32> to vector<128x8xf32>
    %113 = arith.mulf %111, %112 : vector<128x8xf32>
    %114 = vector.broadcast %93 : vector<1x8xf32> to vector<128x8xf32>
    %115 = arith.addf %113, %114 : vector<128x8xf32>
    %cst_82 = arith.constant 0.000000e+00 : f32
    %116 = vector.broadcast %cst_82 : f32 to vector<2x1x10x8xf32>
    %c0_83 = arith.constant 0 : index
    %c0_84 = arith.constant 0 : index
    %c0_85 = arith.constant 0 : index
    %c0_86 = arith.constant 0 : index
    %117 = vector.load %arg10[%c0_83, %c0_84, %c0_85, %c0_86] : memref<2x10x10x8xf32, #tpu.memory_space<vmem>>, vector<2x1x10x8xf32>
    tpu.vector_store %arg10[%c0_83, %c0_84, %c0_85, %c0_86], %116 {strides = array<i32>} : memref<2x10x10x8xf32, #tpu.memory_space<vmem>>, vector<2x1x10x8xf32>,
    %cst_87 = arith.constant 0.000000e+00 : f32
    %118 = vector.broadcast %cst_87 : f32 to vector<2x1x10x8xf32>
    %c0_88 = arith.constant 0 : index
    %c9 = arith.constant 9 : index
    %c0_89 = arith.constant 0 : index
    %c0_90 = arith.constant 0 : index
    %119 = vector.load %arg10[%c0_88, %c9, %c0_89, %c0_90] : memref<2x10x10x8xf32, #tpu.memory_space<vmem>>, vector<2x1x10x8xf32>
    tpu.vector_store %arg10[%c0_88, %c9, %c0_89, %c0_90], %118 {strides = array<i32>} : memref<2x10x10x8xf32, #tpu.memory_space<vmem>>, vector<2x1x10x8xf32>,
    %cst_91 = arith.constant 0.000000e+00 : f32
    %120 = vector.broadcast %cst_91 : f32 to vector<2x10x1x8xf32>
    %c0_92 = arith.constant 0 : index
    %c0_93 = arith.constant 0 : index
    %c0_94 = arith.constant 0 : index
    %c0_95 = arith.constant 0 : index
    %121 = vector.load %arg10[%c0_92, %c0_93, %c0_94, %c0_95] : memref<2x10x10x8xf32, #tpu.memory_space<vmem>>, vector<2x10x1x8xf32>
    tpu.vector_store %arg10[%c0_92, %c0_93, %c0_94, %c0_95], %120 {strides = array<i32>} : memref<2x10x10x8xf32, #tpu.memory_space<vmem>>, vector<2x10x1x8xf32>,
    %cst_96 = arith.constant 0.000000e+00 : f32
    %122 = vector.broadcast %cst_96 : f32 to vector<2x10x1x8xf32>
    %c0_97 = arith.constant 0 : index
    %c0_98 = arith.constant 0 : index
    %c9_99 = arith.constant 9 : index
    %c0_100 = arith.constant 0 : index
    %123 = vector.load %arg10[%c0_97, %c0_98, %c9_99, %c0_100] : memref<2x10x10x8xf32, #tpu.memory_space<vmem>>, vector<2x10x1x8xf32>
    tpu.vector_store %arg10[%c0_97, %c0_98, %c9_99, %c0_100], %122 {strides = array<i32>} : memref<2x10x10x8xf32, #tpu.memory_space<vmem>>, vector<2x10x1x8xf32>,
    %124 = vector.shape_cast %90 : vector<128x8xf32> to vector<2x8x8x8xf32>
    %c0_101 = arith.constant 0 : index
    %c1_102 = arith.constant 1 : index
    %c1_103 = arith.constant 1 : index
    %c0_104 = arith.constant 0 : index
    %125 = vector.load %arg10[%c0_101, %c1_102, %c1_103, %c0_104] : memref<2x10x10x8xf32, #tpu.memory_space<vmem>>, vector<2x8x8x8xf32>
    tpu.vector_store %arg10[%c0_101, %c1_102, %c1_103, %c0_104], %124 {strides = array<i32>} : memref<2x10x10x8xf32, #tpu.memory_space<vmem>>, vector<2x8x8x8xf32>,
    %cst_105 = arith.constant 0.000000e+00 : f32
    %126 = vector.broadcast %cst_105 : f32 to vector<128x8xf32>
    %c0_106 = arith.constant 0 : index
    %c0_107 = arith.constant 0 : index
    %c0_108 = arith.constant 0 : index
    %c0_109 = arith.constant 0 : index
    %127 = vector.load %arg10[%c0_106, %c0_107, %c0_108, %c0_109] : memref<2x10x10x8xf32, #tpu.memory_space<vmem>>, vector<2x8x8x8xf32>
    %128 = vector.shape_cast %127 : vector<2x8x8x8xf32> to vector<128x8xf32>
    %129 = arith.truncf %128 : vector<128x8xf32> to vector<128x8xbf16>
    %c0_110 = arith.constant 0 : index
    %c0_111 = arith.constant 0 : index
    %c0_112 = arith.constant 0 : index
    %130 = vector.load %arg4[%c0_110, %c0_111, %c0_112] : memref<9x8x8xbf16, #tpu.memory_space<vmem>>, vector<1x8x8xbf16>
    %131 = vector.shape_cast %130 : vector<1x8x8xbf16> to vector<8x8xbf16>
    %cst_113 = arith.constant dense<0.000000e+00> : vector<128x8xf32>
    %132 = tpu.matmul %129, %131, %cst_113 {dimension_numbers = #tpu.dot_dimension_numbers<[1], [0], [0], [1], [0, 0, 1, 1], [], []>} : vector<128x8xbf16>, vector<8x8xbf16>, vector<128x8xf32> -> vector<128x8xf32>
    %133 = arith.addf %126, %132 : vector<128x8xf32>
    %c0_114 = arith.constant 0 : index
    %c0_115 = arith.constant 0 : index
    %c1_116 = arith.constant 1 : index
    %c0_117 = arith.constant 0 : index
    %134 = vector.load %arg10[%c0_114, %c0_115, %c1_116, %c0_117] : memref<2x10x10x8xf32, #tpu.memory_space<vmem>>, vector<2x8x8x8xf32>
    %135 = vector.shape_cast %134 : vector<2x8x8x8xf32> to vector<128x8xf32>
    %136 = arith.truncf %135 : vector<128x8xf32> to vector<128x8xbf16>
    %c1_118 = arith.constant 1 : index
    %c0_119 = arith.constant 0 : index
    %c0_120 = arith.constant 0 : index
    %137 = vector.load %arg4[%c1_118, %c0_119, %c0_120] : memref<9x8x8xbf16, #tpu.memory_space<vmem>>, vector<1x8x8xbf16>
    %138 = vector.shape_cast %137 : vector<1x8x8xbf16> to vector<8x8xbf16>
    %cst_121 = arith.constant dense<0.000000e+00> : vector<128x8xf32>
    %139 = tpu.matmul %136, %138, %cst_121 {dimension_numbers = #tpu.dot_dimension_numbers<[1], [0], [0], [1], [0, 0, 1, 1], [], []>} : vector<128x8xbf16>, vector<8x8xbf16>, vector<128x8xf32> -> vector<128x8xf32>
    %140 = arith.addf %133, %139 : vector<128x8xf32>
    %c0_122 = arith.constant 0 : index
    %c0_123 = arith.constant 0 : index
    %c2_124 = arith.constant 2 : index
    %c0_125 = arith.constant 0 : index
    %141 = vector.load %arg10[%c0_122, %c0_123, %c2_124, %c0_125] : memref<2x10x10x8xf32, #tpu.memory_space<vmem>>, vector<2x8x8x8xf32>
    %142 = vector.shape_cast %141 : vector<2x8x8x8xf32> to vector<128x8xf32>
    %143 = arith.truncf %142 : vector<128x8xf32> to vector<128x8xbf16>
    %c2_126 = arith.constant 2 : index
    %c0_127 = arith.constant 0 : index
    %c0_128 = arith.constant 0 : index
    %144 = vector.load %arg4[%c2_126, %c0_127, %c0_128] : memref<9x8x8xbf16, #tpu.memory_space<vmem>>, vector<1x8x8xbf16>
    %145 = vector.shape_cast %144 : vector<1x8x8xbf16> to vector<8x8xbf16>
    %cst_129 = arith.constant dense<0.000000e+00> : vector<128x8xf32>
    %146 = tpu.matmul %143, %145, %cst_129 {dimension_numbers = #tpu.dot_dimension_numbers<[1], [0], [0], [1], [0, 0, 1, 1], [], []>} : vector<128x8xbf16>, vector<8x8xbf16>, vector<128x8xf32> -> vector<128x8xf32>
    %147 = arith.addf %140, %146 : vector<128x8xf32>
    %c0_130 = arith.constant 0 : index
    %c1_131 = arith.constant 1 : index
    %c0_132 = arith.constant 0 : index
    %c0_133 = arith.constant 0 : index
    %148 = vector.load %arg10[%c0_130, %c1_131, %c0_132, %c0_133] : memref<2x10x10x8xf32, #tpu.memory_space<vmem>>, vector<2x8x8x8xf32>
    %149 = vector.shape_cast %148 : vector<2x8x8x8xf32> to vector<128x8xf32>
    %150 = arith.truncf %149 : vector<128x8xf32> to vector<128x8xbf16>
    %c3_134 = arith.constant 3 : index
    %c0_135 = arith.constant 0 : index
    %c0_136 = arith.constant 0 : index
    %151 = vector.load %arg4[%c3_134, %c0_135, %c0_136] : memref<9x8x8xbf16, #tpu.memory_space<vmem>>, vector<1x8x8xbf16>
    %152 = vector.shape_cast %151 : vector<1x8x8xbf16> to vector<8x8xbf16>
    %cst_137 = arith.constant dense<0.000000e+00> : vector<128x8xf32>
    %153 = tpu.matmul %150, %152, %cst_137 {dimension_numbers = #tpu.dot_dimension_numbers<[1], [0], [0], [1], [0, 0, 1, 1], [], []>} : vector<128x8xbf16>, vector<8x8xbf16>, vector<128x8xf32> -> vector<128x8xf32>
    %154 = arith.addf %147, %153 : vector<128x8xf32>
    %c0_138 = arith.constant 0 : index
    %c1_139 = arith.constant 1 : index
    %c1_140 = arith.constant 1 : index
    %c0_141 = arith.constant 0 : index
    %155 = vector.load %arg10[%c0_138, %c1_139, %c1_140, %c0_141] : memref<2x10x10x8xf32, #tpu.memory_space<vmem>>, vector<2x8x8x8xf32>
    %156 = vector.shape_cast %155 : vector<2x8x8x8xf32> to vector<128x8xf32>
    %157 = arith.truncf %156 : vector<128x8xf32> to vector<128x8xbf16>
    %c4_142 = arith.constant 4 : index
    %c0_143 = arith.constant 0 : index
    %c0_144 = arith.constant 0 : index
    %158 = vector.load %arg4[%c4_142, %c0_143, %c0_144] : memref<9x8x8xbf16, #tpu.memory_space<vmem>>, vector<1x8x8xbf16>
    %159 = vector.shape_cast %158 : vector<1x8x8xbf16> to vector<8x8xbf16>
    %cst_145 = arith.constant dense<0.000000e+00> : vector<128x8xf32>
    %160 = tpu.matmul %157, %159, %cst_145 {dimension_numbers = #tpu.dot_dimension_numbers<[1], [0], [0], [1], [0, 0, 1, 1], [], []>} : vector<128x8xbf16>, vector<8x8xbf16>, vector<128x8xf32> -> vector<128x8xf32>
    %161 = arith.addf %154, %160 : vector<128x8xf32>
    %c0_146 = arith.constant 0 : index
    %c1_147 = arith.constant 1 : index
    %c2_148 = arith.constant 2 : index
    %c0_149 = arith.constant 0 : index
    %162 = vector.load %arg10[%c0_146, %c1_147, %c2_148, %c0_149] : memref<2x10x10x8xf32, #tpu.memory_space<vmem>>, vector<2x8x8x8xf32>
    %163 = vector.shape_cast %162 : vector<2x8x8x8xf32> to vector<128x8xf32>
    %164 = arith.truncf %163 : vector<128x8xf32> to vector<128x8xbf16>
    %c5_150 = arith.constant 5 : index
    %c0_151 = arith.constant 0 : index
    %c0_152 = arith.constant 0 : index
    %165 = vector.load %arg4[%c5_150, %c0_151, %c0_152] : memref<9x8x8xbf16, #tpu.memory_space<vmem>>, vector<1x8x8xbf16>
    %166 = vector.shape_cast %165 : vector<1x8x8xbf16> to vector<8x8xbf16>
    %cst_153 = arith.constant dense<0.000000e+00> : vector<128x8xf32>
    %167 = tpu.matmul %164, %166, %cst_153 {dimension_numbers = #tpu.dot_dimension_numbers<[1], [0], [0], [1], [0, 0, 1, 1], [], []>} : vector<128x8xbf16>, vector<8x8xbf16>, vector<128x8xf32> -> vector<128x8xf32>
    %168 = arith.addf %161, %167 : vector<128x8xf32>
    %c0_154 = arith.constant 0 : index
    %c2_155 = arith.constant 2 : index
    %c0_156 = arith.constant 0 : index
    %c0_157 = arith.constant 0 : index
    %169 = vector.load %arg10[%c0_154, %c2_155, %c0_156, %c0_157] : memref<2x10x10x8xf32, #tpu.memory_space<vmem>>, vector<2x8x8x8xf32>
    %170 = vector.shape_cast %169 : vector<2x8x8x8xf32> to vector<128x8xf32>
    %171 = arith.truncf %170 : vector<128x8xf32> to vector<128x8xbf16>
    %c6_158 = arith.constant 6 : index
    %c0_159 = arith.constant 0 : index
    %c0_160 = arith.constant 0 : index
    %172 = vector.load %arg4[%c6_158, %c0_159, %c0_160] : memref<9x8x8xbf16, #tpu.memory_space<vmem>>, vector<1x8x8xbf16>
    %173 = vector.shape_cast %172 : vector<1x8x8xbf16> to vector<8x8xbf16>
    %cst_161 = arith.constant dense<0.000000e+00> : vector<128x8xf32>
    %174 = tpu.matmul %171, %173, %cst_161 {dimension_numbers = #tpu.dot_dimension_numbers<[1], [0], [0], [1], [0, 0, 1, 1], [], []>} : vector<128x8xbf16>, vector<8x8xbf16>, vector<128x8xf32> -> vector<128x8xf32>
    %175 = arith.addf %168, %174 : vector<128x8xf32>
    %c0_162 = arith.constant 0 : index
    %c2_163 = arith.constant 2 : index
    %c1_164 = arith.constant 1 : index
    %c0_165 = arith.constant 0 : index
    %176 = vector.load %arg10[%c0_162, %c2_163, %c1_164, %c0_165] : memref<2x10x10x8xf32, #tpu.memory_space<vmem>>, vector<2x8x8x8xf32>
    %177 = vector.shape_cast %176 : vector<2x8x8x8xf32> to vector<128x8xf32>
    %178 = arith.truncf %177 : vector<128x8xf32> to vector<128x8xbf16>
    %c7_166 = arith.constant 7 : index
    %c0_167 = arith.constant 0 : index
    %c0_168 = arith.constant 0 : index
    %179 = vector.load %arg4[%c7_166, %c0_167, %c0_168] : memref<9x8x8xbf16, #tpu.memory_space<vmem>>, vector<1x8x8xbf16>
    %180 = vector.shape_cast %179 : vector<1x8x8xbf16> to vector<8x8xbf16>
    %cst_169 = arith.constant dense<0.000000e+00> : vector<128x8xf32>
    %181 = tpu.matmul %178, %180, %cst_169 {dimension_numbers = #tpu.dot_dimension_numbers<[1], [0], [0], [1], [0, 0, 1, 1], [], []>} : vector<128x8xbf16>, vector<8x8xbf16>, vector<128x8xf32> -> vector<128x8xf32>
    %182 = arith.addf %175, %181 : vector<128x8xf32>
    %c0_170 = arith.constant 0 : index
    %c2_171 = arith.constant 2 : index
    %c2_172 = arith.constant 2 : index
    %c0_173 = arith.constant 0 : index
    %183 = vector.load %arg10[%c0_170, %c2_171, %c2_172, %c0_173] : memref<2x10x10x8xf32, #tpu.memory_space<vmem>>, vector<2x8x8x8xf32>
    %184 = vector.shape_cast %183 : vector<2x8x8x8xf32> to vector<128x8xf32>
    %185 = arith.truncf %184 : vector<128x8xf32> to vector<128x8xbf16>
    %c8_174 = arith.constant 8 : index
    %c0_175 = arith.constant 0 : index
    %c0_176 = arith.constant 0 : index
    %186 = vector.load %arg4[%c8_174, %c0_175, %c0_176] : memref<9x8x8xbf16, #tpu.memory_space<vmem>>, vector<1x8x8xbf16>
    %187 = vector.shape_cast %186 : vector<1x8x8xbf16> to vector<8x8xbf16>
    %cst_177 = arith.constant dense<0.000000e+00> : vector<128x8xf32>
    %188 = tpu.matmul %185, %187, %cst_177 {dimension_numbers = #tpu.dot_dimension_numbers<[1], [0], [0], [1], [0, 0, 1, 1], [], []>} : vector<128x8xbf16>, vector<8x8xbf16>, vector<128x8xf32> -> vector<128x8xf32>
    %189 = arith.addf %182, %188 : vector<128x8xf32>
    %c0_178 = arith.constant 0 : index
    %c0_179 = arith.constant 0 : index
    %190 = vector.load %arg5[%c0_178, %c0_179] : memref<1x8xf32, #tpu.memory_space<vmem>>, vector<1x8xf32>
    %c0_180 = arith.constant 0 : index
    %c0_181 = arith.constant 0 : index
    %191 = vector.load %arg6[%c0_180, %c0_181] : memref<1x8xf32, #tpu.memory_space<vmem>>, vector<1x8xf32>
    %cst_182 = arith.constant dense<0.000000e+00> : vector<8xf32>
    %192 = vector.multi_reduction <add>, %189, %cst_182 [0] : vector<128x8xf32> to vector<8xf32>
    %193 = vector.shape_cast %192 : vector<8xf32> to vector<1x8xf32>
    %cst_183 = arith.constant 7.812500e-03 : f32
    %194 = vector.broadcast %cst_183 : f32 to vector<1x8xf32>
    %195 = arith.mulf %193, %194 : vector<1x8xf32>
    %196 = arith.mulf %189, %189 : vector<128x8xf32>
    %cst_184 = arith.constant dense<0.000000e+00> : vector<8xf32>
    %197 = vector.multi_reduction <add>, %196, %cst_184 [0] : vector<128x8xf32> to vector<8xf32>
    %198 = vector.shape_cast %197 : vector<8xf32> to vector<1x8xf32>
    %cst_185 = arith.constant 7.812500e-03 : f32
    %199 = vector.broadcast %cst_185 : f32 to vector<1x8xf32>
    %200 = arith.mulf %198, %199 : vector<1x8xf32>
    %201 = arith.mulf %195, %195 : vector<1x8xf32>
    %202 = arith.subf %200, %201 : vector<1x8xf32>
    %203 = vector.broadcast %195 : vector<1x8xf32> to vector<128x8xf32>
    %204 = arith.subf %189, %203 : vector<128x8xf32>
    %cst_186 = arith.constant 9.99999974E-6 : f32
    %205 = vector.broadcast %cst_186 : f32 to vector<1x8xf32>
    %206 = arith.addf %202, %205 : vector<1x8xf32>
    %207 = math.rsqrt %206 : vector<1x8xf32>
    %208 = vector.broadcast %207 : vector<1x8xf32> to vector<128x8xf32>
    %209 = arith.mulf %204, %208 : vector<128x8xf32>
    %210 = vector.broadcast %190 : vector<1x8xf32> to vector<128x8xf32>
    %211 = arith.mulf %209, %210 : vector<128x8xf32>
    %212 = vector.broadcast %191 : vector<1x8xf32> to vector<128x8xf32>
    %213 = arith.addf %211, %212 : vector<128x8xf32>
    %214 = arith.addf %213, %115 : vector<128x8xf32>
    %cst_187 = arith.constant 0.000000e+00 : f32
    %215 = vector.broadcast %cst_187 : f32 to vector<128x8xf32>
    %216 = arith.maximumf %214, %215 : vector<128x8xf32>
    %c0_188 = arith.constant 0 : index
    %c0_189 = arith.constant 0 : index
    %217 = vector.load %arg9[%c0_188, %c0_189] : memref<128x8xf32, #tpu.memory_space<vmem>>, vector<128x8xf32>
    tpu.vector_store %arg9[%c0_188, %c0_189], %216 {strides = array<i32>} : memref<128x8xf32, #tpu.memory_space<vmem>>, vector<128x8xf32>,
    return
  }
}

</mosaic_0001>

<llo_original>
// kernel: tpu_custom_call.1
$region0: #{tpu_custom_call.1}
  #allocation0 [shape = 'u32[]', space=smem, size = 0x4, offset = 0x4, fixed_abs, tag = 'smem constant byte address 0x4 - core index']
  #allocation1 [shape = 'u32[144,128]{1,0:T(1,128)}', space=vmem, size = 0x12000, scoped, tag = 'internal scratch']
  #allocation2 [shape = 'f32[2,10,10,8]{3,2,1,0:T(8,128)}', space=vmem, size = 0x28000, scoped, tag = 'scratch operand']
  %s0 = inlined_call_operand.vmem [shape: f32[8,9,9,4], index: 0, kind: input, shape index: {}]
  %s1 = inlined_call_operand.vmem [shape: bf16[9,4,16], index: 1, kind: input, shape index: {}]
  %s2 = inlined_call_operand.vmem [shape: f32[1,8], index: 2, kind: input, shape index: {}]
  %s3 = inlined_call_operand.vmem [shape: f32[1,8], index: 3, kind: input, shape index: {}]
  %s4 = inlined_call_operand.vmem [shape: bf16[9,8,8], index: 4, kind: input, shape index: {}]
  %s5 = inlined_call_operand.vmem [shape: f32[1,8], index: 5, kind: input, shape index: {}]
  %s6 = inlined_call_operand.vmem [shape: f32[1,8], index: 6, kind: input, shape index: {}]
  %s7 = inlined_call_operand.vmem [shape: f32[1,8], index: 7, kind: input, shape index: {}]
  %s8 = inlined_call_operand.vmem [shape: f32[1,8], index: 8, kind: input, shape index: {}]
  %s9 = inlined_call_operand.vmem [shape: f32[128,8], index: 9, kind: output, shape index: {}]
  %s10 = sld [smem:[#allocation0]]
  $region46: #{tpu_custom_call.1} parent=0
    _
  %s12 = ssub.s32 1, %s10
  %s13 = scalar_select 0, %s12, %s10
  // Predicated region
  $region2: #{tpu_custom_call.1} parent=0 // pred_check
    _
  $region3: #{tpu_custom_call.1} parent=0 // pred_check_branch
    %15 = sbr.rel (0) target = $region5
  $region4: #{tpu_custom_call.1} parent=0 // pred_region
    _
  $region5: #{tpu_custom_call.1} parent=0 // pred_fallthru
    _
  // Predicated region
  $region6: #{tpu_custom_call.1} parent=0 // pred_check
    _
  $region7: #{tpu_custom_call.1} parent=0 // pred_check_branch
    %17 = sbr.rel (0) target = $region9
  $region8: #{tpu_custom_call.1} parent=0 // pred_region
    _
  $region9: #{tpu_custom_call.1} parent=0 // pred_fallthru
    _
  // Predicated region
  $region10: #{tpu_custom_call.1} parent=0 // pred_check
    _
  $region11: #{tpu_custom_call.1} parent=0 // pred_check_branch
    %19 = sbr.rel (0) target = $region13
  $region12: #{tpu_custom_call.1} parent=0 // pred_region
    _
  $region13: #{tpu_custom_call.1} parent=0 // pred_fallthru
    _
  // Predicated region
  $region14: #{tpu_custom_call.1} parent=0 // pred_check
    _
  $region15: #{tpu_custom_call.1} parent=0 // pred_check_branch
    %21 = sbr.rel (0) target = $region17
  $region16: #{tpu_custom_call.1} parent=0 // pred_region
    _
  $region17: #{tpu_custom_call.1} parent=0 // pred_fallthru
    _
  // Predicated region
  $region18: #{tpu_custom_call.1} parent=0 // pred_check
    _
  $region19: #{tpu_custom_call.1} parent=0 // pred_check_branch
    %23 = sbr.rel (0) target = $region21
  $region20: #{tpu_custom_call.1} parent=0 // pred_region
    _
  $region21: #{tpu_custom_call.1} parent=0 // pred_fallthru
    _
  // Predicated region
  $region22: #{tpu_custom_call.1} parent=0 // pred_check
    _
  $region23: #{tpu_custom_call.1} parent=0 // pred_check_branch
    %25 = sbr.rel (0) target = $region25
  $region24: #{tpu_custom_call.1} parent=0 // pred_region
    _
  $region25: #{tpu_custom_call.1} parent=0 // pred_fallthru
    _
  // Predicated region
  $region26: #{tpu_custom_call.1} parent=0 // pred_check
    _
  $region27: #{tpu_custom_call.1} parent=0 // pred_check_branch
    %27 = sbr.rel (0) target = $region29
  $region28: #{tpu_custom_call.1} parent=0 // pred_region
    _
  $region29: #{tpu_custom_call.1} parent=0 // pred_fallthru
    _
  // Predicated region
  $region30: #{tpu_custom_call.1} parent=0 // pred_check
    _
  $region31: #{tpu_custom_call.1} parent=0 // pred_check_branch
    %29 = sbr.rel (0) target = $region33
  $region32: #{tpu_custom_call.1} parent=0 // pred_region
    _
  $region33: #{tpu_custom_call.1} parent=0 // pred_fallthru
    _
  // Predicated region
  $region34: #{tpu_custom_call.1} parent=0 // pred_check
    _
  $region35: #{tpu_custom_call.1} parent=0 // pred_check_branch
    %31 = sbr.rel (0) target = $region37
  $region36: #{tpu_custom_call.1} parent=0 // pred_region
    _
  $region37: #{tpu_custom_call.1} parent=0 // pred_fallthru
    _
  %v33 = vld [vmem:[%s0] sm:$0xff]
  %v34 = vld [vmem:[%s0 + $0x10] sm:$0xff]
  %v35 = vld [vmem:[%s0 + $0x20] sm:$0xff]
  %v36 = vld [vmem:[%s0 + $0x30] sm:$0xff]
  %v37 = vld [vmem:[%s0 + $0x40] sm:$0xff]
  %v38 = vld [vmem:[%s0 + $0x50] sm:$0xff]
  %v39 = vld [vmem:[%s0 + $0x60] sm:$0xff]
  %v40 = vld [vmem:[%s0 + $0x70] sm:$0xff]
  %v41 = vld [vmem:[%s0 + $0x90] sm:$0xff]
  %v42 = vld [vmem:[%s0 + $0xa0] sm:$0xff]
  %v43 = vld [vmem:[%s0 + $0xb0] sm:$0xff]
  %v44 = vld [vmem:[%s0 + $0xc0] sm:$0xff]
  %v45 = vld [vmem:[%s0 + $0xd0] sm:$0xff]
  %v46 = vld [vmem:[%s0 + $0xe0] sm:$0xff]
  %v47 = vld [vmem:[%s0 + $0xf0] sm:$0xff]
  %v48 = vld [vmem:[%s0 + $0x100] sm:$0xff]
  %v49 = vpack.c.bf16 %v34, %v33
  %v50 = vpack.c.bf16 %v36, %v35
  %v51 = vpack.c.bf16 %v38, %v37
  %v52 = vpack.c.bf16 %v40, %v39
  %v53 = vpack.c.bf16 %v42, %v41
  %v54 = vpack.c.bf16 %v44, %v43
  %v55 = vpack.c.bf16 %v46, %v45
  %v56 = vpack.c.bf16 %v48, %v47
  %v57 = vld [vmem:[%s1] sm:$0x3]
  %s58 = scalar_lea.vmem %s0, 288
  %v59 = vld [vmem:[%s58] sm:$0xff]
  %v60 = vld [vmem:[%s58 + $0x10] sm:$0xff]
  %v61 = vld [vmem:[%s58 + $0x20] sm:$0xff]
  %v62 = vld [vmem:[%s58 + $0x30] sm:$0xff]
  %v63 = vld [vmem:[%s58 + $0x40] sm:$0xff]
  %v64 = vld [vmem:[%s58 + $0x50] sm:$0xff]
  %v65 = vld [vmem:[%s58 + $0x60] sm:$0xff]
  %v66 = vld [vmem:[%s58 + $0x70] sm:$0xff]
  %v67 = vld [vmem:[%s58 + $0x90] sm:$0xff]
  %v68 = vld [vmem:[%s58 + $0xa0] sm:$0xff]
  %v69 = vld [vmem:[%s58 + $0xb0] sm:$0xff]
  %v70 = vld [vmem:[%s58 + $0xc0] sm:$0xff]
  %v71 = vld [vmem:[%s58 + $0xd0] sm:$0xff]
  %v72 = vld [vmem:[%s58 + $0xe0] sm:$0xff]
  %v73 = vld [vmem:[%s58 + $0xf0] sm:$0xff]
  %v74 = vld [vmem:[%s58 + $0x100] sm:$0xff]
  %v75 = vpack.c.bf16 %v60, %v59
  %v76 = vpack.c.bf16 %v62, %v61
  %v77 = vpack.c.bf16 %v64, %v63
  %v78 = vpack.c.bf16 %v66, %v65
  %v79 = vpack.c.bf16 %v68, %v67
  %v80 = vpack.c.bf16 %v70, %v69
  %v81 = vpack.c.bf16 %v72, %v71
  %v82 = vpack.c.bf16 %v74, %v73
  %s83 = scalar_lea.vmem %s1, 2
  %v84 = vld [vmem:[%s83] sm:$0x3]
  %vm85 = vcmask 31744
  %v87 = vsel %vm85, %v75, 0
  %v90 = vsel %vm85, %v76, 0
  %v93 = vsel %vm85, %v77, 0
  %v96 = vsel %vm85, %v78, 0
  %v99 = vsel %vm85, %v79, 0
  %v102 = vsel %vm85, %v80, 0
  %v105 = vsel %vm85, %v81, 0
  %v108 = vsel %vm85, %v82, 0
  %vm110 = vcmask 1041408
  %v112 = vsel %vm110, %v84, 0
  %114 = vmatprep.subr.bf16.mxu0 0
  %115 = vmatpush1.bf16.msra.mxu0 0
  %116 = vmatprep.subr.bf16.mxu0 0
  %117 = vmatpush1.bf16.msra.mxu0 0
  %118 = vmatprep.subr.bf16.mxu0 0
  %119 = vmatpush1.bf16.msra.mxu0 0
  %120 = vmatprep.subr.bf16.mxu0 0
  %121 = vmatpush1.bf16.msra.mxu0 0
  %122 = vmatprep.subr.bf16.mxu0 0
  %123 = vmatpush1.bf16.msra.mxu0 0
  %124 = vmatprep.subr.bf16.mxu0 0
  %125 = vmatpush1.bf16.msra.mxu0 0
  %126 = vmatprep.subr.bf16.mxu0 0
  %127 = vmatpush1.bf16.msra.mxu0 0
  %128 = vmatprep.subr.bf16.mxu0 0
  %129 = vmatpush1.bf16.msra.mxu0 %v112
  %130 = vmatprep.subr.bf16.mxu0 0
  %131 = vmatpush2.bf16.msra.mxu0 0
  %132 = vmatprep.subr.bf16.mxu0 0
  %133 = vmatpush2.bf16.msra.mxu0 0
  %134 = vmatprep.subr.bf16.mxu0 0
  %135 = vmatpush2.bf16.msra.mxu0 0
  %136 = vmatprep.subr.bf16.mxu0 0
  %137 = vmatpush2.bf16.msra.mxu0 0
  %138 = vmatprep.subr.bf16.mxu0 0
  %139 = vmatpush2.bf16.msra.mxu0 0
  %140 = vmatprep.subr.bf16.mxu0 0
  %141 = vmatpush2.bf16.msra.mxu0 0
  %142 = vmatprep.subr.bf16.mxu0 0
  %143 = vmatpush2.bf16.msra.mxu0 0
  %144 = vmatprep.subr.bf16.mxu0 0
  %145 = vmatpush2.bf16.msra.mxu0 0
  %146 = vmatprep.mubr.bf16.mxu0 0
  %147 = vmatmul.mubr.bf16.gmra.mxu0 %v87
  %v148 = vpop.f32.mrf.mxu0
  %v149 = vadd.f32 0.0, %v148
  %v150 = vpop.f32.mrf.mxu0
  %v151 = vpop.f32.mrf.mxu0
  %v152 = vadd.f32 0.0, %v151
  %v153 = vpop.f32.mrf.mxu0
  %154 = vmatprep.mubr.bf16.mxu0 0
  %155 = vmatmul.mubr.bf16.gmra.mxu0 %v90
  %v156 = vpop.f32.mrf.mxu0
  %v157 = vadd.f32 0.0, %v156
  %v158 = vpop.f32.mrf.mxu0
  %v159 = vpop.f32.mrf.mxu0
  %v160 = vadd.f32 0.0, %v159
  %v161 = vpop.f32.mrf.mxu0
  %162 = vmatprep.mubr.bf16.mxu0 0
  %163 = vmatmul.mubr.bf16.gmra.mxu0 %v93
  %v164 = vpop.f32.mrf.mxu0
  %v165 = vadd.f32 0.0, %v164
  %v166 = vpop.f32.mrf.mxu0
  %v167 = vpop.f32.mrf.mxu0
  %v168 = vadd.f32 0.0, %v167
  %v169 = vpop.f32.mrf.mxu0
  %170 = vmatprep.mubr.bf16.mxu0 0
  %171 = vmatmul.mubr.bf16.gmra.mxu0 %v96
  %v172 = vpop.f32.mrf.mxu0
  %v173 = vadd.f32 0.0, %v172
  %v174 = vpop.f32.mrf.mxu0
  %v175 = vpop.f32.mrf.mxu0
  %v176 = vadd.f32 0.0, %v175
  %v177 = vpop.f32.mrf.mxu0
  %178 = vmatprep.mubr.bf16.mxu0 0
  %179 = vmatmul.mubr.bf16.gmra.mxu0 %v99
  %v180 = vpop.f32.mrf.mxu0
  %v181 = vadd.f32 0.0, %v180
  %v182 = vpop.f32.mrf.mxu0
  %v183 = vpop.f32.mrf.mxu0
  %v184 = vadd.f32 0.0, %v183
  %v185 = vpop.f32.mrf.mxu0
  %186 = vmatprep.mubr.bf16.mxu0 0
  %187 = vmatmul.mubr.bf16.gmra.mxu0 %v102
  %v188 = vpop.f32.mrf.mxu0
  %v189 = vadd.f32 0.0, %v188
  %v190 = vpop.f32.mrf.mxu0
  %v191 = vpop.f32.mrf.mxu0
  %v192 = vadd.f32 0.0, %v191
  %v193 = vpop.f32.mrf.mxu0
  %194 = vmatprep.mubr.bf16.mxu0 0
  %195 = vmatmul.mubr.bf16.gmra.mxu0 %v105
  %v196 = vpop.f32.mrf.mxu0
  %v197 = vadd.f32 0.0, %v196
  %v198 = vpop.f32.mrf.mxu0
  %v199 = vpop.f32.mrf.mxu0
  %v200 = vadd.f32 0.0, %v199
  %v201 = vpop.f32.mrf.mxu0
  %202 = vmatprep.mubr.bf16.mxu0 0
  %203 = vmatmul.mubr.bf16.gmra.mxu0 %v108
  %v204 = vpop.f32.mrf.mxu0
  %v205 = vadd.f32 0.0, %v204
  %v206 = vpop.f32.mrf.mxu0
  %v207 = vpop.f32.mrf.mxu0
  %v208 = vadd.f32 0.0, %v207
  %v209 = vpop.f32.mrf.mxu0
  %210 = vdwg.mxu0
  %v212 = vsel %vm85, %v49, 0
  %v215 = vsel %vm85, %v50, 0
  %v218 = vsel %vm85, %v51, 0
  %v221 = vsel %vm85, %v52, 0
  %v224 = vsel %vm85, %v53, 0
  %v227 = vsel %vm85, %v54, 0
  %v230 = vsel %vm85, %v55, 0
  %v233 = vsel %vm85, %v56, 0
  %v236 = vsel %vm110, %v57, 0
  %238 = vmatprep.subr.bf16.mxu0 0
  %239 = vmatpush1.bf16.msra.mxu0 0
  %240 = vmatprep.subr.bf16.mxu0 0
  %241 = vmatpush1.bf16.msra.mxu0 0
  %242 = vmatprep.subr.bf16.mxu0 0
  %243 = vmatpush1.bf16.msra.mxu0 0
  %244 = vmatprep.subr.bf16.mxu0 0
  %245 = vmatpush1.bf16.msra.mxu0 0
  %246 = vmatprep.subr.bf16.mxu0 0
  %247 = vmatpush1.bf16.msra.mxu0 0
  %248 = vmatprep.subr.bf16.mxu0 0
  %249 = vmatpush1.bf16.msra.mxu0 0
  %250 = vmatprep.subr.bf16.mxu0 0
  %251 = vmatpush1.bf16.msra.mxu0 0
  %252 = vmatprep.subr.bf16.mxu0 0
  %253 = vmatpush1.bf16.msra.mxu0 %v236
  %254 = vmatprep.subr.bf16.mxu0 0
  %255 = vmatpush2.bf16.msra.mxu0 0
  %256 = vmatprep.subr.bf16.mxu0 0
  %257 = vmatpush2.bf16.msra.mxu0 0
  %258 = vmatprep.subr.bf16.mxu0 0
  %259 = vmatpush2.bf16.msra.mxu0 0
  %260 = vmatprep.subr.bf16.mxu0 0
  %261 = vmatpush2.bf16.msra.mxu0 0
  %262 = vmatprep.subr.bf16.mxu0 0
  %263 = vmatpush2.bf16.msra.mxu0 0
  %264 = vmatprep.subr.bf16.mxu0 0
  %265 = vmatpush2.bf16.msra.mxu0 0
  %266 = vmatprep.subr.bf16.mxu0 0
  %267 = vmatpush2.bf16.msra.mxu0 0
  %268 = vmatprep.subr.bf16.mxu0 0
  %269 = vmatpush2.bf16.msra.mxu0 0
  %270 = vmatprep.mubr.bf16.mxu0 0
  %271 = vmatmul.mubr.bf16.gmra.mxu0 %v212
  %v272 = vpop.f32.mrf.mxu0
  %v273 = vadd.f32 %v149, %v272
  %v274 = vpop.f32.mrf.mxu0
  %v275 = vpop.f32.mrf.mxu0
  %v276 = vadd.f32 %v152, %v275
  %v277 = vpop.f32.mrf.mxu0
  %278 = vmatprep.mubr.bf16.mxu0 0
  %279 = vmatmul.mubr.bf16.gmra.mxu0 %v215
  %v280 = vpop.f32.mrf.mxu0
  %v281 = vadd.f32 %v157, %v280
  %v282 = vpop.f32.mrf.mxu0
  %v283 = vpop.f32.mrf.mxu0
  %v284 = vadd.f32 %v160, %v283
  %v285 = vpop.f32.mrf.mxu0
  %286 = vmatprep.mubr.bf16.mxu0 0
  %287 = vmatmul.mubr.bf16.gmra.mxu0 %v218
  %v288 = vpop.f32.mrf.mxu0
  %v289 = vadd.f32 %v165, %v288
  %v290 = vpop.f32.mrf.mxu0
  %v291 = vpop.f32.mrf.mxu0
  %v292 = vadd.f32 %v168, %v291
  %v293 = vpop.f32.mrf.mxu0
  %294 = vmatprep.mubr.bf16.mxu0 0
  %295 = vmatmul.mubr.bf16.gmra.mxu0 %v221
  %v296 = vpop.f32.mrf.mxu0
  %v297 = vadd.f32 %v173, %v296
  %v298 = vpop.f32.mrf.mxu0
  %v299 = vpop.f32.mrf.mxu0
  %v300 = vadd.f32 %v176, %v299
  %v301 = vpop.f32.mrf.mxu0
  %302 = vmatprep.mubr.bf16.mxu0 0
  %303 = vmatmul.mubr.bf16.gmra.mxu0 %v224
  %v304 = vpop.f32.mrf.mxu0
  %v305 = vadd.f32 %v181, %v304
  %v306 = vpop.f32.mrf.mxu0
  %v307 = vpop.f32.mrf.mxu0
  %v308 = vadd.f32 %v184, %v307
  %v309 = vpop.f32.mrf.mxu0
  %310 = vmatprep.mubr.bf16.mxu0 0
  %311 = vmatmul.mubr.bf16.gmra.mxu0 %v227
  %v312 = vpop.f32.mrf.mxu0
  %v313 = vadd.f32 %v189, %v312
  %v314 = vpop.f32.mrf.mxu0
  %v315 = vpop.f32.mrf.mxu0
  %v316 = vadd.f32 %v192, %v315
  %v317 = vpop.f32.mrf.mxu0
  %318 = vmatprep.mubr.bf16.mxu0 0
  %319 = vmatmul.mubr.bf16.gmra.mxu0 %v230
  %v320 = vpop.f32.mrf.mxu0
  %v321 = vadd.f32 %v197, %v320
  %v322 = vpop.f32.mrf.mxu0
  %v323 = vpop.f32.mrf.mxu0
  %v324 = vadd.f32 %v200, %v323
  %v325 = vpop.f32.mrf.mxu0
  %326 = vmatprep.mubr.bf16.mxu0 0
  %327 = vmatmul.mubr.bf16.gmra.mxu0 %v233
  %v328 = vpop.f32.mrf.mxu0
  %v329 = vadd.f32 %v205, %v328
  %v330 = vpop.f32.mrf.mxu0
  %v331 = vpop.f32.mrf.mxu0
  %v332 = vadd.f32 %v208, %v331
  %v333 = vpop.f32.mrf.mxu0
  %334 = vdwg.mxu0
  %v335 = vld [vmem:[%s0 + $0x1] sm:$0xff]
  %v336 = vld [vmem:[%s0 + $0x11] sm:$0xff]
  %v337 = vld [vmem:[%s0 + $0x21] sm:$0xff]
  %v338 = vld [vmem:[%s0 + $0x31] sm:$0xff]
  %v339 = vld [vmem:[%s0 + $0x41] sm:$0xff]
  %v340 = vld [vmem:[%s0 + $0x51] sm:$0xff]
  %v341 = vld [vmem:[%s0 + $0x61] sm:$0xff]
  %v342 = vld [vmem:[%s0 + $0x71] sm:$0xff]
  %v343 = vld [vmem:[%s0 + $0x91] sm:$0xff]
  %v344 = vld [vmem:[%s0 + $0xa1] sm:$0xff]
  %v345 = vld [vmem:[%s0 + $0xb1] sm:$0xff]
  %v346 = vld [vmem:[%s0 + $0xc1] sm:$0xff]
  %v347 = vld [vmem:[%s0 + $0xd1] sm:$0xff]
  %v348 = vld [vmem:[%s0 + $0xe1] sm:$0xff]
  %v349 = vld [vmem:[%s0 + $0xf1] sm:$0xff]
  %v350 = vld [vmem:[%s0 + $0x101] sm:$0xff]
  %v351 = vpack.c.bf16 %v336, %v335
  %v352 = vpack.c.bf16 %v338, %v337
  %v353 = vpack.c.bf16 %v340, %v339
  %v354 = vpack.c.bf16 %v342, %v341
  %v355 = vpack.c.bf16 %v344, %v343
  %v356 = vpack.c.bf16 %v346, %v345
  %v357 = vpack.c.bf16 %v348, %v347
  %v358 = vpack.c.bf16 %v350, %v349
  %s359 = scalar_lea.vmem %s1, 4
  %v360 = vld [vmem:[%s359] sm:$0x3]
  %v362 = vsel %vm85, %v351, 0
  %v365 = vsel %vm85, %v352, 0
  %v368 = vsel %vm85, %v353, 0
  %v371 = vsel %vm85, %v354, 0
  %v374 = vsel %vm85, %v355, 0
  %v377 = vsel %vm85, %v356, 0
  %v380 = vsel %vm85, %v357, 0
  %v383 = vsel %vm85, %v358, 0
  %v386 = vsel %vm110, %v360, 0
  %388 = vmatprep.subr.bf16.mxu0 0
  %389 = vmatpush1.bf16.msra.mxu0 0
  %390 = vmatprep.subr.bf16.mxu0 0
  %391 = vmatpush1.bf16.msra.mxu0 0
  %392 = vmatprep.subr.bf16.mxu0 0
  %393 = vmatpush1.bf16.msra.mxu0 0
  %394 = vmatprep.subr.bf16.mxu0 0
  %395 = vmatpush1.bf16.msra.mxu0 0
  %396 = vmatprep.subr.bf16.mxu0 0
  %397 = vmatpush1.bf16.msra.mxu0 0
  %398 = vmatprep.subr.bf16.mxu0 0
  %399 = vmatpush1.bf16.msra.mxu0 0
  %400 = vmatprep.subr.bf16.mxu0 0
  %401 = vmatpush1.bf16.msra.mxu0 0
  %402 = vmatprep.subr.bf16.mxu0 0
  %403 = vmatpush1.bf16.msra.mxu0 %v386
  %404 = vmatprep.subr.bf16.mxu0 0
  %405 = vmatpush2.bf16.msra.mxu0 0
  %406 = vmatprep.subr.bf16.mxu0 0
  %407 = vmatpush2.bf16.msra.mxu0 0
  %408 = vmatprep.subr.bf16.mxu0 0
  %409 = vmatpush2.bf16.msra.mxu0 0
  %410 = vmatprep.subr.bf16.mxu0 0
  %411 = vmatpush2.bf16.msra.mxu0 0
  %412 = vmatprep.subr.bf16.mxu0 0
  %413 = vmatpush2.bf16.msra.mxu0 0
  %414 = vmatprep.subr.bf16.mxu0 0
  %415 = vmatpush2.bf16.msra.mxu0 0
  %416 = vmatprep.subr.bf16.mxu0 0
  %417 = vmatpush2.bf16.msra.mxu0 0
  %418 = vmatprep.subr.bf16.mxu0 0
  %419 = vmatpush2.bf16.msra.mxu0 0
  %420 = vmatprep.mubr.bf16.mxu0 0
  %421 = vmatmul.mubr.bf16.gmra.mxu0 %v362
  %v422 = vpop.f32.mrf.mxu0
  %v423 = vadd.f32 0.0, %v422
  %v424 = vpop.f32.mrf.mxu0
  %v425 = vpop.f32.mrf.mxu0
  %v426 = vadd.f32 0.0, %v425
  %v427 = vpop.f32.mrf.mxu0
  %428 = vmatprep.mubr.bf16.mxu0 0
  %429 = vmatmul.mubr.bf16.gmra.mxu0 %v365
  %v430 = vpop.f32.mrf.mxu0
  %v431 = vadd.f32 0.0, %v430
  %v432 = vpop.f32.mrf.mxu0
  %v433 = vpop.f32.mrf.mxu0
  %v434 = vadd.f32 0.0, %v433
  %v435 = vpop.f32.mrf.mxu0
  %436 = vmatprep.mubr.bf16.mxu0 0
  %437 = vmatmul.mubr.bf16.gmra.mxu0 %v368
  %v438 = vpop.f32.mrf.mxu0
  %v439 = vadd.f32 0.0, %v438
  %v440 = vpop.f32.mrf.mxu0
  %v441 = vpop.f32.mrf.mxu0
  %v442 = vadd.f32 0.0, %v441
  %v443 = vpop.f32.mrf.mxu0
  %444 = vmatprep.mubr.bf16.mxu0 0
  %445 = vmatmul.mubr.bf16.gmra.mxu0 %v371
  %v446 = vpop.f32.mrf.mxu0
  %v447 = vadd.f32 0.0, %v446
  %v448 = vpop.f32.mrf.mxu0
  %v449 = vpop.f32.mrf.mxu0
  %v450 = vadd.f32 0.0, %v449
  %v451 = vpop.f32.mrf.mxu0
  %452 = vmatprep.mubr.bf16.mxu0 0
  %453 = vmatmul.mubr.bf16.gmra.mxu0 %v374
  %v454 = vpop.f32.mrf.mxu0
  %v455 = vadd.f32 0.0, %v454
  %v456 = vpop.f32.mrf.mxu0
  %v457 = vpop.f32.mrf.mxu0
  %v458 = vadd.f32 0.0, %v457
  %v459 = vpop.f32.mrf.mxu0
  %460 = vmatprep.mubr.bf16.mxu0 0
  %461 = vmatmul.mubr.bf16.gmra.mxu0 %v377
  %v462 = vpop.f32.mrf.mxu0
  %v463 = vadd.f32 0.0, %v462
  %v464 = vpop.f32.mrf.mxu0
  %v465 = vpop.f32.mrf.mxu0
  %v466 = vadd.f32 0.0, %v465
  %v467 = vpop.f32.mrf.mxu0
  %468 = vmatprep.mubr.bf16.mxu0 0
  %469 = vmatmul.mubr.bf16.gmra.mxu0 %v380
  %v470 = vpop.f32.mrf.mxu0
  %v471 = vadd.f32 0.0, %v470
  %v472 = vpop.f32.mrf.mxu0
  %v473 = vpop.f32.mrf.mxu0
  %v474 = vadd.f32 0.0, %v473
  %v475 = vpop.f32.mrf.mxu0
  %476 = vmatprep.mubr.bf16.mxu0 0
  %477 = vmatmul.mubr.bf16.gmra.mxu0 %v383
  %v478 = vpop.f32.mrf.mxu0
  %v479 = vadd.f32 0.0, %v478
  %v480 = vpop.f32.mrf.mxu0
  %v481 = vpop.f32.mrf.mxu0
  %v482 = vadd.f32 0.0, %v481
  %v483 = vpop.f32.mrf.mxu0
  %484 = vdwg.mxu0
  %v485 = vadd.f32 %v273, %v423
  %v486 = vadd.f32 %v276, %v426
  %v487 = vadd.f32 %v281, %v431
  %v488 = vadd.f32 %v284, %v434
  %v489 = vadd.f32 %v289, %v439
  %v490 = vadd.f32 %v292, %v442
  %v491 = vadd.f32 %v297, %v447
  %v492 = vadd.f32 %v300, %v450
  %v493 = vadd.f32 %v305, %v455
  %v494 = vadd.f32 %v308, %v458
  %v495 = vadd.f32 %v313, %v463
  %v496 = vadd.f32 %v316, %v466
  %v497 = vadd.f32 %v321, %v471
  %v498 = vadd.f32 %v324, %v474
  %v499 = vadd.f32 %v329, %v479
  %v500 = vadd.f32 %v332, %v482
  %s501 = scalar_lea.vmem %s0, 576
  %v502 = vld [vmem:[%s501] sm:$0xff]
  %v503 = vld [vmem:[%s501 + $0x10] sm:$0xff]
  %v504 = vld [vmem:[%s501 + $0x20] sm:$0xff]
  %v505 = vld [vmem:[%s501 + $0x30] sm:$0xff]
  %v506 = vld [vmem:[%s501 + $0x40] sm:$0xff]
  %v507 = vld [vmem:[%s501 + $0x50] sm:$0xff]
  %v508 = vld [vmem:[%s501 + $0x60] sm:$0xff]
  %v509 = vld [vmem:[%s501 + $0x70] sm:$0xff]
  %v510 = vld [vmem:[%s501 + $0x90] sm:$0xff]
  %v511 = vld [vmem:[%s501 + $0xa0] sm:$0xff]
  %v512 = vld [vmem:[%s501 + $0xb0] sm:$0xff]
  %v513 = vld [vmem:[%s501 + $0xc0] sm:$0xff]
  %v514 = vld [vmem:[%s501 + $0xd0] sm:$0xff]
  %v515 = vld [vmem:[%s501 + $0xe0] sm:$0xff]
  %v516 = vld [vmem:[%s501 + $0xf0] sm:$0xff]
  %v517 = vld [vmem:[%s501 + $0x100] sm:$0xff]
  %v518 = vpack.c.bf16 %v503, %v502
  %v519 = vpack.c.bf16 %v505, %v504
  %v520 = vpack.c.bf16 %v507, %v506
  %v521 = vpack.c.bf16 %v509, %v508
  %v522 = vpack.c.bf16 %v511, %v510
  %v523 = vpack.c.bf16 %v513, %v512
  %v524 = vpack.c.bf16 %v515, %v514
  %v525 = vpack.c.bf16 %v517, %v516
  %s526 = scalar_lea.vmem %s1, 6
  %v527 = vld [vmem:[%s526] sm:$0x3]
  %v529 = vsel %vm85, %v518, 0
  %v532 = vsel %vm85, %v519, 0
  %v535 = vsel %vm85, %v520, 0
  %v538 = vsel %vm85, %v521, 0
  %v541 = vsel %vm85, %v522, 0
  %v544 = vsel %vm85, %v523, 0
  %v547 = vsel %vm85, %v524, 0
  %v550 = vsel %vm85, %v525, 0
  %v553 = vsel %vm110, %v527, 0
  %555 = vmatprep.subr.bf16.mxu0 0
  %556 = vmatpush1.bf16.msra.mxu0 0
  %557 = vmatprep.subr.bf16.mxu0 0
  %558 = vmatpush1.bf16.msra.mxu0 0
  %559 = vmatprep.subr.bf16.mxu0 0
  %560 = vmatpush1.bf16.msra.mxu0 0
  %561 = vmatprep.subr.bf16.mxu0 0
  %562 = vmatpush1.bf16.msra.mxu0 0
  %563 = vmatprep.subr.bf16.mxu0 0
  %564 = vmatpush1.bf16.msra.mxu0 0
  %565 = vmatprep.subr.bf16.mxu0 0
  %566 = vmatpush1.bf16.msra.mxu0 0
  %567 = vmatprep.subr.bf16.mxu0 0
  %568 = vmatpush1.bf16.msra.mxu0 0
  %569 = vmatprep.subr.bf16.mxu0 0
  %570 = vmatpush1.bf16.msra.mxu0 %v553
  %571 = vmatprep.subr.bf16.mxu0 0
  %572 = vmatpush2.bf16.msra.mxu0 0
  %573 = vmatprep.subr.bf16.mxu0 0
  %574 = vmatpush2.bf16.msra.mxu0 0
  %575 = vmatprep.subr.bf16.mxu0 0
  %576 = vmatpush2.bf16.msra.mxu0 0
  %577 = vmatprep.subr.bf16.mxu0 0
  %578 = vmatpush2.bf16.msra.mxu0 0
  %579 = vmatprep.subr.bf16.mxu0 0
  %580 = vmatpush2.bf16.msra.mxu0 0
  %581 = vmatprep.subr.bf16.mxu0 0
  %582 = vmatpush2.bf16.msra.mxu0 0
  %583 = vmatprep.subr.bf16.mxu0 0
  %584 = vmatpush2.bf16.msra.mxu0 0
  %585 = vmatprep.subr.bf16.mxu0 0
  %586 = vmatpush2.bf16.msra.mxu0 0
  %587 = vmatprep.mubr.bf16.mxu0 0
  %588 = vmatmul.mubr.bf16.gmra.mxu0 %v529
  %v589 = vpop.f32.mrf.mxu0
  %v590 = vadd.f32 0.0, %v589
  %v591 = vpop.f32.mrf.mxu0
  %v592 = vpop.f32.mrf.mxu0
  %v593 = vadd.f32 0.0, %v592
  %v594 = vpop.f32.mrf.mxu0
  %595 = vmatprep.mubr.bf16.mxu0 0
  %596 = vmatmul.mubr.bf16.gmra.mxu0 %v532
  %v597 = vpop.f32.mrf.mxu0
  %v598 = vadd.f32 0.0, %v597
  %v599 = vpop.f32.mrf.mxu0
  %v600 = vpop.f32.mrf.mxu0
  %v601 = vadd.f32 0.0, %v600
  %v602 = vpop.f32.mrf.mxu0
  %603 = vmatprep.mubr.bf16.mxu0 0
  %604 = vmatmul.mubr.bf16.gmra.mxu0 %v535
  %v605 = vpop.f32.mrf.mxu0
  %v606 = vadd.f32 0.0, %v605
  %v607 = vpop.f32.mrf.mxu0
  %v608 = vpop.f32.mrf.mxu0
  %v609 = vadd.f32 0.0, %v608
  %v610 = vpop.f32.mrf.mxu0
  %611 = vmatprep.mubr.bf16.mxu0 0
  %612 = vmatmul.mubr.bf16.gmra.mxu0 %v538
  %v613 = vpop.f32.mrf.mxu0
  %v614 = vadd.f32 0.0, %v613
  %v615 = vpop.f32.mrf.mxu0
  %v616 = vpop.f32.mrf.mxu0
  %v617 = vadd.f32 0.0, %v616
  %v618 = vpop.f32.mrf.mxu0
  %619 = vmatprep.mubr.bf16.mxu0 0
  %620 = vmatmul.mubr.bf16.gmra.mxu0 %v541
  %v621 = vpop.f32.mrf.mxu0
  %v622 = vadd.f32 0.0, %v621
  %v623 = vpop.f32.mrf.mxu0
  %v624 = vpop.f32.mrf.mxu0
  %v625 = vadd.f32 0.0, %v624
  %v626 = vpop.f32.mrf.mxu0
  %627 = vmatprep.mubr.bf16.mxu0 0
  %628 = vmatmul.mubr.bf16.gmra.mxu0 %v544
  %v629 = vpop.f32.mrf.mxu0
  %v630 = vadd.f32 0.0, %v629
  %v631 = vpop.f32.mrf.mxu0
  %v632 = vpop.f32.mrf.mxu0
  %v633 = vadd.f32 0.0, %v632
  %v634 = vpop.f32.mrf.mxu0
  %635 = vmatprep.mubr.bf16.mxu0 0
  %636 = vmatmul.mubr.bf16.gmra.mxu0 %v547
  %v637 = vpop.f32.mrf.mxu0
  %v638 = vadd.f32 0.0, %v637
  %v639 = vpop.f32.mrf.mxu0
  %v640 = vpop.f32.mrf.mxu0
  %v641 = vadd.f32 0.0, %v640
  %v642 = vpop.f32.mrf.mxu0
  %643 = vmatprep.mubr.bf16.mxu0 0
  %644 = vmatmul.mubr.bf16.gmra.mxu0 %v550
  %v645 = vpop.f32.mrf.mxu0
  %v646 = vadd.f32 0.0, %v645
  %v647 = vpop.f32.mrf.mxu0
  %v648 = vpop.f32.mrf.mxu0
  %v649 = vadd.f32 0.0, %v648
  %v650 = vpop.f32.mrf.mxu0
  %651 = vdwg.mxu0
  %v652 = vadd.f32 %v485, %v590
  %v653 = vadd.f32 %v486, %v593
  %v654 = vadd.f32 %v487, %v598
  %v655 = vadd.f32 %v488, %v601
  %v656 = vadd.f32 %v489, %v606
  %v657 = vadd.f32 %v490, %v609
  %v658 = vadd.f32 %v491, %v614
  %v659 = vadd.f32 %v492, %v617
  %v660 = vadd.f32 %v493, %v622
  %v661 = vadd.f32 %v494, %v625
  %v662 = vadd.f32 %v495, %v630
  %v663 = vadd.f32 %v496, %v633
  %v664 = vadd.f32 %v497, %v638
  %v665 = vadd.f32 %v498, %v641
  %v666 = vadd.f32 %v499, %v646
  %v667 = vadd.f32 %v500, %v649
  %s668 = scalar_lea.vmem %s0, 864
  %v669 = vld [vmem:[%s668] sm:$0xff]
  %v670 = vld [vmem:[%s668 + $0x10] sm:$0xff]
  %v671 = vld [vmem:[%s668 + $0x20] sm:$0xff]
  %v672 = vld [vmem:[%s668 + $0x30] sm:$0xff]
  %v673 = vld [vmem:[%s668 + $0x40] sm:$0xff]
  %v674 = vld [vmem:[%s668 + $0x50] sm:$0xff]
  %v675 = vld [vmem:[%s668 + $0x60] sm:$0xff]
  %v676 = vld [vmem:[%s668 + $0x70] sm:$0xff]
  %v677 = vld [vmem:[%s668 + $0x90] sm:$0xff]
  %v678 = vld [vmem:[%s668 + $0xa0] sm:$0xff]
  %v679 = vld [vmem:[%s668 + $0xb0] sm:$0xff]
  %v680 = vld [vmem:[%s668 + $0xc0] sm:$0xff]
  %v681 = vld [vmem:[%s668 + $0xd0] sm:$0xff]
  %v682 = vld [vmem:[%s668 + $0xe0] sm:$0xff]
  %v683 = vld [vmem:[%s668 + $0xf0] sm:$0xff]
  %v684 = vld [vmem:[%s668 + $0x100] sm:$0xff]
  %v685 = vpack.c.bf16 %v670, %v669
  %v686 = vpack.c.bf16 %v672, %v671
  %v687 = vpack.c.bf16 %v674, %v673
  %v688 = vpack.c.bf16 %v676, %v675
  %v689 = vpack.c.bf16 %v678, %v677
  %v690 = vpack.c.bf16 %v680, %v679
  %v691 = vpack.c.bf16 %v682, %v681
  %v692 = vpack.c.bf16 %v684, %v683
  %s693 = scalar_lea.vmem %s1, 8
  %v694 = vld [vmem:[%s693] sm:$0x3]
  %v696 = vsel %vm85, %v685, 0
  %v699 = vsel %vm85, %v686, 0
  %v702 = vsel %vm85, %v687, 0
  %v705 = vsel %vm85, %v688, 0
  %v708 = vsel %vm85, %v689, 0
  %v711 = vsel %vm85, %v690, 0
  %v714 = vsel %vm85, %v691, 0
  %v717 = vsel %vm85, %v692, 0
  %v720 = vsel %vm110, %v694, 0
  %722 = vmatprep.subr.bf16.mxu0 0
  %723 = vmatpush1.bf16.msra.mxu0 0
  %724 = vmatprep.subr.bf16.mxu0 0
  %725 = vmatpush1.bf16.msra.mxu0 0
  %726 = vmatprep.subr.bf16.mxu0 0
  %727 = vmatpush1.bf16.msra.mxu0 0
  %728 = vmatprep.subr.bf16.mxu0 0
  %729 = vmatpush1.bf16.msra.mxu0 0
  %730 = vmatprep.subr.bf16.mxu0 0
  %731 = vmatpush1.bf16.msra.mxu0 0
  %732 = vmatprep.subr.bf16.mxu0 0
  %733 = vmatpush1.bf16.msra.mxu0 0
  %734 = vmatprep.subr.bf16.mxu0 0
  %735 = vmatpush1.bf16.msra.mxu0 0
  %736 = vmatprep.subr.bf16.mxu0 0
  %737 = vmatpush1.bf16.msra.mxu0 %v720
  %738 = vmatprep.subr.bf16.mxu0 0
  %739 = vmatpush2.bf16.msra.mxu0 0
  %740 = vmatprep.subr.bf16.mxu0 0
  %741 = vmatpush2.bf16.msra.mxu0 0
  %742 = vmatprep.subr.bf16.mxu0 0
  %743 = vmatpush2.bf16.msra.mxu0 0
  %744 = vmatprep.subr.bf16.mxu0 0
  %745 = vmatpush2.bf16.msra.mxu0 0
  %746 = vmatprep.subr.bf16.mxu0 0
  %747 = vmatpush2.bf16.msra.mxu0 0
  %748 = vmatprep.subr.bf16.mxu0 0
  %749 = vmatpush2.bf16.msra.mxu0 0
  %750 = vmatprep.subr.bf16.mxu0 0
  %751 = vmatpush2.bf16.msra.mxu0 0
  %752 = vmatprep.subr.bf16.mxu0 0
  %753 = vmatpush2.bf16.msra.mxu0 0
  %754 = vmatprep.mubr.bf16.mxu0 0
  %755 = vmatmul.mubr.bf16.gmra.mxu0 %v696
  %v756 = vpop.f32.mrf.mxu0
  %v757 = vadd.f32 0.0, %v756
  %v758 = vpop.f32.mrf.mxu0
  %v759 = vpop.f32.mrf.mxu0
  %v760 = vadd.f32 0.0, %v759
  %v761 = vpop.f32.mrf.mxu0
  %762 = vmatprep.mubr.bf16.mxu0 0
  %763 = vmatmul.mubr.bf16.gmra.mxu0 %v699
  %v764 = vpop.f32.mrf.mxu0
  %v765 = vadd.f32 0.0, %v764
  %v766 = vpop.f32.mrf.mxu0
  %v767 = vpop.f32.mrf.mxu0
  %v768 = vadd.f32 0.0, %v767
  %v769 = vpop.f32.mrf.mxu0
  %770 = vmatprep.mubr.bf16.mxu0 0
  %771 = vmatmul.mubr.bf16.gmra.mxu0 %v702
  %v772 = vpop.f32.mrf.mxu0
  %v773 = vadd.f32 0.0, %v772
  %v774 = vpop.f32.mrf.mxu0
  %v775 = vpop.f32.mrf.mxu0
  %v776 = vadd.f32 0.0, %v775
  %v777 = vpop.f32.mrf.mxu0
  %778 = vmatprep.mubr.bf16.mxu0 0
  %779 = vmatmul.mubr.bf16.gmra.mxu0 %v705
  %v780 = vpop.f32.mrf.mxu0
  %v781 = vadd.f32 0.0, %v780
  %v782 = vpop.f32.mrf.mxu0
  %v783 = vpop.f32.mrf.mxu0
  %v784 = vadd.f32 0.0, %v783
  %v785 = vpop.f32.mrf.mxu0
  %786 = vmatprep.mubr.bf16.mxu0 0
  %787 = vmatmul.mubr.bf16.gmra.mxu0 %v708
  %v788 = vpop.f32.mrf.mxu0
  %v789 = vadd.f32 0.0, %v788
  %v790 = vpop.f32.mrf.mxu0
  %v791 = vpop.f32.mrf.mxu0
  %v792 = vadd.f32 0.0, %v791
  %v793 = vpop.f32.mrf.mxu0
  %794 = vmatprep.mubr.bf16.mxu0 0
  %795 = vmatmul.mubr.bf16.gmra.mxu0 %v711
  %v796 = vpop.f32.mrf.mxu0
  %v797 = vadd.f32 0.0, %v796
  %v798 = vpop.f32.mrf.mxu0
  %v799 = vpop.f32.mrf.mxu0
  %v800 = vadd.f32 0.0, %v799
  %v801 = vpop.f32.mrf.mxu0
  %802 = vmatprep.mubr.bf16.mxu0 0
  %803 = vmatmul.mubr.bf16.gmra.mxu0 %v714
  %v804 = vpop.f32.mrf.mxu0
  %v805 = vadd.f32 0.0, %v804
  %v806 = vpop.f32.mrf.mxu0
  %v807 = vpop.f32.mrf.mxu0
  %v808 = vadd.f32 0.0, %v807
  %v809 = vpop.f32.mrf.mxu0
  %810 = vmatprep.mubr.bf16.mxu0 0
  %811 = vmatmul.mubr.bf16.gmra.mxu0 %v717
  %v812 = vpop.f32.mrf.mxu0
  %v813 = vadd.f32 0.0, %v812
  %v814 = vpop.f32.mrf.mxu0
  %v815 = vpop.f32.mrf.mxu0
  %v816 = vadd.f32 0.0, %v815
  %v817 = vpop.f32.mrf.mxu0
  %818 = vdwg.mxu0
  %v819 = vadd.f32 %v652, %v757
  %v820 = vadd.f32 %v653, %v760
  %v821 = vadd.f32 %v654, %v765
  %v822 = vadd.f32 %v655, %v768
  %v823 = vadd.f32 %v656, %v773
  %v824 = vadd.f32 %v657, %v776
  %v825 = vadd.f32 %v658, %v781
  %v826 = vadd.f32 %v659, %v784
  %v827 = vadd.f32 %v660, %v789
  %v828 = vadd.f32 %v661, %v792
  %v829 = vadd.f32 %v662, %v797
  %v830 = vadd.f32 %v663, %v800
  %v831 = vadd.f32 %v664, %v805
  %v832 = vadd.f32 %v665, %v808
  %v833 = vadd.f32 %v666, %v813
  %v834 = vadd.f32 %v667, %v816
  %v835 = vld [vmem:[%s501 + $0x1] sm:$0xff]
  %v836 = vld [vmem:[%s501 + $0x11] sm:$0xff]
  %v837 = vld [vmem:[%s501 + $0x21] sm:$0xff]
  %v838 = vld [vmem:[%s501 + $0x31] sm:$0xff]
  %v839 = vld [vmem:[%s501 + $0x41] sm:$0xff]
  %v840 = vld [vmem:[%s501 + $0x51] sm:$0xff]
  %v841 = vld [vmem:[%s501 + $0x61] sm:$0xff]
  %v842 = vld [vmem:[%s501 + $0x71] sm:$0xff]
  %v843 = vld [vmem:[%s501 + $0x91] sm:$0xff]
  %v844 = vld [vmem:[%s501 + $0xa1] sm:$0xff]
  %v845 = vld [vmem:[%s501 + $0xb1] sm:$0xff]
  %v846 = vld [vmem:[%s501 + $0xc1] sm:$0xff]
  %v847 = vld [vmem:[%s501 + $0xd1] sm:$0xff]
  %v848 = vld [vmem:[%s501 + $0xe1] sm:$0xff]
  %v849 = vld [vmem:[%s501 + $0xf1] sm:$0xff]
  %v850 = vld [vmem:[%s501 + $0x101] sm:$0xff]
  %v851 = vpack.c.bf16 %v836, %v835
  %v852 = vpack.c.bf16 %v838, %v837
  %v853 = vpack.c.bf16 %v840, %v839
  %v854 = vpack.c.bf16 %v842, %v841
  %v855 = vpack.c.bf16 %v844, %v843
  %v856 = vpack.c.bf16 %v846, %v845
  %v857 = vpack.c.bf16 %v848, %v847
  %v858 = vpack.c.bf16 %v850, %v849
  %s859 = scalar_lea.vmem %s1, 10
  %v860 = vld [vmem:[%s859] sm:$0x3]
  %v862 = vsel %vm85, %v851, 0
  %v865 = vsel %vm85, %v852, 0
  %v868 = vsel %vm85, %v853, 0
  %v871 = vsel %vm85, %v854, 0
  %v874 = vsel %vm85, %v855, 0
  %v877 = vsel %vm85, %v856, 0
  %v880 = vsel %vm85, %v857, 0
  %v883 = vsel %vm85, %v858, 0
  %v886 = vsel %vm110, %v860, 0
  %888 = vmatprep.subr.bf16.mxu0 0
  %889 = vmatpush1.bf16.msra.mxu0 0
  %890 = vmatprep.subr.bf16.mxu0 0
  %891 = vmatpush1.bf16.msra.mxu0 0
  %892 = vmatprep.subr.bf16.mxu0 0
  %893 = vmatpush1.bf16.msra.mxu0 0
  %894 = vmatprep.subr.bf16.mxu0 0
  %895 = vmatpush1.bf16.msra.mxu0 0
  %896 = vmatprep.subr.bf16.mxu0 0
  %897 = vmatpush1.bf16.msra.mxu0 0
  %898 = vmatprep.subr.bf16.mxu0 0
  %899 = vmatpush1.bf16.msra.mxu0 0
  %900 = vmatprep.subr.bf16.mxu0 0
  %901 = vmatpush1.bf16.msra.mxu0 0
  %902 = vmatprep.subr.bf16.mxu0 0
  %903 = vmatpush1.bf16.msra.mxu0 %v886
  %904 = vmatprep.subr.bf16.mxu0 0
  %905 = vmatpush2.bf16.msra.mxu0 0
  %906 = vmatprep.subr.bf16.mxu0 0
  %907 = vmatpush2.bf16.msra.mxu0 0
  %908 = vmatprep.subr.bf16.mxu0 0
  %909 = vmatpush2.bf16.msra.mxu0 0
  %910 = vmatprep.subr.bf16.mxu0 0
  %911 = vmatpush2.bf16.msra.mxu0 0
  %912 = vmatprep.subr.bf16.mxu0 0
  %913 = vmatpush2.bf16.msra.mxu0 0
  %914 = vmatprep.subr.bf16.mxu0 0
  %915 = vmatpush2.bf16.msra.mxu0 0
  %916 = vmatprep.subr.bf16.mxu0 0
  %917 = vmatpush2.bf16.msra.mxu0 0
  %918 = vmatprep.subr.bf16.mxu0 0
  %919 = vmatpush2.bf16.msra.mxu0 0
  %920 = vmatprep.mubr.bf16.mxu0 0
  %921 = vmatmul.mubr.bf16.gmra.mxu0 %v862
  %v922 = vpop.f32.mrf.mxu0
  %v923 = vadd.f32 0.0, %v922
  %v924 = vpop.f32.mrf.mxu0
  %v925 = vpop.f32.mrf.mxu0
  %v926 = vadd.f32 0.0, %v925
  %v927 = vpop.f32.mrf.mxu0
  %928 = vmatprep.mubr.bf16.mxu0 0
  %929 = vmatmul.mubr.bf16.gmra.mxu0 %v865
  %v930 = vpop.f32.mrf.mxu0
  %v931 = vadd.f32 0.0, %v930
  %v932 = vpop.f32.mrf.mxu0
  %v933 = vpop.f32.mrf.mxu0
  %v934 = vadd.f32 0.0, %v933
  %v935 = vpop.f32.mrf.mxu0
  %936 = vmatprep.mubr.bf16.mxu0 0
  %937 = vmatmul.mubr.bf16.gmra.mxu0 %v868
  %v938 = vpop.f32.mrf.mxu0
  %v939 = vadd.f32 0.0, %v938
  %v940 = vpop.f32.mrf.mxu0
  %v941 = vpop.f32.mrf.mxu0
  %v942 = vadd.f32 0.0, %v941
  %v943 = vpop.f32.mrf.mxu0
  %944 = vmatprep.mubr.bf16.mxu0 0
  %945 = vmatmul.mubr.bf16.gmra.mxu0 %v871
  %v946 = vpop.f32.mrf.mxu0
  %v947 = vadd.f32 0.0, %v946
  %v948 = vpop.f32.mrf.mxu0
  %v949 = vpop.f32.mrf.mxu0
  %v950 = vadd.f32 0.0, %v949
  %v951 = vpop.f32.mrf.mxu0
  %952 = vmatprep.mubr.bf16.mxu0 0
  %953 = vmatmul.mubr.bf16.gmra.mxu0 %v874
  %v954 = vpop.f32.mrf.mxu0
  %v955 = vadd.f32 0.0, %v954
  %v956 = vpop.f32.mrf.mxu0
  %v957 = vpop.f32.mrf.mxu0
  %v958 = vadd.f32 0.0, %v957
  %v959 = vpop.f32.mrf.mxu0
  %960 = vmatprep.mubr.bf16.mxu0 0
  %961 = vmatmul.mubr.bf16.gmra.mxu0 %v877
  %v962 = vpop.f32.mrf.mxu0
  %v963 = vadd.f32 0.0, %v962
  %v964 = vpop.f32.mrf.mxu0
  %v965 = vpop.f32.mrf.mxu0
  %v966 = vadd.f32 0.0, %v965
  %v967 = vpop.f32.mrf.mxu0
  %968 = vmatprep.mubr.bf16.mxu0 0
  %969 = vmatmul.mubr.bf16.gmra.mxu0 %v880
  %v970 = vpop.f32.mrf.mxu0
  %v971 = vadd.f32 0.0, %v970
  %v972 = vpop.f32.mrf.mxu0
  %v973 = vpop.f32.mrf.mxu0
  %v974 = vadd.f32 0.0, %v973
  %v975 = vpop.f32.mrf.mxu0
  %976 = vmatprep.mubr.bf16.mxu0 0
  %977 = vmatmul.mubr.bf16.gmra.mxu0 %v883
  %v978 = vpop.f32.mrf.mxu0
  %v979 = vadd.f32 0.0, %v978
  %v980 = vpop.f32.mrf.mxu0
  %v981 = vpop.f32.mrf.mxu0
  %v982 = vadd.f32 0.0, %v981
  %v983 = vpop.f32.mrf.mxu0
  %984 = vdwg.mxu0
  %v985 = vadd.f32 %v819, %v923
  %v986 = vadd.f32 %v820, %v926
  %v987 = vadd.f32 %v821, %v931
  %v988 = vadd.f32 %v822, %v934
  %v989 = vadd.f32 %v823, %v939
  %v990 = vadd.f32 %v824, %v942
  %v991 = vadd.f32 %v825, %v947
  %v992 = vadd.f32 %v826, %v950
  %v993 = vadd.f32 %v827, %v955
  %v994 = vadd.f32 %v828, %v958
  %v995 = vadd.f32 %v829, %v963
  %v996 = vadd.f32 %v830, %v966
  %v997 = vadd.f32 %v831, %v971
  %v998 = vadd.f32 %v832, %v974
  %v999 = vadd.f32 %v833, %v979
  %v1000 = vadd.f32 %v834, %v982
  %s1001 = scalar_lea.vmem %s0, 16
  %v1002 = vld [vmem:[%s1001] sm:$0xff]
  %v1003 = vld [vmem:[%s1001 + $0x10] sm:$0xff]
  %v1004 = vld [vmem:[%s1001 + $0x20] sm:$0xff]
  %v1005 = vld [vmem:[%s1001 + $0x30] sm:$0xff]
  %v1006 = vld [vmem:[%s1001 + $0x40] sm:$0xff]
  %v1007 = vld [vmem:[%s1001 + $0x50] sm:$0xff]
  %v1008 = vld [vmem:[%s1001 + $0x60] sm:$0xff]
  %v1009 = vld [vmem:[%s1001 + $0x70] sm:$0xff]
  %v1010 = vld [vmem:[%s1001 + $0x90] sm:$0xff]
  %v1011 = vld [vmem:[%s1001 + $0xa0] sm:$0xff]
  %v1012 = vld [vmem:[%s1001 + $0xb0] sm:$0xff]
  %v1013 = vld [vmem:[%s1001 + $0xc0] sm:$0xff]
  %v1014 = vld [vmem:[%s1001 + $0xd0] sm:$0xff]
  %v1015 = vld [vmem:[%s1001 + $0xe0] sm:$0xff]
  %v1016 = vld [vmem:[%s1001 + $0xf0] sm:$0xff]
  %v1017 = vld [vmem:[%s1001 + $0x100] sm:$0xff]
  %v1018 = vpack.c.bf16 %v1003, %v1002
  %v1019 = vpack.c.bf16 %v1005, %v1004
  %v1020 = vpack.c.bf16 %v1007, %v1006
  %v1021 = vpack.c.bf16 %v1009, %v1008
  %v1022 = vpack.c.bf16 %v1011, %v1010
  %v1023 = vpack.c.bf16 %v1013, %v1012
  %v1024 = vpack.c.bf16 %v1015, %v1014
  %v1025 = vpack.c.bf16 %v1017, %v1016
  %s1026 = scalar_lea.vmem %s1, 12
  %v1027 = vld [vmem:[%s1026] sm:$0x3]
  %v1029 = vsel %vm85, %v1018, 0
  %v1032 = vsel %vm85, %v1019, 0
  %v1035 = vsel %vm85, %v1020, 0
  %v1038 = vsel %vm85, %v1021, 0
  %v1041 = vsel %vm85, %v1022, 0
  %v1044 = vsel %vm85, %v1023, 0
  %v1047 = vsel %vm85, %v1024, 0
  %v1050 = vsel %vm85, %v1025, 0
  %v1053 = vsel %vm110, %v1027, 0
  %1055 = vmatprep.subr.bf16.mxu0 0
  %1056 = vmatpush1.bf16.msra.mxu0 0
  %1057 = vmatprep.subr.bf16.mxu0 0
  %1058 = vmatpush1.bf16.msra.mxu0 0
  %1059 = vmatprep.subr.bf16.mxu0 0
  %1060 = vmatpush1.bf16.msra.mxu0 0
  %1061 = vmatprep.subr.bf16.mxu0 0
  %1062 = vmatpush1.bf16.msra.mxu0 0
  %1063 = vmatprep.subr.bf16.mxu0 0
  %1064 = vmatpush1.bf16.msra.mxu0 0
  %1065 = vmatprep.subr.bf16.mxu0 0
  %1066 = vmatpush1.bf16.msra.mxu0 0
  %1067 = vmatprep.subr.bf16.mxu0 0
  %1068 = vmatpush1.bf16.msra.mxu0 0
  %1069 = vmatprep.subr.bf16.mxu0 0
  %1070 = vmatpush1.bf16.msra.mxu0 %v1053
  %1071 = vmatprep.subr.bf16.mxu0 0
  %1072 = vmatpush2.bf16.msra.mxu0 0
  %1073 = vmatprep.subr.bf16.mxu0 0
  %1074 = vmatpush2.bf16.msra.mxu0 0
  %1075 = vmatprep.subr.bf16.mxu0 0
  %1076 = vmatpush2.bf16.msra.mxu0 0
  %1077 = vmatprep.subr.bf16.mxu0 0
  %1078 = vmatpush2.bf16.msra.mxu0 0
  %1079 = vmatprep.subr.bf16.mxu0 0
  %1080 = vmatpush2.bf16.msra.mxu0 0
  %1081 = vmatprep.subr.bf16.mxu0 0
  %1082 = vmatpush2.bf16.msra.mxu0 0
  %1083 = vmatprep.subr.bf16.mxu0 0
  %1084 = vmatpush2.bf16.msra.mxu0 0
  %1085 = vmatprep.subr.bf16.mxu0 0
  %1086 = vmatpush2.bf16.msra.mxu0 0
  %1087 = vmatprep.mubr.bf16.mxu0 0
  %1088 = vmatmul.mubr.bf16.gmra.mxu0 %v1029
  %v1089 = vpop.f32.mrf.mxu0
  %v1090 = vadd.f32 0.0, %v1089
  %v1091 = vpop.f32.mrf.mxu0
  %v1092 = vpop.f32.mrf.mxu0
  %v1093 = vadd.f32 0.0, %v1092
  %v1094 = vpop.f32.mrf.mxu0
  %1095 = vmatprep.mubr.bf16.mxu0 0
  %1096 = vmatmul.mubr.bf16.gmra.mxu0 %v1032
  %v1097 = vpop.f32.mrf.mxu0
  %v1098 = vadd.f32 0.0, %v1097
  %v1099 = vpop.f32.mrf.mxu0
  %v1100 = vpop.f32.mrf.mxu0
  %v1101 = vadd.f32 0.0, %v1100
  %v1102 = vpop.f32.mrf.mxu0
  %1103 = vmatprep.mubr.bf16.mxu0 0
  %1104 = vmatmul.mubr.bf16.gmra.mxu0 %v1035
  %v1105 = vpop.f32.mrf.mxu0
  %v1106 = vadd.f32 0.0, %v1105
  %v1107 = vpop.f32.mrf.mxu0
  %v1108 = vpop.f32.mrf.mxu0
  %v1109 = vadd.f32 0.0, %v1108
  %v1110 = vpop.f32.mrf.mxu0
  %1111 = vmatprep.mubr.bf16.mxu0 0
  %1112 = vmatmul.mubr.bf16.gmra.mxu0 %v1038
  %v1113 = vpop.f32.mrf.mxu0
  %v1114 = vadd.f32 0.0, %v1113
  %v1115 = vpop.f32.mrf.mxu0
  %v1116 = vpop.f32.mrf.mxu0
  %v1117 = vadd.f32 0.0, %v1116
  %v1118 = vpop.f32.mrf.mxu0
  %1119 = vmatprep.mubr.bf16.mxu0 0
  %1120 = vmatmul.mubr.bf16.gmra.mxu0 %v1041
  %v1121 = vpop.f32.mrf.mxu0
  %v1122 = vadd.f32 0.0, %v1121
  %v1123 = vpop.f32.mrf.mxu0
  %v1124 = vpop.f32.mrf.mxu0
  %v1125 = vadd.f32 0.0, %v1124
  %v1126 = vpop.f32.mrf.mxu0
  %1127 = vmatprep.mubr.bf16.mxu0 0
  %1128 = vmatmul.mubr.bf16.gmra.mxu0 %v1044
  %v1129 = vpop.f32.mrf.mxu0
  %v1130 = vadd.f32 0.0, %v1129
  %v1131 = vpop.f32.mrf.mxu0
  %v1132 = vpop.f32.mrf.mxu0
  %v1133 = vadd.f32 0.0, %v1132
  %v1134 = vpop.f32.mrf.mxu0
  %1135 = vmatprep.mubr.bf16.mxu0 0
  %1136 = vmatmul.mubr.bf16.gmra.mxu0 %v1047
  %v1137 = vpop.f32.mrf.mxu0
  %v1138 = vadd.f32 0.0, %v1137
  %v1139 = vpop.f32.mrf.mxu0
  %v1140 = vpop.f32.mrf.mxu0
  %v1141 = vadd.f32 0.0, %v1140
  %v1142 = vpop.f32.mrf.mxu0
  %1143 = vmatprep.mubr.bf16.mxu0 0
  %1144 = vmatmul.mubr.bf16.gmra.mxu0 %v1050
  %v1145 = vpop.f32.mrf.mxu0
  %v1146 = vadd.f32 0.0, %v1145
  %v1147 = vpop.f32.mrf.mxu0
  %v1148 = vpop.f32.mrf.mxu0
  %v1149 = vadd.f32 0.0, %v1148
  %v1150 = vpop.f32.mrf.mxu0
  %1151 = vdwg.mxu0
  %v1152 = vadd.f32 %v985, %v1090
  %v1153 = vadd.f32 %v986, %v1093
  %v1154 = vadd.f32 %v987, %v1098
  %v1155 = vadd.f32 %v988, %v1101
  %v1156 = vadd.f32 %v989, %v1106
  %v1157 = vadd.f32 %v990, %v1109
  %v1158 = vadd.f32 %v991, %v1114
  %v1159 = vadd.f32 %v992, %v1117
  %v1160 = vadd.f32 %v993, %v1122
  %v1161 = vadd.f32 %v994, %v1125
  %v1162 = vadd.f32 %v995, %v1130
  %v1163 = vadd.f32 %v996, %v1133
  %v1164 = vadd.f32 %v997, %v1138
  %v1165 = vadd.f32 %v998, %v1141
  %v1166 = vadd.f32 %v999, %v1146
  %v1167 = vadd.f32 %v1000, %v1149
  %s1168 = scalar_lea.vmem %s0, 304
  %v1169 = vld [vmem:[%s1168] sm:$0xff]
  %v1170 = vld [vmem:[%s1168 + $0x10] sm:$0xff]
  %v1171 = vld [vmem:[%s1168 + $0x20] sm:$0xff]
  %v1172 = vld [vmem:[%s1168 + $0x30] sm:$0xff]
  %v1173 = vld [vmem:[%s1168 + $0x40] sm:$0xff]
  %v1174 = vld [vmem:[%s1168 + $0x50] sm:$0xff]
  %v1175 = vld [vmem:[%s1168 + $0x60] sm:$0xff]
  %v1176 = vld [vmem:[%s1168 + $0x70] sm:$0xff]
  %v1177 = vld [vmem:[%s1168 + $0x90] sm:$0xff]
  %v1178 = vld [vmem:[%s1168 + $0xa0] sm:$0xff]
  %v1179 = vld [vmem:[%s1168 + $0xb0] sm:$0xff]
  %v1180 = vld [vmem:[%s1168 + $0xc0] sm:$0xff]
  %v1181 = vld [vmem:[%s1168 + $0xd0] sm:$0xff]
  %v1182 = vld [vmem:[%s1168 + $0xe0] sm:$0xff]
  %v1183 = vld [vmem:[%s1168 + $0xf0] sm:$0xff]
  %v1184 = vld [vmem:[%s1168 + $0x100] sm:$0xff]
  %v1185 = vpack.c.bf16 %v1170, %v1169
  %v1186 = vpack.c.bf16 %v1172, %v1171
  %v1187 = vpack.c.bf16 %v1174, %v1173
  %v1188 = vpack.c.bf16 %v1176, %v1175
  %v1189 = vpack.c.bf16 %v1178, %v1177
  %v1190 = vpack.c.bf16 %v1180, %v1179
  %v1191 = vpack.c.bf16 %v1182, %v1181
  %v1192 = vpack.c.bf16 %v1184, %v1183
  %s1193 = scalar_lea.vmem %s1, 14
  %v1194 = vld [vmem:[%s1193] sm:$0x3]
  %v1196 = vsel %vm85, %v1185, 0
  %v1199 = vsel %vm85, %v1186, 0
  %v1202 = vsel %vm85, %v1187, 0
  %v1205 = vsel %vm85, %v1188, 0
  %v1208 = vsel %vm85, %v1189, 0
  %v1211 = vsel %vm85, %v1190, 0
  %v1214 = vsel %vm85, %v1191, 0
  %v1217 = vsel %vm85, %v1192, 0
  %v1220 = vsel %vm110, %v1194, 0
  %1222 = vmatprep.subr.bf16.mxu0 0
  %1223 = vmatpush1.bf16.msra.mxu0 0
  %1224 = vmatprep.subr.bf16.mxu0 0
  %1225 = vmatpush1.bf16.msra.mxu0 0
  %1226 = vmatprep.subr.bf16.mxu0 0
  %1227 = vmatpush1.bf16.msra.mxu0 0
  %1228 = vmatprep.subr.bf16.mxu0 0
  %1229 = vmatpush1.bf16.msra.mxu0 0
  %1230 = vmatprep.subr.bf16.mxu0 0
  %1231 = vmatpush1.bf16.msra.mxu0 0
  %1232 = vmatprep.subr.bf16.mxu0 0
  %1233 = vmatpush1.bf16.msra.mxu0 0
  %1234 = vmatprep.subr.bf16.mxu0 0
  %1235 = vmatpush1.bf16.msra.mxu0 0
  %1236 = vmatprep.subr.bf16.mxu0 0
  %1237 = vmatpush1.bf16.msra.mxu0 %v1220
  %1238 = vmatprep.subr.bf16.mxu0 0
  %1239 = vmatpush2.bf16.msra.mxu0 0
  %1240 = vmatprep.subr.bf16.mxu0 0
  %1241 = vmatpush2.bf16.msra.mxu0 0
  %1242 = vmatprep.subr.bf16.mxu0 0
  %1243 = vmatpush2.bf16.msra.mxu0 0
  %1244 = vmatprep.subr.bf16.mxu0 0
  %1245 = vmatpush2.bf16.msra.mxu0 0
  %1246 = vmatprep.subr.bf16.mxu0 0
  %1247 = vmatpush2.bf16.msra.mxu0 0
  %1248 = vmatprep.subr.bf16.mxu0 0
  %1249 = vmatpush2.bf16.msra.mxu0 0
  %1250 = vmatprep.subr.bf16.mxu0 0
  %1251 = vmatpush2.bf16.msra.mxu0 0
  %1252 = vmatprep.subr.bf16.mxu0 0
  %1253 = vmatpush2.bf16.msra.mxu0 0
  %1254 = vmatprep.mubr.bf16.mxu0 0
  %1255 = vmatmul.mubr.bf16.gmra.mxu0 %v1196
  %v1256 = vpop.f32.mrf.mxu0
  %v1257 = vadd.f32 0.0, %v1256
  %v1258 = vpop.f32.mrf.mxu0
  %v1259 = vpop.f32.mrf.mxu0
  %v1260 = vadd.f32 0.0, %v1259
  %v1261 = vpop.f32.mrf.mxu0
  %1262 = vmatprep.mubr.bf16.mxu0 0
  %1263 = vmatmul.mubr.bf16.gmra.mxu0 %v1199
  %v1264 = vpop.f32.mrf.mxu0
  %v1265 = vadd.f32 0.0, %v1264
  %v1266 = vpop.f32.mrf.mxu0
  %v1267 = vpop.f32.mrf.mxu0
  %v1268 = vadd.f32 0.0, %v1267
  %v1269 = vpop.f32.mrf.mxu0
  %1270 = vmatprep.mubr.bf16.mxu0 0
  %1271 = vmatmul.mubr.bf16.gmra.mxu0 %v1202
  %v1272 = vpop.f32.mrf.mxu0
  %v1273 = vadd.f32 0.0, %v1272
  %v1274 = vpop.f32.mrf.mxu0
  %v1275 = vpop.f32.mrf.mxu0
  %v1276 = vadd.f32 0.0, %v1275
  %v1277 = vpop.f32.mrf.mxu0
  %1278 = vmatprep.mubr.bf16.mxu0 0
  %1279 = vmatmul.mubr.bf16.gmra.mxu0 %v1205
  %v1280 = vpop.f32.mrf.mxu0
  %v1281 = vadd.f32 0.0, %v1280
  %v1282 = vpop.f32.mrf.mxu0
  %v1283 = vpop.f32.mrf.mxu0
  %v1284 = vadd.f32 0.0, %v1283
  %v1285 = vpop.f32.mrf.mxu0
  %1286 = vmatprep.mubr.bf16.mxu0 0
  %1287 = vmatmul.mubr.bf16.gmra.mxu0 %v1208
  %v1288 = vpop.f32.mrf.mxu0
  %v1289 = vadd.f32 0.0, %v1288
  %v1290 = vpop.f32.mrf.mxu0
  %v1291 = vpop.f32.mrf.mxu0
  %v1292 = vadd.f32 0.0, %v1291
  %v1293 = vpop.f32.mrf.mxu0
  %1294 = vmatprep.mubr.bf16.mxu0 0
  %1295 = vmatmul.mubr.bf16.gmra.mxu0 %v1211
  %v1296 = vpop.f32.mrf.mxu0
  %v1297 = vadd.f32 0.0, %v1296
  %v1298 = vpop.f32.mrf.mxu0
  %v1299 = vpop.f32.mrf.mxu0
  %v1300 = vadd.f32 0.0, %v1299
  %v1301 = vpop.f32.mrf.mxu0
  %1302 = vmatprep.mubr.bf16.mxu0 0
  %1303 = vmatmul.mubr.bf16.gmra.mxu0 %v1214
  %v1304 = vpop.f32.mrf.mxu0
  %v1305 = vadd.f32 0.0, %v1304
  %v1306 = vpop.f32.mrf.mxu0
  %v1307 = vpop.f32.mrf.mxu0
  %v1308 = vadd.f32 0.0, %v1307
  %v1309 = vpop.f32.mrf.mxu0
  %1310 = vmatprep.mubr.bf16.mxu0 0
  %1311 = vmatmul.mubr.bf16.gmra.mxu0 %v1217
  %v1312 = vpop.f32.mrf.mxu0
  %v1313 = vadd.f32 0.0, %v1312
  %v1314 = vpop.f32.mrf.mxu0
  %v1315 = vpop.f32.mrf.mxu0
  %v1316 = vadd.f32 0.0, %v1315
  %v1317 = vpop.f32.mrf.mxu0
  %1318 = vdwg.mxu0
  %v1319 = vadd.f32 %v1152, %v1257
  %v1320 = vadd.f32 %v1153, %v1260
  %v1321 = vadd.f32 %v1154, %v1265
  %v1322 = vadd.f32 %v1155, %v1268
  %v1323 = vadd.f32 %v1156, %v1273
  %v1324 = vadd.f32 %v1157, %v1276
  %v1325 = vadd.f32 %v1158, %v1281
  %v1326 = vadd.f32 %v1159, %v1284
  %v1327 = vadd.f32 %v1160, %v1289
  %v1328 = vadd.f32 %v1161, %v1292
  %v1329 = vadd.f32 %v1162, %v1297
  %v1330 = vadd.f32 %v1163, %v1300
  %v1331 = vadd.f32 %v1164, %v1305
  %v1332 = vadd.f32 %v1165, %v1308
  %v1333 = vadd.f32 %v1166, %v1313
  %v1334 = vadd.f32 %v1167, %v1316
  %v1335 = vld [vmem:[%s1001 + $0x1] sm:$0xff]
  %v1336 = vld [vmem:[%s1001 + $0x11] sm:$0xff]
  %v1337 = vld [vmem:[%s1001 + $0x21] sm:$0xff]
  %v1338 = vld [vmem:[%s1001 + $0x31] sm:$0xff]
  %v1339 = vld [vmem:[%s1001 + $0x41] sm:$0xff]
  %v1340 = vld [vmem:[%s1001 + $0x51] sm:$0xff]
  %v1341 = vld [vmem:[%s1001 + $0x61] sm:$0xff]
  %v1342 = vld [vmem:[%s1001 + $0x71] sm:$0xff]
  %v1343 = vld [vmem:[%s1001 + $0x91] sm:$0xff]
  %v1344 = vld [vmem:[%s1001 + $0xa1] sm:$0xff]
  %v1345 = vld [vmem:[%s1001 + $0xb1] sm:$0xff]
  %v1346 = vld [vmem:[%s1001 + $0xc1] sm:$0xff]
  %v1347 = vld [vmem:[%s1001 + $0xd1] sm:$0xff]
  %v1348 = vld [vmem:[%s1001 + $0xe1] sm:$0xff]
  %v1349 = vld [vmem:[%s1001 + $0xf1] sm:$0xff]
  %v1350 = vld [vmem:[%s1001 + $0x101] sm:$0xff]
  %v1351 = vpack.c.bf16 %v1336, %v1335
  %v1352 = vpack.c.bf16 %v1338, %v1337
  %v1353 = vpack.c.bf16 %v1340, %v1339
  %v1354 = vpack.c.bf16 %v1342, %v1341
  %v1355 = vpack.c.bf16 %v1344, %v1343
  %v1356 = vpack.c.bf16 %v1346, %v1345
  %v1357 = vpack.c.bf16 %v1348, %v1347
  %v1358 = vpack.c.bf16 %v1350, %v1349
  %s1359 = scalar_lea.vmem %s1, 16
  %v1360 = vld [vmem:[%s1359] sm:$0x3]
  %v1362 = vsel %vm85, %v1351, 0
  %v1365 = vsel %vm85, %v1352, 0
  %v1368 = vsel %vm85, %v1353, 0
  %v1371 = vsel %vm85, %v1354, 0
  %v1374 = vsel %vm85, %v1355, 0
  %v1377 = vsel %vm85, %v1356, 0
  %v1380 = vsel %vm85, %v1357, 0
  %v1383 = vsel %vm85, %v1358, 0
  %v1386 = vsel %vm110, %v1360, 0
  %1388 = vmatprep.subr.bf16.mxu0 0
  %1389 = vmatpush1.bf16.msra.mxu0 0
  %1390 = vmatprep.subr.bf16.mxu0 0
  %1391 = vmatpush1.bf16.msra.mxu0 0
  %1392 = vmatprep.subr.bf16.mxu0 0
  %1393 = vmatpush1.bf16.msra.mxu0 0
  %1394 = vmatprep.subr.bf16.mxu0 0
  %1395 = vmatpush1.bf16.msra.mxu0 0
  %1396 = vmatprep.subr.bf16.mxu0 0
  %1397 = vmatpush1.bf16.msra.mxu0 0
  %1398 = vmatprep.subr.bf16.mxu0 0
  %1399 = vmatpush1.bf16.msra.mxu0 0
  %1400 = vmatprep.subr.bf16.mxu0 0
  %1401 = vmatpush1.bf16.msra.mxu0 0
  %1402 = vmatprep.subr.bf16.mxu0 0
  %1403 = vmatpush1.bf16.msra.mxu0 %v1386
  %1404 = vmatprep.subr.bf16.mxu0 0
  %1405 = vmatpush2.bf16.msra.mxu0 0
  %1406 = vmatprep.subr.bf16.mxu0 0
  %1407 = vmatpush2.bf16.msra.mxu0 0
  %1408 = vmatprep.subr.bf16.mxu0 0
  %1409 = vmatpush2.bf16.msra.mxu0 0
  %1410 = vmatprep.subr.bf16.mxu0 0
  %1411 = vmatpush2.bf16.msra.mxu0 0
  %1412 = vmatprep.subr.bf16.mxu0 0
  %1413 = vmatpush2.bf16.msra.mxu0 0
  %1414 = vmatprep.subr.bf16.mxu0 0
  %1415 = vmatpush2.bf16.msra.mxu0 0
  %1416 = vmatprep.subr.bf16.mxu0 0
  %1417 = vmatpush2.bf16.msra.mxu0 0
  %1418 = vmatprep.subr.bf16.mxu0 0
  %1419 = vmatpush2.bf16.msra.mxu0 0
  %1420 = vmatprep.mubr.bf16.mxu0 0
  %1421 = vmatmul.mubr.bf16.gmra.mxu0 %v1362
  %v1422 = vpop.f32.mrf.mxu0
  %v1423 = vadd.f32 0.0, %v1422
  %v1424 = vpop.f32.mrf.mxu0
  %v1425 = vpop.f32.mrf.mxu0
  %v1426 = vadd.f32 0.0, %v1425
  %v1427 = vpop.f32.mrf.mxu0
  %1428 = vmatprep.mubr.bf16.mxu0 0
  %1429 = vmatmul.mubr.bf16.gmra.mxu0 %v1365
  %v1430 = vpop.f32.mrf.mxu0
  %v1431 = vadd.f32 0.0, %v1430
  %v1432 = vpop.f32.mrf.mxu0
  %v1433 = vpop.f32.mrf.mxu0
  %v1434 = vadd.f32 0.0, %v1433
  %v1435 = vpop.f32.mrf.mxu0
  %1436 = vmatprep.mubr.bf16.mxu0 0
  %1437 = vmatmul.mubr.bf16.gmra.mxu0 %v1368
  %v1438 = vpop.f32.mrf.mxu0
  %v1439 = vadd.f32 0.0, %v1438
  %v1440 = vpop.f32.mrf.mxu0
  %v1441 = vpop.f32.mrf.mxu0
  %v1442 = vadd.f32 0.0, %v1441
  %v1443 = vpop.f32.mrf.mxu0
  %1444 = vmatprep.mubr.bf16.mxu0 0
  %1445 = vmatmul.mubr.bf16.gmra.mxu0 %v1371
  %v1446 = vpop.f32.mrf.mxu0
  %v1447 = vadd.f32 0.0, %v1446
  %v1448 = vpop.f32.mrf.mxu0
  %v1449 = vpop.f32.mrf.mxu0
  %v1450 = vadd.f32 0.0, %v1449
  %v1451 = vpop.f32.mrf.mxu0
  %1452 = vmatprep.mubr.bf16.mxu0 0
  %1453 = vmatmul.mubr.bf16.gmra.mxu0 %v1374
  %v1454 = vpop.f32.mrf.mxu0
  %v1455 = vadd.f32 0.0, %v1454
  %v1456 = vpop.f32.mrf.mxu0
  %v1457 = vpop.f32.mrf.mxu0
  %v1458 = vadd.f32 0.0, %v1457
  %v1459 = vpop.f32.mrf.mxu0
  %1460 = vmatprep.mubr.bf16.mxu0 0
  %1461 = vmatmul.mubr.bf16.gmra.mxu0 %v1377
  %v1462 = vpop.f32.mrf.mxu0
  %v1463 = vadd.f32 0.0, %v1462
  %v1464 = vpop.f32.mrf.mxu0
  %v1465 = vpop.f32.mrf.mxu0
  %v1466 = vadd.f32 0.0, %v1465
  %v1467 = vpop.f32.mrf.mxu0
  %1468 = vmatprep.mubr.bf16.mxu0 0
  %1469 = vmatmul.mubr.bf16.gmra.mxu0 %v1380
  %v1470 = vpop.f32.mrf.mxu0
  %v1471 = vadd.f32 0.0, %v1470
  %v1472 = vpop.f32.mrf.mxu0
  %v1473 = vpop.f32.mrf.mxu0
  %v1474 = vadd.f32 0.0, %v1473
  %v1475 = vpop.f32.mrf.mxu0
  %1476 = vmatprep.mubr.bf16.mxu0 0
  %1477 = vmatmul.mubr.bf16.gmra.mxu0 %v1383
  %v1478 = vpop.f32.mrf.mxu0
  %v1479 = vadd.f32 0.0, %v1478
  %v1480 = vpop.f32.mrf.mxu0
  %v1481 = vpop.f32.mrf.mxu0
  %v1482 = vadd.f32 0.0, %v1481
  %v1483 = vpop.f32.mrf.mxu0
  %1484 = vdwg.mxu0
  %v1485 = vadd.f32 %v1319, %v1423
  %v1486 = vadd.f32 %v1320, %v1426
  %v1487 = vadd.f32 %v1321, %v1431
  %v1488 = vadd.f32 %v1322, %v1434
  %v1489 = vadd.f32 %v1323, %v1439
  %v1490 = vadd.f32 %v1324, %v1442
  %v1491 = vadd.f32 %v1325, %v1447
  %v1492 = vadd.f32 %v1326, %v1450
  %v1493 = vadd.f32 %v1327, %v1455
  %v1494 = vadd.f32 %v1328, %v1458
  %v1495 = vadd.f32 %v1329, %v1463
  %v1496 = vadd.f32 %v1330, %v1466
  %v1497 = vadd.f32 %v1331, %v1471
  %v1498 = vadd.f32 %v1332, %v1474
  %v1499 = vadd.f32 %v1333, %v1479
  %v1500 = vadd.f32 %v1334, %v1482
  %v1501 = vld [vmem:[%s2] sm:$0x1]
  %v1502 = vld [vmem:[%s3] sm:$0x1]
  %vm1503 = vcmask 64512
  %v1504 = vsel %vm1503, %v1485, 0.0
  %v1505 = vsel %vm1503, %v1486, 0.0
  %v1506 = vadd.f32 %v1504, %v1505
  %v1507 = vsel %vm1503, %v1487, 0.0
  %v1508 = vadd.f32 %v1506, %v1507
  %v1509 = vsel %vm1503, %v1488, 0.0
  %v1510 = vadd.f32 %v1508, %v1509
  %v1511 = vsel %vm1503, %v1489, 0.0
  %v1512 = vadd.f32 %v1510, %v1511
  %v1513 = vsel %vm1503, %v1490, 0.0
  %v1514 = vadd.f32 %v1512, %v1513
  %v1515 = vsel %vm1503, %v1491, 0.0
  %v1516 = vadd.f32 %v1514, %v1515
  %v1517 = vsel %vm1503, %v1492, 0.0
  %v1518 = vadd.f32 %v1516, %v1517
  %v1519 = vsel %vm1503, %v1493, 0.0
  %v1520 = vadd.f32 %v1518, %v1519
  %v1521 = vsel %vm1503, %v1494, 0.0
  %v1522 = vadd.f32 %v1520, %v1521
  %v1523 = vsel %vm1503, %v1495, 0.0
  %v1524 = vadd.f32 %v1522, %v1523
  %v1525 = vsel %vm1503, %v1496, 0.0
  %v1526 = vadd.f32 %v1524, %v1525
  %v1527 = vsel %vm1503, %v1497, 0.0
  %v1528 = vadd.f32 %v1526, %v1527
  %v1529 = vsel %vm1503, %v1498, 0.0
  %v1530 = vadd.f32 %v1528, %v1529
  %v1531 = vsel %vm1503, %v1499, 0.0
  %v1532 = vadd.f32 %v1530, %v1531
  %v1533 = vsel %vm1503, %v1500, 0.0
  %v1534 = vadd.f32 %v1532, %v1533
  %v1535 = vrot.slane %v1534, 4
  %v1536 = vadd.f32 %v1534, %v1535
  %v1537 = vrot.slane %v1536, 2
  %v1538 = vadd.f32 %v1536, %v1537
  %v1539 = vrot.slane %v1538, 1
  %v1540 = vadd.f32 %v1538, %v1539
  %v1541 = vmul.f32 %v1540, 0.0078125
  %v1542 = vmul.f32 %v1485, %v1485
  %v1543 = vmul.f32 %v1486, %v1486
  %v1544 = vmul.f32 %v1487, %v1487
  %v1545 = vmul.f32 %v1488, %v1488
  %v1546 = vmul.f32 %v1489, %v1489
  %v1547 = vmul.f32 %v1490, %v1490
  %v1548 = vmul.f32 %v1491, %v1491
  %v1549 = vmul.f32 %v1492, %v1492
  %v1550 = vmul.f32 %v1493, %v1493
  %v1551 = vmul.f32 %v1494, %v1494
  %v1552 = vmul.f32 %v1495, %v1495
  %v1553 = vmul.f32 %v1496, %v1496
  %v1554 = vmul.f32 %v1497, %v1497
  %v1555 = vmul.f32 %v1498, %v1498
  %v1556 = vmul.f32 %v1499, %v1499
  %v1557 = vmul.f32 %v1500, %v1500
  %v1558 = vsel %vm1503, %v1542, 0.0
  %v1559 = vsel %vm1503, %v1543, 0.0
  %v1560 = vadd.f32 %v1558, %v1559
  %v1561 = vsel %vm1503, %v1544, 0.0
  %v1562 = vadd.f32 %v1560, %v1561
  %v1563 = vsel %vm1503, %v1545, 0.0
  %v1564 = vadd.f32 %v1562, %v1563
  %v1565 = vsel %vm1503, %v1546, 0.0
  %v1566 = vadd.f32 %v1564, %v1565
  %v1567 = vsel %vm1503, %v1547, 0.0
  %v1568 = vadd.f32 %v1566, %v1567
  %v1569 = vsel %vm1503, %v1548, 0.0
  %v1570 = vadd.f32 %v1568, %v1569
  %v1571 = vsel %vm1503, %v1549, 0.0
  %v1572 = vadd.f32 %v1570, %v1571
  %v1573 = vsel %vm1503, %v1550, 0.0
  %v1574 = vadd.f32 %v1572, %v1573
  %v1575 = vsel %vm1503, %v1551, 0.0
  %v1576 = vadd.f32 %v1574, %v1575
  %v1577 = vsel %vm1503, %v1552, 0.0
  %v1578 = vadd.f32 %v1576, %v1577
  %v1579 = vsel %vm1503, %v1553, 0.0
  %v1580 = vadd.f32 %v1578, %v1579
  %v1581 = vsel %vm1503, %v1554, 0.0
  %v1582 = vadd.f32 %v1580, %v1581
  %v1583 = vsel %vm1503, %v1555, 0.0
  %v1584 = vadd.f32 %v1582, %v1583
  %v1585 = vsel %vm1503, %v1556, 0.0
  %v1586 = vadd.f32 %v1584, %v1585
  %v1587 = vsel %vm1503, %v1557, 0.0
  %v1588 = vadd.f32 %v1586, %v1587
  %v1589 = vrot.slane %v1588, 4
  %v1590 = vadd.f32 %v1588, %v1589
  %v1591 = vrot.slane %v1590, 2
  %v1592 = vadd.f32 %v1590, %v1591
  %v1593 = vrot.slane %v1592, 1
  %v1594 = vadd.f32 %v1592, %v1593
  %v1595 = vmul.f32 %v1594, 0.0078125
  %v1596 = vmul.f32 %v1541, %v1541
  %v1597 = vsub.f32 %v1595, %v1596
  %v1598 = vsub.f32 %v1485, %v1541
  %v1599 = vsub.f32 %v1486, %v1541
  %v1600 = vsub.f32 %v1487, %v1541
  %v1601 = vsub.f32 %v1488, %v1541
  %v1602 = vsub.f32 %v1489, %v1541
  %v1603 = vsub.f32 %v1490, %v1541
  %v1604 = vsub.f32 %v1491, %v1541
  %v1605 = vsub.f32 %v1492, %v1541
  %v1606 = vsub.f32 %v1493, %v1541
  %v1607 = vsub.f32 %v1494, %v1541
  %v1608 = vsub.f32 %v1495, %v1541
  %v1609 = vsub.f32 %v1496, %v1541
  %v1610 = vsub.f32 %v1497, %v1541
  %v1611 = vsub.f32 %v1498, %v1541
  %v1612 = vsub.f32 %v1499, %v1541
  %v1613 = vsub.f32 %v1500, %v1541
  %v1614 = vadd.f32 %v1597, 1e-05
  %v1615 = vrsqrt.pop %v1614
  %v1616 = vmul.f32 %v1598, %v1615
  %v1617 = vmul.f32 %v1599, %v1615
  %v1618 = vmul.f32 %v1600, %v1615
  %v1619 = vmul.f32 %v1601, %v1615
  %v1620 = vmul.f32 %v1602, %v1615
  %v1621 = vmul.f32 %v1603, %v1615
  %v1622 = vmul.f32 %v1604, %v1615
  %v1623 = vmul.f32 %v1605, %v1615
  %v1624 = vmul.f32 %v1606, %v1615
  %v1625 = vmul.f32 %v1607, %v1615
  %v1626 = vmul.f32 %v1608, %v1615
  %v1627 = vmul.f32 %v1609, %v1615
  %v1628 = vmul.f32 %v1610, %v1615
  %v1629 = vmul.f32 %v1611, %v1615
  %v1630 = vmul.f32 %v1612, %v1615
  %v1631 = vmul.f32 %v1613, %v1615
  %v1633 = vlaneseq
  %v1634 = vshrl.u32 %v1633, 7
  %v1635 = vsub.s32 0, %v1634
  %v1636 = vrot.slane %v1501, %v1635
  %v1638 = vmul.f32 %v1616, %v1636
  %v1639 = vmul.f32 %v1617, %v1636
  %v1640 = vmul.f32 %v1618, %v1636
  %v1641 = vmul.f32 %v1619, %v1636
  %v1642 = vmul.f32 %v1620, %v1636
  %v1643 = vmul.f32 %v1621, %v1636
  %v1644 = vmul.f32 %v1622, %v1636
  %v1645 = vmul.f32 %v1623, %v1636
  %v1646 = vmul.f32 %v1624, %v1636
  %v1647 = vmul.f32 %v1625, %v1636
  %v1648 = vmul.f32 %v1626, %v1636
  %v1649 = vmul.f32 %v1627, %v1636
  %v1650 = vmul.f32 %v1628, %v1636
  %v1651 = vmul.f32 %v1629, %v1636
  %v1652 = vmul.f32 %v1630, %v1636
  %v1653 = vmul.f32 %v1631, %v1636
  %v1655 = vlaneseq
  %v1656 = vshrl.u32 %v1655, 7
  %v1657 = vsub.s32 0, %v1656
  %v1658 = vrot.slane %v1502, %v1657
  %v1660 = vadd.f32 %v1638, %v1658
  %v1661 = vadd.f32 %v1639, %v1658
  %v1662 = vadd.f32 %v1640, %v1658
  %v1663 = vadd.f32 %v1641, %v1658
  %v1664 = vadd.f32 %v1642, %v1658
  %v1665 = vadd.f32 %v1643, %v1658
  %v1666 = vadd.f32 %v1644, %v1658
  %v1667 = vadd.f32 %v1645, %v1658
  %v1668 = vadd.f32 %v1646, %v1658
  %v1669 = vadd.f32 %v1647, %v1658
  %v1670 = vadd.f32 %v1648, %v1658
  %v1671 = vadd.f32 %v1649, %v1658
  %v1672 = vadd.f32 %v1650, %v1658
  %v1673 = vadd.f32 %v1651, %v1658
  %v1674 = vadd.f32 %v1652, %v1658
  %v1675 = vadd.f32 %v1653, %v1658
  %v1676 = vmax.f32 %v1660, 0.0
  %v1677 = vmax.f32 %v1661, 0.0
  %v1678 = vmax.f32 %v1662, 0.0
  %v1679 = vmax.f32 %v1663, 0.0
  %v1680 = vmax.f32 %v1664, 0.0
  %v1681 = vmax.f32 %v1665, 0.0
  %v1682 = vmax.f32 %v1666, 0.0
  %v1683 = vmax.f32 %v1667, 0.0
  %v1684 = vmax.f32 %v1668, 0.0
  %v1685 = vmax.f32 %v1669, 0.0
  %v1686 = vmax.f32 %v1670, 0.0
  %v1687 = vmax.f32 %v1671, 0.0
  %v1688 = vmax.f32 %v1672, 0.0
  %v1689 = vmax.f32 %v1673, 0.0
  %v1690 = vmax.f32 %v1674, 0.0
  %v1691 = vmax.f32 %v1675, 0.0
  %v1692 = vld [vmem:[%s7] sm:$0x1]
  %v1693 = vld [vmem:[%s8] sm:$0x1]
  %vm1694 = vcmask 130112
  %v1695 = vsel %vm1694, %v1485, 0.0
  %v1696 = vsel %vm1694, %v1486, 0.0
  %v1697 = vadd.f32 %v1695, %v1696
  %v1698 = vsel %vm1694, %v1487, 0.0
  %v1699 = vadd.f32 %v1697, %v1698
  %v1700 = vsel %vm1694, %v1488, 0.0
  %v1701 = vadd.f32 %v1699, %v1700
  %v1702 = vsel %vm1694, %v1489, 0.0
  %v1703 = vadd.f32 %v1701, %v1702
  %v1704 = vsel %vm1694, %v1490, 0.0
  %v1705 = vadd.f32 %v1703, %v1704
  %v1706 = vsel %vm1694, %v1491, 0.0
  %v1707 = vadd.f32 %v1705, %v1706
  %v1708 = vsel %vm1694, %v1492, 0.0
  %v1709 = vadd.f32 %v1707, %v1708
  %v1710 = vsel %vm1694, %v1493, 0.0
  %v1711 = vadd.f32 %v1709, %v1710
  %v1712 = vsel %vm1694, %v1494, 0.0
  %v1713 = vadd.f32 %v1711, %v1712
  %v1714 = vsel %vm1694, %v1495, 0.0
  %v1715 = vadd.f32 %v1713, %v1714
  %v1716 = vsel %vm1694, %v1496, 0.0
  %v1717 = vadd.f32 %v1715, %v1716
  %v1718 = vsel %vm1694, %v1497, 0.0
  %v1719 = vadd.f32 %v1717, %v1718
  %v1720 = vsel %vm1694, %v1498, 0.0
  %v1721 = vadd.f32 %v1719, %v1720
  %v1722 = vsel %vm1694, %v1499, 0.0
  %v1723 = vadd.f32 %v1721, %v1722
  %v1724 = vsel %vm1694, %v1500, 0.0
  %v1725 = vadd.f32 %v1723, %v1724
  %v1726 = vrot.slane %v1725, 4
  %v1727 = vadd.f32 %v1725, %v1726
  %v1728 = vrot.slane %v1727, 2
  %v1729 = vadd.f32 %v1727, %v1728
  %v1730 = vrot.slane %v1729, 1
  %v1731 = vadd.f32 %v1729, %v1730
  %v1732 = vmul.f32 %v1731, 0.0078125
  %v1733 = vsel %vm1694, %v1542, 0.0
  %v1734 = vsel %vm1694, %v1543, 0.0
  %v1735 = vadd.f32 %v1733, %v1734
  %v1736 = vsel %vm1694, %v1544, 0.0
  %v1737 = vadd.f32 %v1735, %v1736
  %v1738 = vsel %vm1694, %v1545, 0.0
  %v1739 = vadd.f32 %v1737, %v1738
  %v1740 = vsel %vm1694, %v1546, 0.0
  %v1741 = vadd.f32 %v1739, %v1740
  %v1742 = vsel %vm1694, %v1547, 0.0
  %v1743 = vadd.f32 %v1741, %v1742
  %v1744 = vsel %vm1694, %v1548, 0.0
  %v1745 = vadd.f32 %v1743, %v1744
  %v1746 = vsel %vm1694, %v1549, 0.0
  %v1747 = vadd.f32 %v1745, %v1746
  %v1748 = vsel %vm1694, %v1550, 0.0
  %v1749 = vadd.f32 %v1747, %v1748
  %v1750 = vsel %vm1694, %v1551, 0.0
  %v1751 = vadd.f32 %v1749, %v1750
  %v1752 = vsel %vm1694, %v1552, 0.0
  %v1753 = vadd.f32 %v1751, %v1752
  %v1754 = vsel %vm1694, %v1553, 0.0
  %v1755 = vadd.f32 %v1753, %v1754
  %v1756 = vsel %vm1694, %v1554, 0.0
  %v1757 = vadd.f32 %v1755, %v1756
  %v1758 = vsel %vm1694, %v1555, 0.0
  %v1759 = vadd.f32 %v1757, %v1758
  %v1760 = vsel %vm1694, %v1556, 0.0
  %v1761 = vadd.f32 %v1759, %v1760
  %v1762 = vsel %vm1694, %v1557, 0.0
  %v1763 = vadd.f32 %v1761, %v1762
  %v1764 = vrot.slane %v1763, 4
  %v1765 = vadd.f32 %v1763, %v1764
  %v1766 = vrot.slane %v1765, 2
  %v1767 = vadd.f32 %v1765, %v1766
  %v1768 = vrot.slane %v1767, 1
  %v1769 = vadd.f32 %v1767, %v1768
  %v1770 = vmul.f32 %v1769, 0.0078125
  %v1771 = vmul.f32 %v1732, %v1732
  %v1772 = vsub.f32 %v1770, %v1771
  %v1773 = vsub.f32 %v1485, %v1732
  %v1774 = vsub.f32 %v1486, %v1732
  %v1775 = vsub.f32 %v1487, %v1732
  %v1776 = vsub.f32 %v1488, %v1732
  %v1777 = vsub.f32 %v1489, %v1732
  %v1778 = vsub.f32 %v1490, %v1732
  %v1779 = vsub.f32 %v1491, %v1732
  %v1780 = vsub.f32 %v1492, %v1732
  %v1781 = vsub.f32 %v1493, %v1732
  %v1782 = vsub.f32 %v1494, %v1732
  %v1783 = vsub.f32 %v1495, %v1732
  %v1784 = vsub.f32 %v1496, %v1732
  %v1785 = vsub.f32 %v1497, %v1732
  %v1786 = vsub.f32 %v1498, %v1732
  %v1787 = vsub.f32 %v1499, %v1732
  %v1788 = vsub.f32 %v1500, %v1732
  %v1789 = vadd.f32 %v1772, 1e-05
  %v1790 = vrsqrt.pop %v1789
  %v1791 = vmul.f32 %v1773, %v1790
  %v1792 = vmul.f32 %v1774, %v1790
  %v1793 = vmul.f32 %v1775, %v1790
  %v1794 = vmul.f32 %v1776, %v1790
  %v1795 = vmul.f32 %v1777, %v1790
  %v1796 = vmul.f32 %v1778, %v1790
  %v1797 = vmul.f32 %v1779, %v1790
  %v1798 = vmul.f32 %v1780, %v1790
  %v1799 = vmul.f32 %v1781, %v1790
  %v1800 = vmul.f32 %v1782, %v1790
  %v1801 = vmul.f32 %v1783, %v1790
  %v1802 = vmul.f32 %v1784, %v1790
  %v1803 = vmul.f32 %v1785, %v1790
  %v1804 = vmul.f32 %v1786, %v1790
  %v1805 = vmul.f32 %v1787, %v1790
  %v1806 = vmul.f32 %v1788, %v1790
  %v1808 = vlaneseq
  %v1809 = vshrl.u32 %v1808, 7
  %v1810 = vsub.s32 0, %v1809
  %v1811 = vrot.slane %v1692, %v1810
  %1812 = vrot.lane.b32.xlu0 %v1811, 8
  %v1813 = vpop.permute.xlu0 %1812
  %v1815 = vmul.f32 %v1791, %v1813
  %v1816 = vmul.f32 %v1792, %v1813
  %v1817 = vmul.f32 %v1793, %v1813
  %v1818 = vmul.f32 %v1794, %v1813
  %v1819 = vmul.f32 %v1795, %v1813
  %v1820 = vmul.f32 %v1796, %v1813
  %v1821 = vmul.f32 %v1797, %v1813
  %v1822 = vmul.f32 %v1798, %v1813
  %v1823 = vmul.f32 %v1799, %v1813
  %v1824 = vmul.f32 %v1800, %v1813
  %v1825 = vmul.f32 %v1801, %v1813
  %v1826 = vmul.f32 %v1802, %v1813
  %v1827 = vmul.f32 %v1803, %v1813
  %v1828 = vmul.f32 %v1804, %v1813
  %v1829 = vmul.f32 %v1805, %v1813
  %v1830 = vmul.f32 %v1806, %v1813
  %v1832 = vlaneseq
  %v1833 = vshrl.u32 %v1832, 7
  %v1834 = vsub.s32 0, %v1833
  %v1835 = vrot.slane %v1693, %v1834
  %1836 = vrot.lane.b32.xlu0 %v1835, 8
  %v1837 = vpop.permute.xlu0 %1836
  %v1839 = vadd.f32 %v1815, %v1837
  %v1840 = vadd.f32 %v1816, %v1837
  %v1841 = vadd.f32 %v1817, %v1837
  %v1842 = vadd.f32 %v1818, %v1837
  %v1843 = vadd.f32 %v1819, %v1837
  %v1844 = vadd.f32 %v1820, %v1837
  %v1845 = vadd.f32 %v1821, %v1837
  %v1846 = vadd.f32 %v1822, %v1837
  %v1847 = vadd.f32 %v1823, %v1837
  %v1848 = vadd.f32 %v1824, %v1837
  %v1849 = vadd.f32 %v1825, %v1837
  %v1850 = vadd.f32 %v1826, %v1837
  %v1851 = vadd.f32 %v1827, %v1837
  %v1852 = vadd.f32 %v1828, %v1837
  %v1853 = vadd.f32 %v1829, %v1837
  %v1854 = vadd.f32 %v1830, %v1837
  %1855 = vst.msk [vmem:[#allocation2] sm:$0xff] %vm1503, 0.0
  %vm1856 = vcmask 58368
  %1857 = vst.msk [vmem:[#allocation2 + $0x8] sm:$0x3] %vm1856, 0.0
  %1858 = vst.msk [vmem:[#allocation2 + $0xa0] sm:$0xff] %vm1503, 0.0
  %1859 = vst.msk [vmem:[#allocation2 + $0xa8] sm:$0x3] %vm1856, 0.0
  %s1860 = scalar_lea.vmem [#allocation2], 144
  %1861 = vst.msk [vmem:[%s1860] sm:$0xff] %vm1503, 0.0
  %1862 = vst.msk [vmem:[%s1860 + $0x8] sm:$0x3] %vm1856, 0.0
  %1863 = vst.msk [vmem:[%s1860 + $0xa0] sm:$0xff] %vm1503, 0.0
  %1864 = vst.msk [vmem:[%s1860 + $0xa8] sm:$0x3] %vm1856, 0.0
  %vm1865 = vcmask 57344
  %1866 = vst.msk [vmem:[#allocation2] sm:$0x1] %vm1865, 0.0
  %1867 = vst.msk [vmem:[#allocation2 + $0x10] sm:$0x1] %vm1865, 0.0
  %1868 = vst.msk [vmem:[#allocation2 + $0x20] sm:$0x1] %vm1865, 0.0
  %1869 = vst.msk [vmem:[#allocation2 + $0x30] sm:$0x1] %vm1865, 0.0
  %1870 = vst.msk [vmem:[#allocation2 + $0x40] sm:$0x1] %vm1865, 0.0
  %1871 = vst.msk [vmem:[#allocation2 + $0x50] sm:$0x1] %vm1865, 0.0
  %1872 = vst.msk [vmem:[#allocation2 + $0x60] sm:$0x1] %vm1865, 0.0
  %1873 = vst.msk [vmem:[#allocation2 + $0x70] sm:$0x1] %vm1865, 0.0
  %1874 = vst.msk [vmem:[#allocation2 + $0x80] sm:$0x1] %vm1865, 0.0
  %1875 = vst.msk [vmem:[#allocation2 + $0x90] sm:$0x1] %vm1865, 0.0
  %1876 = vst.msk [vmem:[#allocation2 + $0xa0] sm:$0x1] %vm1865, 0.0
  %1877 = vst.msk [vmem:[#allocation2 + $0xb0] sm:$0x1] %vm1865, 0.0
  %1878 = vst.msk [vmem:[#allocation2 + $0xc0] sm:$0x1] %vm1865, 0.0
  %1879 = vst.msk [vmem:[#allocation2 + $0xd0] sm:$0x1] %vm1865, 0.0
  %1880 = vst.msk [vmem:[#allocation2 + $0xe0] sm:$0x1] %vm1865, 0.0
  %1881 = vst.msk [vmem:[#allocation2 + $0xf0] sm:$0x1] %vm1865, 0.0
  %1882 = vst.msk [vmem:[#allocation2 + $0x100] sm:$0x1] %vm1865, 0.0
  %1883 = vst.msk [vmem:[#allocation2 + $0x110] sm:$0x1] %vm1865, 0.0
  %1884 = vst.msk [vmem:[#allocation2 + $0x120] sm:$0x1] %vm1865, 0.0
  %1885 = vst.msk [vmem:[#allocation2 + $0x130] sm:$0x1] %vm1865, 0.0
  %1886 = vst.msk [vmem:[#allocation2 + $0x9] sm:$0x1] %vm1865, 0.0
  %1887 = vst.msk [vmem:[#allocation2 + $0x19] sm:$0x1] %vm1865, 0.0
  %1888 = vst.msk [vmem:[#allocation2 + $0x29] sm:$0x1] %vm1865, 0.0
  %1889 = vst.msk [vmem:[#allocation2 + $0x39] sm:$0x1] %vm1865, 0.0
  %1890 = vst.msk [vmem:[#allocation2 + $0x49] sm:$0x1] %vm1865, 0.0
  %1891 = vst.msk [vmem:[#allocation2 + $0x59] sm:$0x1] %vm1865, 0.0
  %1892 = vst.msk [vmem:[#allocation2 + $0x69] sm:$0x1] %vm1865, 0.0
  %1893 = vst.msk [vmem:[#allocation2 + $0x79] sm:$0x1] %vm1865, 0.0
  %1894 = vst.msk [vmem:[#allocation2 + $0x89] sm:$0x1] %vm1865, 0.0
  %1895 = vst.msk [vmem:[#allocation2 + $0x99] sm:$0x1] %vm1865, 0.0
  %1896 = vst.msk [vmem:[#allocation2 + $0xa9] sm:$0x1] %vm1865, 0.0
  %1897 = vst.msk [vmem:[#allocation2 + $0xb9] sm:$0x1] %vm1865, 0.0
  %1898 = vst.msk [vmem:[#allocation2 + $0xc9] sm:$0x1] %vm1865, 0.0
  %1899 = vst.msk [vmem:[#allocation2 + $0xd9] sm:$0x1] %vm1865, 0.0
  %1900 = vst.msk [vmem:[#allocation2 + $0xe9] sm:$0x1] %vm1865, 0.0
  %1901 = vst.msk [vmem:[#allocation2 + $0xf9] sm:$0x1] %vm1865, 0.0
  %1902 = vst.msk [vmem:[#allocation2 + $0x109] sm:$0x1] %vm1865, 0.0
  %1903 = vst.msk [vmem:[#allocation2 + $0x119] sm:$0x1] %vm1865, 0.0
  %1904 = vst.msk [vmem:[#allocation2 + $0x129] sm:$0x1] %vm1865, 0.0
  %1905 = vst.msk [vmem:[#allocation2 + $0x139] sm:$0x1] %vm1865, 0.0
  %s1906 = scalar_lea.vmem [#allocation2], 16
  %1907 = vst.msk [vmem:[%s1906 + $0x1] sm:$0xff] %vm1503, %v1676
  %1908 = vst.msk [vmem:[%s1906 + $0x11] sm:$0xff] %vm1503, %v1677
  %1909 = vst.msk [vmem:[%s1906 + $0x21] sm:$0xff] %vm1503, %v1678
  %1910 = vst.msk [vmem:[%s1906 + $0x31] sm:$0xff] %vm1503, %v1679
  %1911 = vst.msk [vmem:[%s1906 + $0x41] sm:$0xff] %vm1503, %v1680
  %1912 = vst.msk [vmem:[%s1906 + $0x51] sm:$0xff] %vm1503, %v1681
  %1913 = vst.msk [vmem:[%s1906 + $0x61] sm:$0xff] %vm1503, %v1682
  %1914 = vst.msk [vmem:[%s1906 + $0x71] sm:$0xff] %vm1503, %v1683
  %1915 = vst.msk [vmem:[%s1906 + $0xa1] sm:$0xff] %vm1503, %v1684
  %1916 = vst.msk [vmem:[%s1906 + $0xb1] sm:$0xff] %vm1503, %v1685
  %1917 = vst.msk [vmem:[%s1906 + $0xc1] sm:$0xff] %vm1503, %v1686
  %1918 = vst.msk [vmem:[%s1906 + $0xd1] sm:$0xff] %vm1503, %v1687
  %1919 = vst.msk [vmem:[%s1906 + $0xe1] sm:$0xff] %vm1503, %v1688
  %1920 = vst.msk [vmem:[%s1906 + $0xf1] sm:$0xff] %vm1503, %v1689
  %1921 = vst.msk [vmem:[%s1906 + $0x101] sm:$0xff] %vm1503, %v1690
  %1922 = vst.msk [vmem:[%s1906 + $0x111] sm:$0xff] %vm1503, %v1691
  %v1923 = vld [vmem:[#allocation2] sm:$0xff]
  %v1924 = vld [vmem:[#allocation2 + $0x10] sm:$0xff]
  %v1925 = vld [vmem:[#allocation2 + $0x20] sm:$0xff]
  %v1926 = vld [vmem:[#allocation2 + $0x30] sm:$0xff]
  %v1927 = vld [vmem:[#allocation2 + $0x40] sm:$0xff]
  %v1928 = vld [vmem:[#allocation2 + $0x50] sm:$0xff]
  %v1929 = vld [vmem:[#allocation2 + $0x60] sm:$0xff]
  %v1930 = vld [vmem:[#allocation2 + $0x70] sm:$0xff]
  %v1931 = vld [vmem:[#allocation2 + $0xa0] sm:$0xff]
  %v1932 = vld [vmem:[#allocation2 + $0xb0] sm:$0xff]
  %v1933 = vld [vmem:[#allocation2 + $0xc0] sm:$0xff]
  %v1934 = vld [vmem:[#allocation2 + $0xd0] sm:$0xff]
  %v1935 = vld [vmem:[#allocation2 + $0xe0] sm:$0xff]
  %v1936 = vld [vmem:[#allocation2 + $0xf0] sm:$0xff]
  %v1937 = vld [vmem:[#allocation2 + $0x100] sm:$0xff]
  %v1938 = vld [vmem:[#allocation2 + $0x110] sm:$0xff]
  %v1939 = vpack.c.bf16 %v1924, %v1923
  %v1940 = vpack.c.bf16 %v1926, %v1925
  %v1941 = vpack.c.bf16 %v1928, %v1927
  %v1942 = vpack.c.bf16 %v1930, %v1929
  %v1943 = vpack.c.bf16 %v1932, %v1931
  %v1944 = vpack.c.bf16 %v1934, %v1933
  %v1945 = vpack.c.bf16 %v1936, %v1935
  %v1946 = vpack.c.bf16 %v1938, %v1937
  %v1947 = vld [vmem:[%s4] sm:$0xf]
  %v1948 = vld [vmem:[#allocation2 + $0x1] sm:$0xff]
  %v1949 = vld [vmem:[#allocation2 + $0x11] sm:$0xff]
  %v1950 = vld [vmem:[#allocation2 + $0x21] sm:$0xff]
  %v1951 = vld [vmem:[#allocation2 + $0x31] sm:$0xff]
  %v1952 = vld [vmem:[#allocation2 + $0x41] sm:$0xff]
  %v1953 = vld [vmem:[#allocation2 + $0x51] sm:$0xff]
  %v1954 = vld [vmem:[#allocation2 + $0x61] sm:$0xff]
  %v1955 = vld [vmem:[#allocation2 + $0x71] sm:$0xff]
  %v1956 = vld [vmem:[#allocation2 + $0xa1] sm:$0xff]
  %v1957 = vld [vmem:[#allocation2 + $0xb1] sm:$0xff]
  %v1958 = vld [vmem:[#allocation2 + $0xc1] sm:$0xff]
  %v1959 = vld [vmem:[#allocation2 + $0xd1] sm:$0xff]
  %v1960 = vld [vmem:[#allocation2 + $0xe1] sm:$0xff]
  %v1961 = vld [vmem:[#allocation2 + $0xf1] sm:$0xff]
  %v1962 = vld [vmem:[#allocation2 + $0x101] sm:$0xff]
  %v1963 = vld [vmem:[#allocation2 + $0x111] sm:$0xff]
  %v1964 = vpack.c.bf16 %v1949, %v1948
  %v1965 = vpack.c.bf16 %v1951, %v1950
  %v1966 = vpack.c.bf16 %v1953, %v1952
  %v1967 = vpack.c.bf16 %v1955, %v1954
  %v1968 = vpack.c.bf16 %v1957, %v1956
  %v1969 = vpack.c.bf16 %v1959, %v1958
  %v1970 = vpack.c.bf16 %v1961, %v1960
  %v1971 = vpack.c.bf16 %v1963, %v1962
  %s1972 = scalar_lea.vmem %s4, 4
  %v1973 = vld [vmem:[%s1972] sm:$0xf]
  %v1975 = vsel %vm1503, %v1964, 0
  %v1978 = vsel %vm1503, %v1965, 0
  %v1981 = vsel %vm1503, %v1966, 0
  %v1984 = vsel %vm1503, %v1967, 0
  %v1987 = vsel %vm1503, %v1968, 0
  %v1990 = vsel %vm1503, %v1969, 0
  %v1993 = vsel %vm1503, %v1970, 0
  %v1996 = vsel %vm1503, %v1971, 0
  %vm1998 = vcmask 1043456
  %v2000 = vsel %vm1998, %v1973, 0
  %2002 = vmatprep.subr.bf16.mxu0 0
  %2003 = vmatpush1.bf16.msra.mxu0 0
  %2004 = vmatprep.subr.bf16.mxu0 0
  %2005 = vmatpush1.bf16.msra.mxu0 0
  %2006 = vmatprep.subr.bf16.mxu0 0
  %2007 = vmatpush1.bf16.msra.mxu0 0
  %2008 = vmatprep.subr.bf16.mxu0 0
  %2009 = vmatpush1.bf16.msra.mxu0 0
  %2010 = vmatprep.subr.bf16.mxu0 0
  %2011 = vmatpush1.bf16.msra.mxu0 0
  %2012 = vmatprep.subr.bf16.mxu0 0
  %2013 = vmatpush1.bf16.msra.mxu0 0
  %2014 = vmatprep.subr.bf16.mxu0 0
  %2015 = vmatpush1.bf16.msra.mxu0 0
  %2016 = vmatprep.subr.bf16.mxu0 0
  %2017 = vmatpush1.bf16.msra.mxu0 %v2000
  %2018 = vmatprep.subr.bf16.mxu0 0
  %2019 = vmatpush2.bf16.msra.mxu0 0
  %2020 = vmatprep.subr.bf16.mxu0 0
  %2021 = vmatpush2.bf16.msra.mxu0 0
  %2022 = vmatprep.subr.bf16.mxu0 0
  %2023 = vmatpush2.bf16.msra.mxu0 0
  %2024 = vmatprep.subr.bf16.mxu0 0
  %2025 = vmatpush2.bf16.msra.mxu0 0
  %2026 = vmatprep.subr.bf16.mxu0 0
  %2027 = vmatpush2.bf16.msra.mxu0 0
  %2028 = vmatprep.subr.bf16.mxu0 0
  %2029 = vmatpush2.bf16.msra.mxu0 0
  %2030 = vmatprep.subr.bf16.mxu0 0
  %2031 = vmatpush2.bf16.msra.mxu0 0
  %2032 = vmatprep.subr.bf16.mxu0 0
  %2033 = vmatpush2.bf16.msra.mxu0 0
  %2034 = vmatprep.mubr.bf16.mxu0 0
  %2035 = vmatmul.mubr.bf16.gmra.mxu0 %v1975
  %v2036 = vpop.f32.mrf.mxu0
  %v2037 = vadd.f32 0.0, %v2036
  %v2038 = vpop.f32.mrf.mxu0
  %v2039 = vpop.f32.mrf.mxu0
  %v2040 = vadd.f32 0.0, %v2039
  %v2041 = vpop.f32.mrf.mxu0
  %2042 = vmatprep.mubr.bf16.mxu0 0
  %2043 = vmatmul.mubr.bf16.gmra.mxu0 %v1978
  %v2044 = vpop.f32.mrf.mxu0
  %v2045 = vadd.f32 0.0, %v2044
  %v2046 = vpop.f32.mrf.mxu0
  %v2047 = vpop.f32.mrf.mxu0
  %v2048 = vadd.f32 0.0, %v2047
  %v2049 = vpop.f32.mrf.mxu0
  %2050 = vmatprep.mubr.bf16.mxu0 0
  %2051 = vmatmul.mubr.bf16.gmra.mxu0 %v1981
  %v2052 = vpop.f32.mrf.mxu0
  %v2053 = vadd.f32 0.0, %v2052
  %v2054 = vpop.f32.mrf.mxu0
  %v2055 = vpop.f32.mrf.mxu0
  %v2056 = vadd.f32 0.0, %v2055
  %v2057 = vpop.f32.mrf.mxu0
  %2058 = vmatprep.mubr.bf16.mxu0 0
  %2059 = vmatmul.mubr.bf16.gmra.mxu0 %v1984
  %v2060 = vpop.f32.mrf.mxu0
  %v2061 = vadd.f32 0.0, %v2060
  %v2062 = vpop.f32.mrf.mxu0
  %v2063 = vpop.f32.mrf.mxu0
  %v2064 = vadd.f32 0.0, %v2063
  %v2065 = vpop.f32.mrf.mxu0
  %2066 = vmatprep.mubr.bf16.mxu0 0
  %2067 = vmatmul.mubr.bf16.gmra.mxu0 %v1987
  %v2068 = vpop.f32.mrf.mxu0
  %v2069 = vadd.f32 0.0, %v2068
  %v2070 = vpop.f32.mrf.mxu0
  %v2071 = vpop.f32.mrf.mxu0
  %v2072 = vadd.f32 0.0, %v2071
  %v2073 = vpop.f32.mrf.mxu0
  %2074 = vmatprep.mubr.bf16.mxu0 0
  %2075 = vmatmul.mubr.bf16.gmra.mxu0 %v1990
  %v2076 = vpop.f32.mrf.mxu0
  %v2077 = vadd.f32 0.0, %v2076
  %v2078 = vpop.f32.mrf.mxu0
  %v2079 = vpop.f32.mrf.mxu0
  %v2080 = vadd.f32 0.0, %v2079
  %v2081 = vpop.f32.mrf.mxu0
  %2082 = vmatprep.mubr.bf16.mxu0 0
  %2083 = vmatmul.mubr.bf16.gmra.mxu0 %v1993
  %v2084 = vpop.f32.mrf.mxu0
  %v2085 = vadd.f32 0.0, %v2084
  %v2086 = vpop.f32.mrf.mxu0
  %v2087 = vpop.f32.mrf.mxu0
  %v2088 = vadd.f32 0.0, %v2087
  %v2089 = vpop.f32.mrf.mxu0
  %2090 = vmatprep.mubr.bf16.mxu0 0
  %2091 = vmatmul.mubr.bf16.gmra.mxu0 %v1996
  %v2092 = vpop.f32.mrf.mxu0
  %v2093 = vadd.f32 0.0, %v2092
  %v2094 = vpop.f32.mrf.mxu0
  %v2095 = vpop.f32.mrf.mxu0
  %v2096 = vadd.f32 0.0, %v2095
  %v2097 = vpop.f32.mrf.mxu0
  %2098 = vdwg.mxu0
  %v2100 = vsel %vm1503, %v1939, 0
  %v2103 = vsel %vm1503, %v1940, 0
  %v2106 = vsel %vm1503, %v1941, 0
  %v2109 = vsel %vm1503, %v1942, 0
  %v2112 = vsel %vm1503, %v1943, 0
  %v2115 = vsel %vm1503, %v1944, 0
  %v2118 = vsel %vm1503, %v1945, 0
  %v2121 = vsel %vm1503, %v1946, 0
  %v2124 = vsel %vm1998, %v1947, 0
  %2126 = vmatprep.subr.bf16.mxu0 0
  %2127 = vmatpush1.bf16.msra.mxu0 0
  %2128 = vmatprep.subr.bf16.mxu0 0
  %2129 = vmatpush1.bf16.msra.mxu0 0
  %2130 = vmatprep.subr.bf16.mxu0 0
  %2131 = vmatpush1.bf16.msra.mxu0 0
  %2132 = vmatprep.subr.bf16.mxu0 0
  %2133 = vmatpush1.bf16.msra.mxu0 0
  %2134 = vmatprep.subr.bf16.mxu0 0
  %2135 = vmatpush1.bf16.msra.mxu0 0
  %2136 = vmatprep.subr.bf16.mxu0 0
  %2137 = vmatpush1.bf16.msra.mxu0 0
  %2138 = vmatprep.subr.bf16.mxu0 0
  %2139 = vmatpush1.bf16.msra.mxu0 0
  %2140 = vmatprep.subr.bf16.mxu0 0
  %2141 = vmatpush1.bf16.msra.mxu0 %v2124
  %2142 = vmatprep.subr.bf16.mxu0 0
  %2143 = vmatpush2.bf16.msra.mxu0 0
  %2144 = vmatprep.subr.bf16.mxu0 0
  %2145 = vmatpush2.bf16.msra.mxu0 0
  %2146 = vmatprep.subr.bf16.mxu0 0
  %2147 = vmatpush2.bf16.msra.mxu0 0
  %2148 = vmatprep.subr.bf16.mxu0 0
  %2149 = vmatpush2.bf16.msra.mxu0 0
  %2150 = vmatprep.subr.bf16.mxu0 0
  %2151 = vmatpush2.bf16.msra.mxu0 0
  %2152 = vmatprep.subr.bf16.mxu0 0
  %2153 = vmatpush2.bf16.msra.mxu0 0
  %2154 = vmatprep.subr.bf16.mxu0 0
  %2155 = vmatpush2.bf16.msra.mxu0 0
  %2156 = vmatprep.subr.bf16.mxu0 0
  %2157 = vmatpush2.bf16.msra.mxu0 0
  %2158 = vmatprep.mubr.bf16.mxu0 0
  %2159 = vmatmul.mubr.bf16.gmra.mxu0 %v2100
  %v2160 = vpop.f32.mrf.mxu0
  %v2161 = vadd.f32 %v2037, %v2160
  %v2162 = vpop.f32.mrf.mxu0
  %v2163 = vpop.f32.mrf.mxu0
  %v2164 = vadd.f32 %v2040, %v2163
  %v2165 = vpop.f32.mrf.mxu0
  %2166 = vmatprep.mubr.bf16.mxu0 0
  %2167 = vmatmul.mubr.bf16.gmra.mxu0 %v2103
  %v2168 = vpop.f32.mrf.mxu0
  %v2169 = vadd.f32 %v2045, %v2168
  %v2170 = vpop.f32.mrf.mxu0
  %v2171 = vpop.f32.mrf.mxu0
  %v2172 = vadd.f32 %v2048, %v2171
  %v2173 = vpop.f32.mrf.mxu0
  %2174 = vmatprep.mubr.bf16.mxu0 0
  %2175 = vmatmul.mubr.bf16.gmra.mxu0 %v2106
  %v2176 = vpop.f32.mrf.mxu0
  %v2177 = vadd.f32 %v2053, %v2176
  %v2178 = vpop.f32.mrf.mxu0
  %v2179 = vpop.f32.mrf.mxu0
  %v2180 = vadd.f32 %v2056, %v2179
  %v2181 = vpop.f32.mrf.mxu0
  %2182 = vmatprep.mubr.bf16.mxu0 0
  %2183 = vmatmul.mubr.bf16.gmra.mxu0 %v2109
  %v2184 = vpop.f32.mrf.mxu0
  %v2185 = vadd.f32 %v2061, %v2184
  %v2186 = vpop.f32.mrf.mxu0
  %v2187 = vpop.f32.mrf.mxu0
  %v2188 = vadd.f32 %v2064, %v2187
  %v2189 = vpop.f32.mrf.mxu0
  %2190 = vmatprep.mubr.bf16.mxu0 0
  %2191 = vmatmul.mubr.bf16.gmra.mxu0 %v2112
  %v2192 = vpop.f32.mrf.mxu0
  %v2193 = vadd.f32 %v2069, %v2192
  %v2194 = vpop.f32.mrf.mxu0
  %v2195 = vpop.f32.mrf.mxu0
  %v2196 = vadd.f32 %v2072, %v2195
  %v2197 = vpop.f32.mrf.mxu0
  %2198 = vmatprep.mubr.bf16.mxu0 0
  %2199 = vmatmul.mubr.bf16.gmra.mxu0 %v2115
  %v2200 = vpop.f32.mrf.mxu0
  %v2201 = vadd.f32 %v2077, %v2200
  %v2202 = vpop.f32.mrf.mxu0
  %v2203 = vpop.f32.mrf.mxu0
  %v2204 = vadd.f32 %v2080, %v2203
  %v2205 = vpop.f32.mrf.mxu0
  %2206 = vmatprep.mubr.bf16.mxu0 0
  %2207 = vmatmul.mubr.bf16.gmra.mxu0 %v2118
  %v2208 = vpop.f32.mrf.mxu0
  %v2209 = vadd.f32 %v2085, %v2208
  %v2210 = vpop.f32.mrf.mxu0
  %v2211 = vpop.f32.mrf.mxu0
  %v2212 = vadd.f32 %v2088, %v2211
  %v2213 = vpop.f32.mrf.mxu0
  %2214 = vmatprep.mubr.bf16.mxu0 0
  %2215 = vmatmul.mubr.bf16.gmra.mxu0 %v2121
  %v2216 = vpop.f32.mrf.mxu0
  %v2217 = vadd.f32 %v2093, %v2216
  %v2218 = vpop.f32.mrf.mxu0
  %v2219 = vpop.f32.mrf.mxu0
  %v2220 = vadd.f32 %v2096, %v2219
  %v2221 = vpop.f32.mrf.mxu0
  %2222 = vdwg.mxu0
  %v2223 = vld [vmem:[#allocation2 + $0x2] sm:$0xff]
  %v2224 = vld [vmem:[#allocation2 + $0x12] sm:$0xff]
  %v2225 = vld [vmem:[#allocation2 + $0x22] sm:$0xff]
  %v2226 = vld [vmem:[#allocation2 + $0x32] sm:$0xff]
  %v2227 = vld [vmem:[#allocation2 + $0x42] sm:$0xff]
  %v2228 = vld [vmem:[#allocation2 + $0x52] sm:$0xff]
  %v2229 = vld [vmem:[#allocation2 + $0x62] sm:$0xff]
  %v2230 = vld [vmem:[#allocation2 + $0x72] sm:$0xff]
  %v2231 = vld [vmem:[#allocation2 + $0xa2] sm:$0xff]
  %v2232 = vld [vmem:[#allocation2 + $0xb2] sm:$0xff]
  %v2233 = vld [vmem:[#allocation2 + $0xc2] sm:$0xff]
  %v2234 = vld [vmem:[#allocation2 + $0xd2] sm:$0xff]
  %v2235 = vld [vmem:[#allocation2 + $0xe2] sm:$0xff]
  %v2236 = vld [vmem:[#allocation2 + $0xf2] sm:$0xff]
  %v2237 = vld [vmem:[#allocation2 + $0x102] sm:$0xff]
  %v2238 = vld [vmem:[#allocation2 + $0x112] sm:$0xff]
  %v2239 = vpack.c.bf16 %v2224, %v2223
  %v2240 = vpack.c.bf16 %v2226, %v2225
  %v2241 = vpack.c.bf16 %v2228, %v2227
  %v2242 = vpack.c.bf16 %v2230, %v2229
  %v2243 = vpack.c.bf16 %v2232, %v2231
  %v2244 = vpack.c.bf16 %v2234, %v2233
  %v2245 = vpack.c.bf16 %v2236, %v2235
  %v2246 = vpack.c.bf16 %v2238, %v2237
  %s2247 = scalar_lea.vmem %s4, 8
  %v2248 = vld [vmem:[%s2247] sm:$0xf]
  %v2250 = vsel %vm1503, %v2239, 0
  %v2253 = vsel %vm1503, %v2240, 0
  %v2256 = vsel %vm1503, %v2241, 0
  %v2259 = vsel %vm1503, %v2242, 0
  %v2262 = vsel %vm1503, %v2243, 0
  %v2265 = vsel %vm1503, %v2244, 0
  %v2268 = vsel %vm1503, %v2245, 0
  %v2271 = vsel %vm1503, %v2246, 0
  %v2274 = vsel %vm1998, %v2248, 0
  %2276 = vmatprep.subr.bf16.mxu0 0
  %2277 = vmatpush1.bf16.msra.mxu0 0
  %2278 = vmatprep.subr.bf16.mxu0 0
  %2279 = vmatpush1.bf16.msra.mxu0 0
  %2280 = vmatprep.subr.bf16.mxu0 0
  %2281 = vmatpush1.bf16.msra.mxu0 0
  %2282 = vmatprep.subr.bf16.mxu0 0
  %2283 = vmatpush1.bf16.msra.mxu0 0
  %2284 = vmatprep.subr.bf16.mxu0 0
  %2285 = vmatpush1.bf16.msra.mxu0 0
  %2286 = vmatprep.subr.bf16.mxu0 0
  %2287 = vmatpush1.bf16.msra.mxu0 0
  %2288 = vmatprep.subr.bf16.mxu0 0
  %2289 = vmatpush1.bf16.msra.mxu0 0
  %2290 = vmatprep.subr.bf16.mxu0 0
  %2291 = vmatpush1.bf16.msra.mxu0 %v2274
  %2292 = vmatprep.subr.bf16.mxu0 0
  %2293 = vmatpush2.bf16.msra.mxu0 0
  %2294 = vmatprep.subr.bf16.mxu0 0
  %2295 = vmatpush2.bf16.msra.mxu0 0
  %2296 = vmatprep.subr.bf16.mxu0 0
  %2297 = vmatpush2.bf16.msra.mxu0 0
  %2298 = vmatprep.subr.bf16.mxu0 0
  %2299 = vmatpush2.bf16.msra.mxu0 0
  %2300 = vmatprep.subr.bf16.mxu0 0
  %2301 = vmatpush2.bf16.msra.mxu0 0
  %2302 = vmatprep.subr.bf16.mxu0 0
  %2303 = vmatpush2.bf16.msra.mxu0 0
  %2304 = vmatprep.subr.bf16.mxu0 0
  %2305 = vmatpush2.bf16.msra.mxu0 0
  %2306 = vmatprep.subr.bf16.mxu0 0
  %2307 = vmatpush2.bf16.msra.mxu0 0
  %2308 = vmatprep.mubr.bf16.mxu0 0
  %2309 = vmatmul.mubr.bf16.gmra.mxu0 %v2250
  %v2310 = vpop.f32.mrf.mxu0
  %v2311 = vadd.f32 0.0, %v2310
  %v2312 = vpop.f32.mrf.mxu0
  %v2313 = vpop.f32.mrf.mxu0
  %v2314 = vadd.f32 0.0, %v2313
  %v2315 = vpop.f32.mrf.mxu0
  %2316 = vmatprep.mubr.bf16.mxu0 0
  %2317 = vmatmul.mubr.bf16.gmra.mxu0 %v2253
  %v2318 = vpop.f32.mrf.mxu0
  %v2319 = vadd.f32 0.0, %v2318
  %v2320 = vpop.f32.mrf.mxu0
  %v2321 = vpop.f32.mrf.mxu0
  %v2322 = vadd.f32 0.0, %v2321
  %v2323 = vpop.f32.mrf.mxu0
  %2324 = vmatprep.mubr.bf16.mxu0 0
  %2325 = vmatmul.mubr.bf16.gmra.mxu0 %v2256
  %v2326 = vpop.f32.mrf.mxu0
  %v2327 = vadd.f32 0.0, %v2326
  %v2328 = vpop.f32.mrf.mxu0
  %v2329 = vpop.f32.mrf.mxu0
  %v2330 = vadd.f32 0.0, %v2329
  %v2331 = vpop.f32.mrf.mxu0
  %2332 = vmatprep.mubr.bf16.mxu0 0
  %2333 = vmatmul.mubr.bf16.gmra.mxu0 %v2259
  %v2334 = vpop.f32.mrf.mxu0
  %v2335 = vadd.f32 0.0, %v2334
  %v2336 = vpop.f32.mrf.mxu0
  %v2337 = vpop.f32.mrf.mxu0
  %v2338 = vadd.f32 0.0, %v2337
  %v2339 = vpop.f32.mrf.mxu0
  %2340 = vmatprep.mubr.bf16.mxu0 0
  %2341 = vmatmul.mubr.bf16.gmra.mxu0 %v2262
  %v2342 = vpop.f32.mrf.mxu0
  %v2343 = vadd.f32 0.0, %v2342
  %v2344 = vpop.f32.mrf.mxu0
  %v2345 = vpop.f32.mrf.mxu0
  %v2346 = vadd.f32 0.0, %v2345
  %v2347 = vpop.f32.mrf.mxu0
  %2348 = vmatprep.mubr.bf16.mxu0 0
  %2349 = vmatmul.mubr.bf16.gmra.mxu0 %v2265
  %v2350 = vpop.f32.mrf.mxu0
  %v2351 = vadd.f32 0.0, %v2350
  %v2352 = vpop.f32.mrf.mxu0
  %v2353 = vpop.f32.mrf.mxu0
  %v2354 = vadd.f32 0.0, %v2353
  %v2355 = vpop.f32.mrf.mxu0
  %2356 = vmatprep.mubr.bf16.mxu0 0
  %2357 = vmatmul.mubr.bf16.gmra.mxu0 %v2268
  %v2358 = vpop.f32.mrf.mxu0
  %v2359 = vadd.f32 0.0, %v2358
  %v2360 = vpop.f32.mrf.mxu0
  %v2361 = vpop.f32.mrf.mxu0
  %v2362 = vadd.f32 0.0, %v2361
  %v2363 = vpop.f32.mrf.mxu0
  %2364 = vmatprep.mubr.bf16.mxu0 0
  %2365 = vmatmul.mubr.bf16.gmra.mxu0 %v2271
  %v2366 = vpop.f32.mrf.mxu0
  %v2367 = vadd.f32 0.0, %v2366
  %v2368 = vpop.f32.mrf.mxu0
  %v2369 = vpop.f32.mrf.mxu0
  %v2370 = vadd.f32 0.0, %v2369
  %v2371 = vpop.f32.mrf.mxu0
  %2372 = vdwg.mxu0
  %v2373 = vadd.f32 %v2161, %v2311
  %v2374 = vadd.f32 %v2164, %v2314
  %v2375 = vadd.f32 %v2169, %v2319
  %v2376 = vadd.f32 %v2172, %v2322
  %v2377 = vadd.f32 %v2177, %v2327
  %v2378 = vadd.f32 %v2180, %v2330
  %v2379 = vadd.f32 %v2185, %v2335
  %v2380 = vadd.f32 %v2188, %v2338
  %v2381 = vadd.f32 %v2193, %v2343
  %v2382 = vadd.f32 %v2196, %v2346
  %v2383 = vadd.f32 %v2201, %v2351
  %v2384 = vadd.f32 %v2204, %v2354
  %v2385 = vadd.f32 %v2209, %v2359
  %v2386 = vadd.f32 %v2212, %v2362
  %v2387 = vadd.f32 %v2217, %v2367
  %v2388 = vadd.f32 %v2220, %v2370
  %v2389 = vld [vmem:[%s1906] sm:$0xff]
  %v2390 = vld [vmem:[%s1906 + $0x10] sm:$0xff]
  %v2391 = vld [vmem:[%s1906 + $0x20] sm:$0xff]
  %v2392 = vld [vmem:[%s1906 + $0x30] sm:$0xff]
  %v2393 = vld [vmem:[%s1906 + $0x40] sm:$0xff]
  %v2394 = vld [vmem:[%s1906 + $0x50] sm:$0xff]
  %v2395 = vld [vmem:[%s1906 + $0x60] sm:$0xff]
  %v2396 = vld [vmem:[%s1906 + $0x70] sm:$0xff]
  %v2397 = vld [vmem:[%s1906 + $0xa0] sm:$0xff]
  %v2398 = vld [vmem:[%s1906 + $0xb0] sm:$0xff]
  %v2399 = vld [vmem:[%s1906 + $0xc0] sm:$0xff]
  %v2400 = vld [vmem:[%s1906 + $0xd0] sm:$0xff]
  %v2401 = vld [vmem:[%s1906 + $0xe0] sm:$0xff]
  %v2402 = vld [vmem:[%s1906 + $0xf0] sm:$0xff]
  %v2403 = vld [vmem:[%s1906 + $0x100] sm:$0xff]
  %v2404 = vld [vmem:[%s1906 + $0x110] sm:$0xff]
  %v2405 = vpack.c.bf16 %v2390, %v2389
  %v2406 = vpack.c.bf16 %v2392, %v2391
  %v2407 = vpack.c.bf16 %v2394, %v2393
  %v2408 = vpack.c.bf16 %v2396, %v2395
  %v2409 = vpack.c.bf16 %v2398, %v2397
  %v2410 = vpack.c.bf16 %v2400, %v2399
  %v2411 = vpack.c.bf16 %v2402, %v2401
  %v2412 = vpack.c.bf16 %v2404, %v2403
  %s2413 = scalar_lea.vmem %s4, 12
  %v2414 = vld [vmem:[%s2413] sm:$0xf]
  %v2416 = vsel %vm1503, %v2405, 0
  %v2419 = vsel %vm1503, %v2406, 0
  %v2422 = vsel %vm1503, %v2407, 0
  %v2425 = vsel %vm1503, %v2408, 0
  %v2428 = vsel %vm1503, %v2409, 0
  %v2431 = vsel %vm1503, %v2410, 0
  %v2434 = vsel %vm1503, %v2411, 0
  %v2437 = vsel %vm1503, %v2412, 0
  %v2440 = vsel %vm1998, %v2414, 0
  %2442 = vmatprep.subr.bf16.mxu0 0
  %2443 = vmatpush1.bf16.msra.mxu0 0
  %2444 = vmatprep.subr.bf16.mxu0 0
  %2445 = vmatpush1.bf16.msra.mxu0 0
  %2446 = vmatprep.subr.bf16.mxu0 0
  %2447 = vmatpush1.bf16.msra.mxu0 0
  %2448 = vmatprep.subr.bf16.mxu0 0
  %2449 = vmatpush1.bf16.msra.mxu0 0
  %2450 = vmatprep.subr.bf16.mxu0 0
  %2451 = vmatpush1.bf16.msra.mxu0 0
  %2452 = vmatprep.subr.bf16.mxu0 0
  %2453 = vmatpush1.bf16.msra.mxu0 0
  %2454 = vmatprep.subr.bf16.mxu0 0
  %2455 = vmatpush1.bf16.msra.mxu0 0
  %2456 = vmatprep.subr.bf16.mxu0 0
  %2457 = vmatpush1.bf16.msra.mxu0 %v2440
  %2458 = vmatprep.subr.bf16.mxu0 0
  %2459 = vmatpush2.bf16.msra.mxu0 0
  %2460 = vmatprep.subr.bf16.mxu0 0
  %2461 = vmatpush2.bf16.msra.mxu0 0
  %2462 = vmatprep.subr.bf16.mxu0 0
  %2463 = vmatpush2.bf16.msra.mxu0 0
  %2464 = vmatprep.subr.bf16.mxu0 0
  %2465 = vmatpush2.bf16.msra.mxu0 0
  %2466 = vmatprep.subr.bf16.mxu0 0
  %2467 = vmatpush2.bf16.msra.mxu0 0
  %2468 = vmatprep.subr.bf16.mxu0 0
  %2469 = vmatpush2.bf16.msra.mxu0 0
  %2470 = vmatprep.subr.bf16.mxu0 0
  %2471 = vmatpush2.bf16.msra.mxu0 0
  %2472 = vmatprep.subr.bf16.mxu0 0
  %2473 = vmatpush2.bf16.msra.mxu0 0
  %2474 = vmatprep.mubr.bf16.mxu0 0
  %2475 = vmatmul.mubr.bf16.gmra.mxu0 %v2416
  %v2476 = vpop.f32.mrf.mxu0
  %v2477 = vadd.f32 0.0, %v2476
  %v2478 = vpop.f32.mrf.mxu0
  %v2479 = vpop.f32.mrf.mxu0
  %v2480 = vadd.f32 0.0, %v2479
  %v2481 = vpop.f32.mrf.mxu0
  %2482 = vmatprep.mubr.bf16.mxu0 0
  %2483 = vmatmul.mubr.bf16.gmra.mxu0 %v2419
  %v2484 = vpop.f32.mrf.mxu0
  %v2485 = vadd.f32 0.0, %v2484
  %v2486 = vpop.f32.mrf.mxu0
  %v2487 = vpop.f32.mrf.mxu0
  %v2488 = vadd.f32 0.0, %v2487
  %v2489 = vpop.f32.mrf.mxu0
  %2490 = vmatprep.mubr.bf16.mxu0 0
  %2491 = vmatmul.mubr.bf16.gmra.mxu0 %v2422
  %v2492 = vpop.f32.mrf.mxu0
  %v2493 = vadd.f32 0.0, %v2492
  %v2494 = vpop.f32.mrf.mxu0
  %v2495 = vpop.f32.mrf.mxu0
  %v2496 = vadd.f32 0.0, %v2495
  %v2497 = vpop.f32.mrf.mxu0
  %2498 = vmatprep.mubr.bf16.mxu0 0
  %2499 = vmatmul.mubr.bf16.gmra.mxu0 %v2425
  %v2500 = vpop.f32.mrf.mxu0
  %v2501 = vadd.f32 0.0, %v2500
  %v2502 = vpop.f32.mrf.mxu0
  %v2503 = vpop.f32.mrf.mxu0
  %v2504 = vadd.f32 0.0, %v2503
  %v2505 = vpop.f32.mrf.mxu0
  %2506 = vmatprep.mubr.bf16.mxu0 0
  %2507 = vmatmul.mubr.bf16.gmra.mxu0 %v2428
  %v2508 = vpop.f32.mrf.mxu0
  %v2509 = vadd.f32 0.0, %v2508
  %v2510 = vpop.f32.mrf.mxu0
  %v2511 = vpop.f32.mrf.mxu0
  %v2512 = vadd.f32 0.0, %v2511
  %v2513 = vpop.f32.mrf.mxu0
  %2514 = vmatprep.mubr.bf16.mxu0 0
  %2515 = vmatmul.mubr.bf16.gmra.mxu0 %v2431
  %v2516 = vpop.f32.mrf.mxu0
  %v2517 = vadd.f32 0.0, %v2516
  %v2518 = vpop.f32.mrf.mxu0
  %v2519 = vpop.f32.mrf.mxu0
  %v2520 = vadd.f32 0.0, %v2519
  %v2521 = vpop.f32.mrf.mxu0
  %2522 = vmatprep.mubr.bf16.mxu0 0
  %2523 = vmatmul.mubr.bf16.gmra.mxu0 %v2434
  %v2524 = vpop.f32.mrf.mxu0
  %v2525 = vadd.f32 0.0, %v2524
  %v2526 = vpop.f32.mrf.mxu0
  %v2527 = vpop.f32.mrf.mxu0
  %v2528 = vadd.f32 0.0, %v2527
  %v2529 = vpop.f32.mrf.mxu0
  %2530 = vmatprep.mubr.bf16.mxu0 0
  %2531 = vmatmul.mubr.bf16.gmra.mxu0 %v2437
  %v2532 = vpop.f32.mrf.mxu0
  %v2533 = vadd.f32 0.0, %v2532
  %v2534 = vpop.f32.mrf.mxu0
  %v2535 = vpop.f32.mrf.mxu0
  %v2536 = vadd.f32 0.0, %v2535
  %v2537 = vpop.f32.mrf.mxu0
  %2538 = vdwg.mxu0
  %v2539 = vadd.f32 %v2373, %v2477
  %v2540 = vadd.f32 %v2374, %v2480
  %v2541 = vadd.f32 %v2375, %v2485
  %v2542 = vadd.f32 %v2376, %v2488
  %v2543 = vadd.f32 %v2377, %v2493
  %v2544 = vadd.f32 %v2378, %v2496
  %v2545 = vadd.f32 %v2379, %v2501
  %v2546 = vadd.f32 %v2380, %v2504
  %v2547 = vadd.f32 %v2381, %v2509
  %v2548 = vadd.f32 %v2382, %v2512
  %v2549 = vadd.f32 %v2383, %v2517
  %v2550 = vadd.f32 %v2384, %v2520
  %v2551 = vadd.f32 %v2385, %v2525
  %v2552 = vadd.f32 %v2386, %v2528
  %v2553 = vadd.f32 %v2387, %v2533
  %v2554 = vadd.f32 %v2388, %v2536
  %v2555 = vld [vmem:[%s1906 + $0x1] sm:$0xff]
  %v2556 = vld [vmem:[%s1906 + $0x11] sm:$0xff]
  %v2557 = vld [vmem:[%s1906 + $0x21] sm:$0xff]
  %v2558 = vld [vmem:[%s1906 + $0x31] sm:$0xff]
  %v2559 = vld [vmem:[%s1906 + $0x41] sm:$0xff]
  %v2560 = vld [vmem:[%s1906 + $0x51] sm:$0xff]
  %v2561 = vld [vmem:[%s1906 + $0x61] sm:$0xff]
  %v2562 = vld [vmem:[%s1906 + $0x71] sm:$0xff]
  %v2563 = vld [vmem:[%s1906 + $0xa1] sm:$0xff]
  %v2564 = vld [vmem:[%s1906 + $0xb1] sm:$0xff]
  %v2565 = vld [vmem:[%s1906 + $0xc1] sm:$0xff]
  %v2566 = vld [vmem:[%s1906 + $0xd1] sm:$0xff]
  %v2567 = vld [vmem:[%s1906 + $0xe1] sm:$0xff]
  %v2568 = vld [vmem:[%s1906 + $0xf1] sm:$0xff]
  %v2569 = vld [vmem:[%s1906 + $0x101] sm:$0xff]
  %v2570 = vld [vmem:[%s1906 + $0x111] sm:$0xff]
  %v2571 = vpack.c.bf16 %v2556, %v2555
  %v2572 = vpack.c.bf16 %v2558, %v2557
  %v2573 = vpack.c.bf16 %v2560, %v2559
  %v2574 = vpack.c.bf16 %v2562, %v2561
  %v2575 = vpack.c.bf16 %v2564, %v2563
  %v2576 = vpack.c.bf16 %v2566, %v2565
  %v2577 = vpack.c.bf16 %v2568, %v2567
  %v2578 = vpack.c.bf16 %v2570, %v2569
  %s2579 = scalar_lea.vmem %s4, 16
  %v2580 = vld [vmem:[%s2579] sm:$0xf]
  %v2582 = vsel %vm1503, %v2571, 0
  %v2585 = vsel %vm1503, %v2572, 0
  %v2588 = vsel %vm1503, %v2573, 0
  %v2591 = vsel %vm1503, %v2574, 0
  %v2594 = vsel %vm1503, %v2575, 0
  %v2597 = vsel %vm1503, %v2576, 0
  %v2600 = vsel %vm1503, %v2577, 0
  %v2603 = vsel %vm1503, %v2578, 0
  %v2606 = vsel %vm1998, %v2580, 0
  %2608 = vmatprep.subr.bf16.mxu0 0
  %2609 = vmatpush1.bf16.msra.mxu0 0
  %2610 = vmatprep.subr.bf16.mxu0 0
  %2611 = vmatpush1.bf16.msra.mxu0 0
  %2612 = vmatprep.subr.bf16.mxu0 0
  %2613 = vmatpush1.bf16.msra.mxu0 0
  %2614 = vmatprep.subr.bf16.mxu0 0
  %2615 = vmatpush1.bf16.msra.mxu0 0
  %2616 = vmatprep.subr.bf16.mxu0 0
  %2617 = vmatpush1.bf16.msra.mxu0 0
  %2618 = vmatprep.subr.bf16.mxu0 0
  %2619 = vmatpush1.bf16.msra.mxu0 0
  %2620 = vmatprep.subr.bf16.mxu0 0
  %2621 = vmatpush1.bf16.msra.mxu0 0
  %2622 = vmatprep.subr.bf16.mxu0 0
  %2623 = vmatpush1.bf16.msra.mxu0 %v2606
  %2624 = vmatprep.subr.bf16.mxu0 0
  %2625 = vmatpush2.bf16.msra.mxu0 0
  %2626 = vmatprep.subr.bf16.mxu0 0
  %2627 = vmatpush2.bf16.msra.mxu0 0
  %2628 = vmatprep.subr.bf16.mxu0 0
  %2629 = vmatpush2.bf16.msra.mxu0 0
  %2630 = vmatprep.subr.bf16.mxu0 0
  %2631 = vmatpush2.bf16.msra.mxu0 0
  %2632 = vmatprep.subr.bf16.mxu0 0
  %2633 = vmatpush2.bf16.msra.mxu0 0
  %2634 = vmatprep.subr.bf16.mxu0 0
  %2635 = vmatpush2.bf16.msra.mxu0 0
  %2636 = vmatprep.subr.bf16.mxu0 0
  %2637 = vmatpush2.bf16.msra.mxu0 0
  %2638 = vmatprep.subr.bf16.mxu0 0
  %2639 = vmatpush2.bf16.msra.mxu0 0
  %2640 = vmatprep.mubr.bf16.mxu0 0
  %2641 = vmatmul.mubr.bf16.gmra.mxu0 %v2582
  %v2642 = vpop.f32.mrf.mxu0
  %v2643 = vadd.f32 0.0, %v2642
  %v2644 = vpop.f32.mrf.mxu0
  %v2645 = vpop.f32.mrf.mxu0
  %v2646 = vadd.f32 0.0, %v2645
  %v2647 = vpop.f32.mrf.mxu0
  %2648 = vmatprep.mubr.bf16.mxu0 0
  %2649 = vmatmul.mubr.bf16.gmra.mxu0 %v2585
  %v2650 = vpop.f32.mrf.mxu0
  %v2651 = vadd.f32 0.0, %v2650
  %v2652 = vpop.f32.mrf.mxu0
  %v2653 = vpop.f32.mrf.mxu0
  %v2654 = vadd.f32 0.0, %v2653
  %v2655 = vpop.f32.mrf.mxu0
  %2656 = vmatprep.mubr.bf16.mxu0 0
  %2657 = vmatmul.mubr.bf16.gmra.mxu0 %v2588
  %v2658 = vpop.f32.mrf.mxu0
  %v2659 = vadd.f32 0.0, %v2658
  %v2660 = vpop.f32.mrf.mxu0
  %v2661 = vpop.f32.mrf.mxu0
  %v2662 = vadd.f32 0.0, %v2661
  %v2663 = vpop.f32.mrf.mxu0
  %2664 = vmatprep.mubr.bf16.mxu0 0
  %2665 = vmatmul.mubr.bf16.gmra.mxu0 %v2591
  %v2666 = vpop.f32.mrf.mxu0
  %v2667 = vadd.f32 0.0, %v2666
  %v2668 = vpop.f32.mrf.mxu0
  %v2669 = vpop.f32.mrf.mxu0
  %v2670 = vadd.f32 0.0, %v2669
  %v2671 = vpop.f32.mrf.mxu0
  %2672 = vmatprep.mubr.bf16.mxu0 0
  %2673 = vmatmul.mubr.bf16.gmra.mxu0 %v2594
  %v2674 = vpop.f32.mrf.mxu0
  %v2675 = vadd.f32 0.0, %v2674
  %v2676 = vpop.f32.mrf.mxu0
  %v2677 = vpop.f32.mrf.mxu0
  %v2678 = vadd.f32 0.0, %v2677
  %v2679 = vpop.f32.mrf.mxu0
  %2680 = vmatprep.mubr.bf16.mxu0 0
  %2681 = vmatmul.mubr.bf16.gmra.mxu0 %v2597
  %v2682 = vpop.f32.mrf.mxu0
  %v2683 = vadd.f32 0.0, %v2682
  %v2684 = vpop.f32.mrf.mxu0
  %v2685 = vpop.f32.mrf.mxu0
  %v2686 = vadd.f32 0.0, %v2685
  %v2687 = vpop.f32.mrf.mxu0
  %2688 = vmatprep.mubr.bf16.mxu0 0
  %2689 = vmatmul.mubr.bf16.gmra.mxu0 %v2600
  %v2690 = vpop.f32.mrf.mxu0
  %v2691 = vadd.f32 0.0, %v2690
  %v2692 = vpop.f32.mrf.mxu0
  %v2693 = vpop.f32.mrf.mxu0
  %v2694 = vadd.f32 0.0, %v2693
  %v2695 = vpop.f32.mrf.mxu0
  %2696 = vmatprep.mubr.bf16.mxu0 0
  %2697 = vmatmul.mubr.bf16.gmra.mxu0 %v2603
  %v2698 = vpop.f32.mrf.mxu0
  %v2699 = vadd.f32 0.0, %v2698
  %v2700 = vpop.f32.mrf.mxu0
  %v2701 = vpop.f32.mrf.mxu0
  %v2702 = vadd.f32 0.0, %v2701
  %v2703 = vpop.f32.mrf.mxu0
  %2704 = vdwg.mxu0
  %v2705 = vadd.f32 %v2539, %v2643
  %v2706 = vadd.f32 %v2540, %v2646
  %v2707 = vadd.f32 %v2541, %v2651
  %v2708 = vadd.f32 %v2542, %v2654
  %v2709 = vadd.f32 %v2543, %v2659
  %v2710 = vadd.f32 %v2544, %v2662
  %v2711 = vadd.f32 %v2545, %v2667
  %v2712 = vadd.f32 %v2546, %v2670
  %v2713 = vadd.f32 %v2547, %v2675
  %v2714 = vadd.f32 %v2548, %v2678
  %v2715 = vadd.f32 %v2549, %v2683
  %v2716 = vadd.f32 %v2550, %v2686
  %v2717 = vadd.f32 %v2551, %v2691
  %v2718 = vadd.f32 %v2552, %v2694
  %v2719 = vadd.f32 %v2553, %v2699
  %v2720 = vadd.f32 %v2554, %v2702
  %v2721 = vld [vmem:[%s1906 + $0x2] sm:$0xff]
  %v2722 = vld [vmem:[%s1906 + $0x12] sm:$0xff]
  %v2723 = vld [vmem:[%s1906 + $0x22] sm:$0xff]
  %v2724 = vld [vmem:[%s1906 + $0x32] sm:$0xff]
  %v2725 = vld [vmem:[%s1906 + $0x42] sm:$0xff]
  %v2726 = vld [vmem:[%s1906 + $0x52] sm:$0xff]
  %v2727 = vld [vmem:[%s1906 + $0x62] sm:$0xff]
  %v2728 = vld [vmem:[%s1906 + $0x72] sm:$0xff]
  %v2729 = vld [vmem:[%s1906 + $0xa2] sm:$0xff]
  %v2730 = vld [vmem:[%s1906 + $0xb2] sm:$0xff]
  %v2731 = vld [vmem:[%s1906 + $0xc2] sm:$0xff]
  %v2732 = vld [vmem:[%s1906 + $0xd2] sm:$0xff]
  %v2733 = vld [vmem:[%s1906 + $0xe2] sm:$0xff]
  %v2734 = vld [vmem:[%s1906 + $0xf2] sm:$0xff]
  %v2735 = vld [vmem:[%s1906 + $0x102] sm:$0xff]
  %v2736 = vld [vmem:[%s1906 + $0x112] sm:$0xff]
  %v2737 = vpack.c.bf16 %v2722, %v2721
  %v2738 = vpack.c.bf16 %v2724, %v2723
  %v2739 = vpack.c.bf16 %v2726, %v2725
  %v2740 = vpack.c.bf16 %v2728, %v2727
  %v2741 = vpack.c.bf16 %v2730, %v2729
  %v2742 = vpack.c.bf16 %v2732, %v2731
  %v2743 = vpack.c.bf16 %v2734, %v2733
  %v2744 = vpack.c.bf16 %v2736, %v2735
  %s2745 = scalar_lea.vmem %s4, 20
  %v2746 = vld [vmem:[%s2745] sm:$0xf]
  %v2748 = vsel %vm1503, %v2737, 0
  %v2751 = vsel %vm1503, %v2738, 0
  %v2754 = vsel %vm1503, %v2739, 0
  %v2757 = vsel %vm1503, %v2740, 0
  %v2760 = vsel %vm1503, %v2741, 0
  %v2763 = vsel %vm1503, %v2742, 0
  %v2766 = vsel %vm1503, %v2743, 0
  %v2769 = vsel %vm1503, %v2744, 0
  %v2772 = vsel %vm1998, %v2746, 0
  %2774 = vmatprep.subr.bf16.mxu0 0
  %2775 = vmatpush1.bf16.msra.mxu0 0
  %2776 = vmatprep.subr.bf16.mxu0 0
  %2777 = vmatpush1.bf16.msra.mxu0 0
  %2778 = vmatprep.subr.bf16.mxu0 0
  %2779 = vmatpush1.bf16.msra.mxu0 0
  %2780 = vmatprep.subr.bf16.mxu0 0
  %2781 = vmatpush1.bf16.msra.mxu0 0
  %2782 = vmatprep.subr.bf16.mxu0 0
  %2783 = vmatpush1.bf16.msra.mxu0 0
  %2784 = vmatprep.subr.bf16.mxu0 0
  %2785 = vmatpush1.bf16.msra.mxu0 0
  %2786 = vmatprep.subr.bf16.mxu0 0
  %2787 = vmatpush1.bf16.msra.mxu0 0
  %2788 = vmatprep.subr.bf16.mxu0 0
  %2789 = vmatpush1.bf16.msra.mxu0 %v2772
  %2790 = vmatprep.subr.bf16.mxu0 0
  %2791 = vmatpush2.bf16.msra.mxu0 0
  %2792 = vmatprep.subr.bf16.mxu0 0
  %2793 = vmatpush2.bf16.msra.mxu0 0
  %2794 = vmatprep.subr.bf16.mxu0 0
  %2795 = vmatpush2.bf16.msra.mxu0 0
  %2796 = vmatprep.subr.bf16.mxu0 0
  %2797 = vmatpush2.bf16.msra.mxu0 0
  %2798 = vmatprep.subr.bf16.mxu0 0
  %2799 = vmatpush2.bf16.msra.mxu0 0
  %2800 = vmatprep.subr.bf16.mxu0 0
  %2801 = vmatpush2.bf16.msra.mxu0 0
  %2802 = vmatprep.subr.bf16.mxu0 0
  %2803 = vmatpush2.bf16.msra.mxu0 0
  %2804 = vmatprep.subr.bf16.mxu0 0
  %2805 = vmatpush2.bf16.msra.mxu0 0
  %2806 = vmatprep.mubr.bf16.mxu0 0
  %2807 = vmatmul.mubr.bf16.gmra.mxu0 %v2748
  %v2808 = vpop.f32.mrf.mxu0
  %v2809 = vadd.f32 0.0, %v2808
  %v2810 = vpop.f32.mrf.mxu0
  %v2811 = vpop.f32.mrf.mxu0
  %v2812 = vadd.f32 0.0, %v2811
  %v2813 = vpop.f32.mrf.mxu0
  %2814 = vmatprep.mubr.bf16.mxu0 0
  %2815 = vmatmul.mubr.bf16.gmra.mxu0 %v2751
  %v2816 = vpop.f32.mrf.mxu0
  %v2817 = vadd.f32 0.0, %v2816
  %v2818 = vpop.f32.mrf.mxu0
  %v2819 = vpop.f32.mrf.mxu0
  %v2820 = vadd.f32 0.0, %v2819
  %v2821 = vpop.f32.mrf.mxu0
  %2822 = vmatprep.mubr.bf16.mxu0 0
  %2823 = vmatmul.mubr.bf16.gmra.mxu0 %v2754
  %v2824 = vpop.f32.mrf.mxu0
  %v2825 = vadd.f32 0.0, %v2824
  %v2826 = vpop.f32.mrf.mxu0
  %v2827 = vpop.f32.mrf.mxu0
  %v2828 = vadd.f32 0.0, %v2827
  %v2829 = vpop.f32.mrf.mxu0
  %2830 = vmatprep.mubr.bf16.mxu0 0
  %2831 = vmatmul.mubr.bf16.gmra.mxu0 %v2757
  %v2832 = vpop.f32.mrf.mxu0
  %v2833 = vadd.f32 0.0, %v2832
  %v2834 = vpop.f32.mrf.mxu0
  %v2835 = vpop.f32.mrf.mxu0
  %v2836 = vadd.f32 0.0, %v2835
  %v2837 = vpop.f32.mrf.mxu0
  %2838 = vmatprep.mubr.bf16.mxu0 0
  %2839 = vmatmul.mubr.bf16.gmra.mxu0 %v2760
  %v2840 = vpop.f32.mrf.mxu0
  %v2841 = vadd.f32 0.0, %v2840
  %v2842 = vpop.f32.mrf.mxu0
  %v2843 = vpop.f32.mrf.mxu0
  %v2844 = vadd.f32 0.0, %v2843
  %v2845 = vpop.f32.mrf.mxu0
  %2846 = vmatprep.mubr.bf16.mxu0 0
  %2847 = vmatmul.mubr.bf16.gmra.mxu0 %v2763
  %v2848 = vpop.f32.mrf.mxu0
  %v2849 = vadd.f32 0.0, %v2848
  %v2850 = vpop.f32.mrf.mxu0
  %v2851 = vpop.f32.mrf.mxu0
  %v2852 = vadd.f32 0.0, %v2851
  %v2853 = vpop.f32.mrf.mxu0
  %2854 = vmatprep.mubr.bf16.mxu0 0
  %2855 = vmatmul.mubr.bf16.gmra.mxu0 %v2766
  %v2856 = vpop.f32.mrf.mxu0
  %v2857 = vadd.f32 0.0, %v2856
  %v2858 = vpop.f32.mrf.mxu0
  %v2859 = vpop.f32.mrf.mxu0
  %v2860 = vadd.f32 0.0, %v2859
  %v2861 = vpop.f32.mrf.mxu0
  %2862 = vmatprep.mubr.bf16.mxu0 0
  %2863 = vmatmul.mubr.bf16.gmra.mxu0 %v2769
  %v2864 = vpop.f32.mrf.mxu0
  %v2865 = vadd.f32 0.0, %v2864
  %v2866 = vpop.f32.mrf.mxu0
  %v2867 = vpop.f32.mrf.mxu0
  %v2868 = vadd.f32 0.0, %v2867
  %v2869 = vpop.f32.mrf.mxu0
  %2870 = vdwg.mxu0
  %v2871 = vadd.f32 %v2705, %v2809
  %v2872 = vadd.f32 %v2706, %v2812
  %v2873 = vadd.f32 %v2707, %v2817
  %v2874 = vadd.f32 %v2708, %v2820
  %v2875 = vadd.f32 %v2709, %v2825
  %v2876 = vadd.f32 %v2710, %v2828
  %v2877 = vadd.f32 %v2711, %v2833
  %v2878 = vadd.f32 %v2712, %v2836
  %v2879 = vadd.f32 %v2713, %v2841
  %v2880 = vadd.f32 %v2714, %v2844
  %v2881 = vadd.f32 %v2715, %v2849
  %v2882 = vadd.f32 %v2716, %v2852
  %v2883 = vadd.f32 %v2717, %v2857
  %v2884 = vadd.f32 %v2718, %v2860
  %v2885 = vadd.f32 %v2719, %v2865
  %v2886 = vadd.f32 %v2720, %v2868
  %s2887 = scalar_lea.vmem [#allocation2], 32
  %v2888 = vld [vmem:[%s2887] sm:$0xff]
  %v2889 = vld [vmem:[%s2887 + $0x10] sm:$0xff]
  %v2890 = vld [vmem:[%s2887 + $0x20] sm:$0xff]
  %v2891 = vld [vmem:[%s2887 + $0x30] sm:$0xff]
  %v2892 = vld [vmem:[%s2887 + $0x40] sm:$0xff]
  %v2893 = vld [vmem:[%s2887 + $0x50] sm:$0xff]
  %v2894 = vld [vmem:[%s2887 + $0x60] sm:$0xff]
  %v2895 = vld [vmem:[%s2887 + $0x70] sm:$0xff]
  %v2896 = vld [vmem:[%s2887 + $0xa0] sm:$0xff]
  %v2897 = vld [vmem:[%s2887 + $0xb0] sm:$0xff]
  %v2898 = vld [vmem:[%s2887 + $0xc0] sm:$0xff]
  %v2899 = vld [vmem:[%s2887 + $0xd0] sm:$0xff]
  %v2900 = vld [vmem:[%s2887 + $0xe0] sm:$0xff]
  %v2901 = vld [vmem:[%s2887 + $0xf0] sm:$0xff]
  %v2902 = vld [vmem:[%s2887 + $0x100] sm:$0xff]
  %v2903 = vld [vmem:[%s2887 + $0x110] sm:$0xff]
  %v2904 = vpack.c.bf16 %v2889, %v2888
  %v2905 = vpack.c.bf16 %v2891, %v2890
  %v2906 = vpack.c.bf16 %v2893, %v2892
  %v2907 = vpack.c.bf16 %v2895, %v2894
  %v2908 = vpack.c.bf16 %v2897, %v2896
  %v2909 = vpack.c.bf16 %v2899, %v2898
  %v2910 = vpack.c.bf16 %v2901, %v2900
  %v2911 = vpack.c.bf16 %v2903, %v2902
  %s2912 = scalar_lea.vmem %s4, 24
  %v2913 = vld [vmem:[%s2912] sm:$0xf]
  %v2915 = vsel %vm1503, %v2904, 0
  %v2918 = vsel %vm1503, %v2905, 0
  %v2921 = vsel %vm1503, %v2906, 0
  %v2924 = vsel %vm1503, %v2907, 0
  %v2927 = vsel %vm1503, %v2908, 0
  %v2930 = vsel %vm1503, %v2909, 0
  %v2933 = vsel %vm1503, %v2910, 0
  %v2936 = vsel %vm1503, %v2911, 0
  %v2939 = vsel %vm1998, %v2913, 0
  %2941 = vmatprep.subr.bf16.mxu0 0
  %2942 = vmatpush1.bf16.msra.mxu0 0
  %2943 = vmatprep.subr.bf16.mxu0 0
  %2944 = vmatpush1.bf16.msra.mxu0 0
  %2945 = vmatprep.subr.bf16.mxu0 0
  %2946 = vmatpush1.bf16.msra.mxu0 0
  %2947 = vmatprep.subr.bf16.mxu0 0
  %2948 = vmatpush1.bf16.msra.mxu0 0
  %2949 = vmatprep.subr.bf16.mxu0 0
  %2950 = vmatpush1.bf16.msra.mxu0 0
  %2951 = vmatprep.subr.bf16.mxu0 0
  %2952 = vmatpush1.bf16.msra.mxu0 0
  %2953 = vmatprep.subr.bf16.mxu0 0
  %2954 = vmatpush1.bf16.msra.mxu0 0
  %2955 = vmatprep.subr.bf16.mxu0 0
  %2956 = vmatpush1.bf16.msra.mxu0 %v2939
  %2957 = vmatprep.subr.bf16.mxu0 0
  %2958 = vmatpush2.bf16.msra.mxu0 0
  %2959 = vmatprep.subr.bf16.mxu0 0
  %2960 = vmatpush2.bf16.msra.mxu0 0
  %2961 = vmatprep.subr.bf16.mxu0 0
  %2962 = vmatpush2.bf16.msra.mxu0 0
  %2963 = vmatprep.subr.bf16.mxu0 0
  %2964 = vmatpush2.bf16.msra.mxu0 0
  %2965 = vmatprep.subr.bf16.mxu0 0
  %2966 = vmatpush2.bf16.msra.mxu0 0
  %2967 = vmatprep.subr.bf16.mxu0 0
  %2968 = vmatpush2.bf16.msra.mxu0 0
  %2969 = vmatprep.subr.bf16.mxu0 0
  %2970 = vmatpush2.bf16.msra.mxu0 0
  %2971 = vmatprep.subr.bf16.mxu0 0
  %2972 = vmatpush2.bf16.msra.mxu0 0
  %2973 = vmatprep.mubr.bf16.mxu0 0
  %2974 = vmatmul.mubr.bf16.gmra.mxu0 %v2915
  %v2975 = vpop.f32.mrf.mxu0
  %v2976 = vadd.f32 0.0, %v2975
  %v2977 = vpop.f32.mrf.mxu0
  %v2978 = vpop.f32.mrf.mxu0
  %v2979 = vadd.f32 0.0, %v2978
  %v2980 = vpop.f32.mrf.mxu0
  %2981 = vmatprep.mubr.bf16.mxu0 0
  %2982 = vmatmul.mubr.bf16.gmra.mxu0 %v2918
  %v2983 = vpop.f32.mrf.mxu0
  %v2984 = vadd.f32 0.0, %v2983
  %v2985 = vpop.f32.mrf.mxu0
  %v2986 = vpop.f32.mrf.mxu0
  %v2987 = vadd.f32 0.0, %v2986
  %v2988 = vpop.f32.mrf.mxu0
  %2989 = vmatprep.mubr.bf16.mxu0 0
  %2990 = vmatmul.mubr.bf16.gmra.mxu0 %v2921
  %v2991 = vpop.f32.mrf.mxu0
  %v2992 = vadd.f32 0.0, %v2991
  %v2993 = vpop.f32.mrf.mxu0
  %v2994 = vpop.f32.mrf.mxu0
  %v2995 = vadd.f32 0.0, %v2994
  %v2996 = vpop.f32.mrf.mxu0
  %2997 = vmatprep.mubr.bf16.mxu0 0
  %2998 = vmatmul.mubr.bf16.gmra.mxu0 %v2924
  %v2999 = vpop.f32.mrf.mxu0
  %v3000 = vadd.f32 0.0, %v2999
  %v3001 = vpop.f32.mrf.mxu0
  %v3002 = vpop.f32.mrf.mxu0
  %v3003 = vadd.f32 0.0, %v3002
  %v3004 = vpop.f32.mrf.mxu0
  %3005 = vmatprep.mubr.bf16.mxu0 0
  %3006 = vmatmul.mubr.bf16.gmra.mxu0 %v2927
  %v3007 = vpop.f32.mrf.mxu0
  %v3008 = vadd.f32 0.0, %v3007
  %v3009 = vpop.f32.mrf.mxu0
  %v3010 = vpop.f32.mrf.mxu0
  %v3011 = vadd.f32 0.0, %v3010
  %v3012 = vpop.f32.mrf.mxu0
  %3013 = vmatprep.mubr.bf16.mxu0 0
  %3014 = vmatmul.mubr.bf16.gmra.mxu0 %v2930
  %v3015 = vpop.f32.mrf.mxu0
  %v3016 = vadd.f32 0.0, %v3015
  %v3017 = vpop.f32.mrf.mxu0
  %v3018 = vpop.f32.mrf.mxu0
  %v3019 = vadd.f32 0.0, %v3018
  %v3020 = vpop.f32.mrf.mxu0
  %3021 = vmatprep.mubr.bf16.mxu0 0
  %3022 = vmatmul.mubr.bf16.gmra.mxu0 %v2933
  %v3023 = vpop.f32.mrf.mxu0
  %v3024 = vadd.f32 0.0, %v3023
  %v3025 = vpop.f32.mrf.mxu0
  %v3026 = vpop.f32.mrf.mxu0
  %v3027 = vadd.f32 0.0, %v3026
  %v3028 = vpop.f32.mrf.mxu0
  %3029 = vmatprep.mubr.bf16.mxu0 0
  %3030 = vmatmul.mubr.bf16.gmra.mxu0 %v2936
  %v3031 = vpop.f32.mrf.mxu0
  %v3032 = vadd.f32 0.0, %v3031
  %v3033 = vpop.f32.mrf.mxu0
  %v3034 = vpop.f32.mrf.mxu0
  %v3035 = vadd.f32 0.0, %v3034
  %v3036 = vpop.f32.mrf.mxu0
  %3037 = vdwg.mxu0
  %v3038 = vadd.f32 %v2871, %v2976
  %v3039 = vadd.f32 %v2872, %v2979
  %v3040 = vadd.f32 %v2873, %v2984
  %v3041 = vadd.f32 %v2874, %v2987
  %v3042 = vadd.f32 %v2875, %v2992
  %v3043 = vadd.f32 %v2876, %v2995
  %v3044 = vadd.f32 %v2877, %v3000
  %v3045 = vadd.f32 %v2878, %v3003
  %v3046 = vadd.f32 %v2879, %v3008
  %v3047 = vadd.f32 %v2880, %v3011
  %v3048 = vadd.f32 %v2881, %v3016
  %v3049 = vadd.f32 %v2882, %v3019
  %v3050 = vadd.f32 %v2883, %v3024
  %v3051 = vadd.f32 %v2884, %v3027
  %v3052 = vadd.f32 %v2885, %v3032
  %v3053 = vadd.f32 %v2886, %v3035
  %v3054 = vld [vmem:[%s2887 + $0x1] sm:$0xff]
  %v3055 = vld [vmem:[%s2887 + $0x11] sm:$0xff]
  %v3056 = vld [vmem:[%s2887 + $0x21] sm:$0xff]
  %v3057 = vld [vmem:[%s2887 + $0x31] sm:$0xff]
  %v3058 = vld [vmem:[%s2887 + $0x41] sm:$0xff]
  %v3059 = vld [vmem:[%s2887 + $0x51] sm:$0xff]
  %v3060 = vld [vmem:[%s2887 + $0x61] sm:$0xff]
  %v3061 = vld [vmem:[%s2887 + $0x71] sm:$0xff]
  %v3062 = vld [vmem:[%s2887 + $0xa1] sm:$0xff]
  %v3063 = vld [vmem:[%s2887 + $0xb1] sm:$0xff]
  %v3064 = vld [vmem:[%s2887 + $0xc1] sm:$0xff]
  %v3065 = vld [vmem:[%s2887 + $0xd1] sm:$0xff]
  %v3066 = vld [vmem:[%s2887 + $0xe1] sm:$0xff]
  %v3067 = vld [vmem:[%s2887 + $0xf1] sm:$0xff]
  %v3068 = vld [vmem:[%s2887 + $0x101] sm:$0xff]
  %v3069 = vld [vmem:[%s2887 + $0x111] sm:$0xff]
  %v3070 = vpack.c.bf16 %v3055, %v3054
  %v3071 = vpack.c.bf16 %v3057, %v3056
  %v3072 = vpack.c.bf16 %v3059, %v3058
  %v3073 = vpack.c.bf16 %v3061, %v3060
  %v3074 = vpack.c.bf16 %v3063, %v3062
  %v3075 = vpack.c.bf16 %v3065, %v3064
  %v3076 = vpack.c.bf16 %v3067, %v3066
  %v3077 = vpack.c.bf16 %v3069, %v3068
  %s3078 = scalar_lea.vmem %s4, 28
  %v3079 = vld [vmem:[%s3078] sm:$0xf]
  %v3081 = vsel %vm1503, %v3070, 0
  %v3084 = vsel %vm1503, %v3071, 0
  %v3087 = vsel %vm1503, %v3072, 0
  %v3090 = vsel %vm1503, %v3073, 0
  %v3093 = vsel %vm1503, %v3074, 0
  %v3096 = vsel %vm1503, %v3075, 0
  %v3099 = vsel %vm1503, %v3076, 0
  %v3102 = vsel %vm1503, %v3077, 0
  %v3105 = vsel %vm1998, %v3079, 0
  %3107 = vmatprep.subr.bf16.mxu0 0
  %3108 = vmatpush1.bf16.msra.mxu0 0
  %3109 = vmatprep.subr.bf16.mxu0 0
  %3110 = vmatpush1.bf16.msra.mxu0 0
  %3111 = vmatprep.subr.bf16.mxu0 0
  %3112 = vmatpush1.bf16.msra.mxu0 0
  %3113 = vmatprep.subr.bf16.mxu0 0
  %3114 = vmatpush1.bf16.msra.mxu0 0
  %3115 = vmatprep.subr.bf16.mxu0 0
  %3116 = vmatpush1.bf16.msra.mxu0 0
  %3117 = vmatprep.subr.bf16.mxu0 0
  %3118 = vmatpush1.bf16.msra.mxu0 0
  %3119 = vmatprep.subr.bf16.mxu0 0
  %3120 = vmatpush1.bf16.msra.mxu0 0
  %3121 = vmatprep.subr.bf16.mxu0 0
  %3122 = vmatpush1.bf16.msra.mxu0 %v3105
  %3123 = vmatprep.subr.bf16.mxu0 0
  %3124 = vmatpush2.bf16.msra.mxu0 0
  %3125 = vmatprep.subr.bf16.mxu0 0
  %3126 = vmatpush2.bf16.msra.mxu0 0
  %3127 = vmatprep.subr.bf16.mxu0 0
  %3128 = vmatpush2.bf16.msra.mxu0 0
  %3129 = vmatprep.subr.bf16.mxu0 0
  %3130 = vmatpush2.bf16.msra.mxu0 0
  %3131 = vmatprep.subr.bf16.mxu0 0
  %3132 = vmatpush2.bf16.msra.mxu0 0
  %3133 = vmatprep.subr.bf16.mxu0 0
  %3134 = vmatpush2.bf16.msra.mxu0 0
  %3135 = vmatprep.subr.bf16.mxu0 0
  %3136 = vmatpush2.bf16.msra.mxu0 0
  %3137 = vmatprep.subr.bf16.mxu0 0
  %3138 = vmatpush2.bf16.msra.mxu0 0
  %3139 = vmatprep.mubr.bf16.mxu0 0
  %3140 = vmatmul.mubr.bf16.gmra.mxu0 %v3081
  %v3141 = vpop.f32.mrf.mxu0
  %v3142 = vadd.f32 0.0, %v3141
  %v3143 = vpop.f32.mrf.mxu0
  %v3144 = vpop.f32.mrf.mxu0
  %v3145 = vadd.f32 0.0, %v3144
  %v3146 = vpop.f32.mrf.mxu0
  %3147 = vmatprep.mubr.bf16.mxu0 0
  %3148 = vmatmul.mubr.bf16.gmra.mxu0 %v3084
  %v3149 = vpop.f32.mrf.mxu0
  %v3150 = vadd.f32 0.0, %v3149
  %v3151 = vpop.f32.mrf.mxu0
  %v3152 = vpop.f32.mrf.mxu0
  %v3153 = vadd.f32 0.0, %v3152
  %v3154 = vpop.f32.mrf.mxu0
  %3155 = vmatprep.mubr.bf16.mxu0 0
  %3156 = vmatmul.mubr.bf16.gmra.mxu0 %v3087
  %v3157 = vpop.f32.mrf.mxu0
  %v3158 = vadd.f32 0.0, %v3157
  %v3159 = vpop.f32.mrf.mxu0
  %v3160 = vpop.f32.mrf.mxu0
  %v3161 = vadd.f32 0.0, %v3160
  %v3162 = vpop.f32.mrf.mxu0
  %3163 = vmatprep.mubr.bf16.mxu0 0
  %3164 = vmatmul.mubr.bf16.gmra.mxu0 %v3090
  %v3165 = vpop.f32.mrf.mxu0
  %v3166 = vadd.f32 0.0, %v3165
  %v3167 = vpop.f32.mrf.mxu0
  %v3168 = vpop.f32.mrf.mxu0
  %v3169 = vadd.f32 0.0, %v3168
  %v3170 = vpop.f32.mrf.mxu0
  %3171 = vmatprep.mubr.bf16.mxu0 0
  %3172 = vmatmul.mubr.bf16.gmra.mxu0 %v3093
  %v3173 = vpop.f32.mrf.mxu0
  %v3174 = vadd.f32 0.0, %v3173
  %v3175 = vpop.f32.mrf.mxu0
  %v3176 = vpop.f32.mrf.mxu0
  %v3177 = vadd.f32 0.0, %v3176
  %v3178 = vpop.f32.mrf.mxu0
  %3179 = vmatprep.mubr.bf16.mxu0 0
  %3180 = vmatmul.mubr.bf16.gmra.mxu0 %v3096
  %v3181 = vpop.f32.mrf.mxu0
  %v3182 = vadd.f32 0.0, %v3181
  %v3183 = vpop.f32.mrf.mxu0
  %v3184 = vpop.f32.mrf.mxu0
  %v3185 = vadd.f32 0.0, %v3184
  %v3186 = vpop.f32.mrf.mxu0
  %3187 = vmatprep.mubr.bf16.mxu0 0
  %3188 = vmatmul.mubr.bf16.gmra.mxu0 %v3099
  %v3189 = vpop.f32.mrf.mxu0
  %v3190 = vadd.f32 0.0, %v3189
  %v3191 = vpop.f32.mrf.mxu0
  %v3192 = vpop.f32.mrf.mxu0
  %v3193 = vadd.f32 0.0, %v3192
  %v3194 = vpop.f32.mrf.mxu0
  %3195 = vmatprep.mubr.bf16.mxu0 0
  %3196 = vmatmul.mubr.bf16.gmra.mxu0 %v3102
  %v3197 = vpop.f32.mrf.mxu0
  %v3198 = vadd.f32 0.0, %v3197
  %v3199 = vpop.f32.mrf.mxu0
  %v3200 = vpop.f32.mrf.mxu0
  %v3201 = vadd.f32 0.0, %v3200
  %v3202 = vpop.f32.mrf.mxu0
  %3203 = vdwg.mxu0
  %v3204 = vadd.f32 %v3038, %v3142
  %v3205 = vadd.f32 %v3039, %v3145
  %v3206 = vadd.f32 %v3040, %v3150
  %v3207 = vadd.f32 %v3041, %v3153
  %v3208 = vadd.f32 %v3042, %v3158
  %v3209 = vadd.f32 %v3043, %v3161
  %v3210 = vadd.f32 %v3044, %v3166
  %v3211 = vadd.f32 %v3045, %v3169
  %v3212 = vadd.f32 %v3046, %v3174
  %v3213 = vadd.f32 %v3047, %v3177
  %v3214 = vadd.f32 %v3048, %v3182
  %v3215 = vadd.f32 %v3049, %v3185
  %v3216 = vadd.f32 %v3050, %v3190
  %v3217 = vadd.f32 %v3051, %v3193
  %v3218 = vadd.f32 %v3052, %v3198
  %v3219 = vadd.f32 %v3053, %v3201
  %v3220 = vld [vmem:[%s2887 + $0x2] sm:$0xff]
  %v3221 = vld [vmem:[%s2887 + $0x12] sm:$0xff]
  %v3222 = vld [vmem:[%s2887 + $0x22] sm:$0xff]
  %v3223 = vld [vmem:[%s2887 + $0x32] sm:$0xff]
  %v3224 = vld [vmem:[%s2887 + $0x42] sm:$0xff]
  %v3225 = vld [vmem:[%s2887 + $0x52] sm:$0xff]
  %v3226 = vld [vmem:[%s2887 + $0x62] sm:$0xff]
  %v3227 = vld [vmem:[%s2887 + $0x72] sm:$0xff]
  %v3228 = vld [vmem:[%s2887 + $0xa2] sm:$0xff]
  %v3229 = vld [vmem:[%s2887 + $0xb2] sm:$0xff]
  %v3230 = vld [vmem:[%s2887 + $0xc2] sm:$0xff]
  %v3231 = vld [vmem:[%s2887 + $0xd2] sm:$0xff]
  %v3232 = vld [vmem:[%s2887 + $0xe2] sm:$0xff]
  %v3233 = vld [vmem:[%s2887 + $0xf2] sm:$0xff]
  %v3234 = vld [vmem:[%s2887 + $0x102] sm:$0xff]
  %v3235 = vld [vmem:[%s2887 + $0x112] sm:$0xff]
  %v3236 = vpack.c.bf16 %v3221, %v3220
  %v3237 = vpack.c.bf16 %v3223, %v3222
  %v3238 = vpack.c.bf16 %v3225, %v3224
  %v3239 = vpack.c.bf16 %v3227, %v3226
  %v3240 = vpack.c.bf16 %v3229, %v3228
  %v3241 = vpack.c.bf16 %v3231, %v3230
  %v3242 = vpack.c.bf16 %v3233, %v3232
  %v3243 = vpack.c.bf16 %v3235, %v3234
  %s3244 = scalar_lea.vmem %s4, 32
  %v3245 = vld [vmem:[%s3244] sm:$0xf]
  %v3247 = vsel %vm1503, %v3236, 0
  %v3250 = vsel %vm1503, %v3237, 0
  %v3253 = vsel %vm1503, %v3238, 0
  %v3256 = vsel %vm1503, %v3239, 0
  %v3259 = vsel %vm1503, %v3240, 0
  %v3262 = vsel %vm1503, %v3241, 0
  %v3265 = vsel %vm1503, %v3242, 0
  %v3268 = vsel %vm1503, %v3243, 0
  %v3271 = vsel %vm1998, %v3245, 0
  %3273 = vmatprep.subr.bf16.mxu0 0
  %3274 = vmatpush1.bf16.msra.mxu0 0
  %3275 = vmatprep.subr.bf16.mxu0 0
  %3276 = vmatpush1.bf16.msra.mxu0 0
  %3277 = vmatprep.subr.bf16.mxu0 0
  %3278 = vmatpush1.bf16.msra.mxu0 0
  %3279 = vmatprep.subr.bf16.mxu0 0
  %3280 = vmatpush1.bf16.msra.mxu0 0
  %3281 = vmatprep.subr.bf16.mxu0 0
  %3282 = vmatpush1.bf16.msra.mxu0 0
  %3283 = vmatprep.subr.bf16.mxu0 0
  %3284 = vmatpush1.bf16.msra.mxu0 0
  %3285 = vmatprep.subr.bf16.mxu0 0
  %3286 = vmatpush1.bf16.msra.mxu0 0
  %3287 = vmatprep.subr.bf16.mxu0 0
  %3288 = vmatpush1.bf16.msra.mxu0 %v3271
  %3289 = vmatprep.subr.bf16.mxu0 0
  %3290 = vmatpush2.bf16.msra.mxu0 0
  %3291 = vmatprep.subr.bf16.mxu0 0
  %3292 = vmatpush2.bf16.msra.mxu0 0
  %3293 = vmatprep.subr.bf16.mxu0 0
  %3294 = vmatpush2.bf16.msra.mxu0 0
  %3295 = vmatprep.subr.bf16.mxu0 0
  %3296 = vmatpush2.bf16.msra.mxu0 0
  %3297 = vmatprep.subr.bf16.mxu0 0
  %3298 = vmatpush2.bf16.msra.mxu0 0
  %3299 = vmatprep.subr.bf16.mxu0 0
  %3300 = vmatpush2.bf16.msra.mxu0 0
  %3301 = vmatprep.subr.bf16.mxu0 0
  %3302 = vmatpush2.bf16.msra.mxu0 0
  %3303 = vmatprep.subr.bf16.mxu0 0
  %3304 = vmatpush2.bf16.msra.mxu0 0
  %3305 = vmatprep.mubr.bf16.mxu0 0
  %3306 = vmatmul.mubr.bf16.gmra.mxu0 %v3247
  %v3307 = vpop.f32.mrf.mxu0
  %v3308 = vadd.f32 0.0, %v3307
  %v3309 = vpop.f32.mrf.mxu0
  %v3310 = vpop.f32.mrf.mxu0
  %v3311 = vadd.f32 0.0, %v3310
  %v3312 = vpop.f32.mrf.mxu0
  %3313 = vmatprep.mubr.bf16.mxu0 0
  %3314 = vmatmul.mubr.bf16.gmra.mxu0 %v3250
  %v3315 = vpop.f32.mrf.mxu0
  %v3316 = vadd.f32 0.0, %v3315
  %v3317 = vpop.f32.mrf.mxu0
  %v3318 = vpop.f32.mrf.mxu0
  %v3319 = vadd.f32 0.0, %v3318
  %v3320 = vpop.f32.mrf.mxu0
  %3321 = vmatprep.mubr.bf16.mxu0 0
  %3322 = vmatmul.mubr.bf16.gmra.mxu0 %v3253
  %v3323 = vpop.f32.mrf.mxu0
  %v3324 = vadd.f32 0.0, %v3323
  %v3325 = vpop.f32.mrf.mxu0
  %v3326 = vpop.f32.mrf.mxu0
  %v3327 = vadd.f32 0.0, %v3326
  %v3328 = vpop.f32.mrf.mxu0
  %3329 = vmatprep.mubr.bf16.mxu0 0
  %3330 = vmatmul.mubr.bf16.gmra.mxu0 %v3256
  %v3331 = vpop.f32.mrf.mxu0
  %v3332 = vadd.f32 0.0, %v3331
  %v3333 = vpop.f32.mrf.mxu0
  %v3334 = vpop.f32.mrf.mxu0
  %v3335 = vadd.f32 0.0, %v3334
  %v3336 = vpop.f32.mrf.mxu0
  %3337 = vmatprep.mubr.bf16.mxu0 0
  %3338 = vmatmul.mubr.bf16.gmra.mxu0 %v3259
  %v3339 = vpop.f32.mrf.mxu0
  %v3340 = vadd.f32 0.0, %v3339
  %v3341 = vpop.f32.mrf.mxu0
  %v3342 = vpop.f32.mrf.mxu0
  %v3343 = vadd.f32 0.0, %v3342
  %v3344 = vpop.f32.mrf.mxu0
  %3345 = vmatprep.mubr.bf16.mxu0 0
  %3346 = vmatmul.mubr.bf16.gmra.mxu0 %v3262
  %v3347 = vpop.f32.mrf.mxu0
  %v3348 = vadd.f32 0.0, %v3347
  %v3349 = vpop.f32.mrf.mxu0
  %v3350 = vpop.f32.mrf.mxu0
  %v3351 = vadd.f32 0.0, %v3350
  %v3352 = vpop.f32.mrf.mxu0
  %3353 = vmatprep.mubr.bf16.mxu0 0
  %3354 = vmatmul.mubr.bf16.gmra.mxu0 %v3265
  %v3355 = vpop.f32.mrf.mxu0
  %v3356 = vadd.f32 0.0, %v3355
  %v3357 = vpop.f32.mrf.mxu0
  %v3358 = vpop.f32.mrf.mxu0
  %v3359 = vadd.f32 0.0, %v3358
  %v3360 = vpop.f32.mrf.mxu0
  %3361 = vmatprep.mubr.bf16.mxu0 0
  %3362 = vmatmul.mubr.bf16.gmra.mxu0 %v3268
  %v3363 = vpop.f32.mrf.mxu0
  %v3364 = vadd.f32 0.0, %v3363
  %v3365 = vpop.f32.mrf.mxu0
  %v3366 = vpop.f32.mrf.mxu0
  %v3367 = vadd.f32 0.0, %v3366
  %v3368 = vpop.f32.mrf.mxu0
  %3369 = vdwg.mxu0
  %v3370 = vadd.f32 %v3204, %v3308
  %v3371 = vadd.f32 %v3205, %v3311
  %v3372 = vadd.f32 %v3206, %v3316
  %v3373 = vadd.f32 %v3207, %v3319
  %v3374 = vadd.f32 %v3208, %v3324
  %v3375 = vadd.f32 %v3209, %v3327
  %v3376 = vadd.f32 %v3210, %v3332
  %v3377 = vadd.f32 %v3211, %v3335
  %v3378 = vadd.f32 %v3212, %v3340
  %v3379 = vadd.f32 %v3213, %v3343
  %v3380 = vadd.f32 %v3214, %v3348
  %v3381 = vadd.f32 %v3215, %v3351
  %v3382 = vadd.f32 %v3216, %v3356
  %v3383 = vadd.f32 %v3217, %v3359
  %v3384 = vadd.f32 %v3218, %v3364
  %v3385 = vadd.f32 %v3219, %v3367
  %v3386 = vld [vmem:[%s5] sm:$0x1]
  %v3387 = vld [vmem:[%s6] sm:$0x1]
  %v3388 = vsel %vm1503, %v3370, 0.0
  %v3389 = vsel %vm1503, %v3371, 0.0
  %v3390 = vadd.f32 %v3388, %v3389
  %v3391 = vsel %vm1503, %v3372, 0.0
  %v3392 = vadd.f32 %v3390, %v3391
  %v3393 = vsel %vm1503, %v3373, 0.0
  %v3394 = vadd.f32 %v3392, %v3393
  %v3395 = vsel %vm1503, %v3374, 0.0
  %v3396 = vadd.f32 %v3394, %v3395
  %v3397 = vsel %vm1503, %v3375, 0.0
  %v3398 = vadd.f32 %v3396, %v3397
  %v3399 = vsel %vm1503, %v3376, 0.0
  %v3400 = vadd.f32 %v3398, %v3399
  %v3401 = vsel %vm1503, %v3377, 0.0
  %v3402 = vadd.f32 %v3400, %v3401
  %v3403 = vsel %vm1503, %v3378, 0.0
  %v3404 = vadd.f32 %v3402, %v3403
  %v3405 = vsel %vm1503, %v3379, 0.0
  %v3406 = vadd.f32 %v3404, %v3405
  %v3407 = vsel %vm1503, %v3380, 0.0
  %v3408 = vadd.f32 %v3406, %v3407
  %v3409 = vsel %vm1503, %v3381, 0.0
  %v3410 = vadd.f32 %v3408, %v3409
  %v3411 = vsel %vm1503, %v3382, 0.0
  %v3412 = vadd.f32 %v3410, %v3411
  %v3413 = vsel %vm1503, %v3383, 0.0
  %v3414 = vadd.f32 %v3412, %v3413
  %v3415 = vsel %vm1503, %v3384, 0.0
  %v3416 = vadd.f32 %v3414, %v3415
  %v3417 = vsel %vm1503, %v3385, 0.0
  %v3418 = vadd.f32 %v3416, %v3417
  %v3419 = vrot.slane %v3418, 4
  %v3420 = vadd.f32 %v3418, %v3419
  %v3421 = vrot.slane %v3420, 2
  %v3422 = vadd.f32 %v3420, %v3421
  %v3423 = vrot.slane %v3422, 1
  %v3424 = vadd.f32 %v3422, %v3423
  %v3425 = vmul.f32 %v3424, 0.0078125
  %v3426 = vmul.f32 %v3370, %v3370
  %v3427 = vmul.f32 %v3371, %v3371
  %v3428 = vmul.f32 %v3372, %v3372
  %v3429 = vmul.f32 %v3373, %v3373
  %v3430 = vmul.f32 %v3374, %v3374
  %v3431 = vmul.f32 %v3375, %v3375
  %v3432 = vmul.f32 %v3376, %v3376
  %v3433 = vmul.f32 %v3377, %v3377
  %v3434 = vmul.f32 %v3378, %v3378
  %v3435 = vmul.f32 %v3379, %v3379
  %v3436 = vmul.f32 %v3380, %v3380
  %v3437 = vmul.f32 %v3381, %v3381
  %v3438 = vmul.f32 %v3382, %v3382
  %v3439 = vmul.f32 %v3383, %v3383
  %v3440 = vmul.f32 %v3384, %v3384
  %v3441 = vmul.f32 %v3385, %v3385
  %v3442 = vsel %vm1503, %v3426, 0.0
  %v3443 = vsel %vm1503, %v3427, 0.0
  %v3444 = vadd.f32 %v3442, %v3443
  %v3445 = vsel %vm1503, %v3428, 0.0
  %v3446 = vadd.f32 %v3444, %v3445
  %v3447 = vsel %vm1503, %v3429, 0.0
  %v3448 = vadd.f32 %v3446, %v3447
  %v3449 = vsel %vm1503, %v3430, 0.0
  %v3450 = vadd.f32 %v3448, %v3449
  %v3451 = vsel %vm1503, %v3431, 0.0
  %v3452 = vadd.f32 %v3450, %v3451
  %v3453 = vsel %vm1503, %v3432, 0.0
  %v3454 = vadd.f32 %v3452, %v3453
  %v3455 = vsel %vm1503, %v3433, 0.0
  %v3456 = vadd.f32 %v3454, %v3455
  %v3457 = vsel %vm1503, %v3434, 0.0
  %v3458 = vadd.f32 %v3456, %v3457
  %v3459 = vsel %vm1503, %v3435, 0.0
  %v3460 = vadd.f32 %v3458, %v3459
  %v3461 = vsel %vm1503, %v3436, 0.0
  %v3462 = vadd.f32 %v3460, %v3461
  %v3463 = vsel %vm1503, %v3437, 0.0
  %v3464 = vadd.f32 %v3462, %v3463
  %v3465 = vsel %vm1503, %v3438, 0.0
  %v3466 = vadd.f32 %v3464, %v3465
  %v3467 = vsel %vm1503, %v3439, 0.0
  %v3468 = vadd.f32 %v3466, %v3467
  %v3469 = vsel %vm1503, %v3440, 0.0
  %v3470 = vadd.f32 %v3468, %v3469
  %v3471 = vsel %vm1503, %v3441, 0.0
  %v3472 = vadd.f32 %v3470, %v3471
  %v3473 = vrot.slane %v3472, 4
  %v3474 = vadd.f32 %v3472, %v3473
  %v3475 = vrot.slane %v3474, 2
  %v3476 = vadd.f32 %v3474, %v3475
  %v3477 = vrot.slane %v3476, 1
  %v3478 = vadd.f32 %v3476, %v3477
  %v3479 = vmul.f32 %v3478, 0.0078125
  %v3480 = vmul.f32 %v3425, %v3425
  %v3481 = vsub.f32 %v3479, %v3480
  %v3482 = vsub.f32 %v3370, %v3425
  %v3483 = vsub.f32 %v3371, %v3425
  %v3484 = vsub.f32 %v3372, %v3425
  %v3485 = vsub.f32 %v3373, %v3425
  %v3486 = vsub.f32 %v3374, %v3425
  %v3487 = vsub.f32 %v3375, %v3425
  %v3488 = vsub.f32 %v3376, %v3425
  %v3489 = vsub.f32 %v3377, %v3425
  %v3490 = vsub.f32 %v3378, %v3425
  %v3491 = vsub.f32 %v3379, %v3425
  %v3492 = vsub.f32 %v3380, %v3425
  %v3493 = vsub.f32 %v3381, %v3425
  %v3494 = vsub.f32 %v3382, %v3425
  %v3495 = vsub.f32 %v3383, %v3425
  %v3496 = vsub.f32 %v3384, %v3425
  %v3497 = vsub.f32 %v3385, %v3425
  %v3498 = vadd.f32 %v3481, 1e-05
  %v3499 = vrsqrt.pop %v3498
  %v3500 = vmul.f32 %v3482, %v3499
  %v3501 = vmul.f32 %v3483, %v3499
  %v3502 = vmul.f32 %v3484, %v3499
  %v3503 = vmul.f32 %v3485, %v3499
  %v3504 = vmul.f32 %v3486, %v3499
  %v3505 = vmul.f32 %v3487, %v3499
  %v3506 = vmul.f32 %v3488, %v3499
  %v3507 = vmul.f32 %v3489, %v3499
  %v3508 = vmul.f32 %v3490, %v3499
  %v3509 = vmul.f32 %v3491, %v3499
  %v3510 = vmul.f32 %v3492, %v3499
  %v3511 = vmul.f32 %v3493, %v3499
  %v3512 = vmul.f32 %v3494, %v3499
  %v3513 = vmul.f32 %v3495, %v3499
  %v3514 = vmul.f32 %v3496, %v3499
  %v3515 = vmul.f32 %v3497, %v3499
  %v3517 = vlaneseq
  %v3518 = vshrl.u32 %v3517, 7
  %v3519 = vsub.s32 0, %v3518
  %v3520 = vrot.slane %v3386, %v3519
  %v3522 = vmul.f32 %v3500, %v3520
  %v3523 = vmul.f32 %v3501, %v3520
  %v3524 = vmul.f32 %v3502, %v3520
  %v3525 = vmul.f32 %v3503, %v3520
  %v3526 = vmul.f32 %v3504, %v3520
  %v3527 = vmul.f32 %v3505, %v3520
  %v3528 = vmul.f32 %v3506, %v3520
  %v3529 = vmul.f32 %v3507, %v3520
  %v3530 = vmul.f32 %v3508, %v3520
  %v3531 = vmul.f32 %v3509, %v3520
  %v3532 = vmul.f32 %v3510, %v3520
  %v3533 = vmul.f32 %v3511, %v3520
  %v3534 = vmul.f32 %v3512, %v3520
  %v3535 = vmul.f32 %v3513, %v3520
  %v3536 = vmul.f32 %v3514, %v3520
  %v3537 = vmul.f32 %v3515, %v3520
  %v3539 = vlaneseq
  %v3540 = vshrl.u32 %v3539, 7
  %v3541 = vsub.s32 0, %v3540
  %v3542 = vrot.slane %v3387, %v3541
  %v3544 = vadd.f32 %v3522, %v3542
  %v3545 = vadd.f32 %v3523, %v3542
  %v3546 = vadd.f32 %v3524, %v3542
  %v3547 = vadd.f32 %v3525, %v3542
  %v3548 = vadd.f32 %v3526, %v3542
  %v3549 = vadd.f32 %v3527, %v3542
  %v3550 = vadd.f32 %v3528, %v3542
  %v3551 = vadd.f32 %v3529, %v3542
  %v3552 = vadd.f32 %v3530, %v3542
  %v3553 = vadd.f32 %v3531, %v3542
  %v3554 = vadd.f32 %v3532, %v3542
  %v3555 = vadd.f32 %v3533, %v3542
  %v3556 = vadd.f32 %v3534, %v3542
  %v3557 = vadd.f32 %v3535, %v3542
  %v3558 = vadd.f32 %v3536, %v3542
  %v3559 = vadd.f32 %v3537, %v3542
  %3576 = vrot.lane.b32.xlu0 %v1839, 120
  %v3577 = vpop.permute.xlu0 %3576
  %3578 = vrot.lane.b32.xlu0 %v1840, 120
  %v3579 = vpop.permute.xlu0 %3578
  %3580 = vrot.lane.b32.xlu0 %v1841, 120
  %v3581 = vpop.permute.xlu0 %3580
  %3582 = vrot.lane.b32.xlu0 %v1842, 120
  %v3583 = vpop.permute.xlu0 %3582
  %3584 = vrot.lane.b32.xlu0 %v1843, 120
  %v3585 = vpop.permute.xlu0 %3584
  %3586 = vrot.lane.b32.xlu0 %v1844, 120
  %v3587 = vpop.permute.xlu0 %3586
  %3588 = vrot.lane.b32.xlu0 %v1845, 120
  %v3589 = vpop.permute.xlu0 %3588
  %3590 = vrot.lane.b32.xlu0 %v1846, 120
  %v3591 = vpop.permute.xlu0 %3590
  %3592 = vrot.lane.b32.xlu0 %v1847, 120
  %v3593 = vpop.permute.xlu0 %3592
  %3594 = vrot.lane.b32.xlu0 %v1848, 120
  %v3595 = vpop.permute.xlu0 %3594
  %3596 = vrot.lane.b32.xlu0 %v1849, 120
  %v3597 = vpop.permute.xlu0 %3596
  %3598 = vrot.lane.b32.xlu0 %v1850, 120
  %v3599 = vpop.permute.xlu0 %3598
  %3600 = vrot.lane.b32.xlu0 %v1851, 120
  %v3601 = vpop.permute.xlu0 %3600
  %3602 = vrot.lane.b32.xlu0 %v1852, 120
  %v3603 = vpop.permute.xlu0 %3602
  %3604 = vrot.lane.b32.xlu0 %v1853, 120
  %v3605 = vpop.permute.xlu0 %3604
  %3606 = vrot.lane.b32.xlu0 %v1854, 120
  %v3607 = vpop.permute.xlu0 %3606
  %v3624 = vadd.f32 %v3544, %v3577
  %v3625 = vadd.f32 %v3545, %v3579
  %v3626 = vadd.f32 %v3546, %v3581
  %v3627 = vadd.f32 %v3547, %v3583
  %v3628 = vadd.f32 %v3548, %v3585
  %v3629 = vadd.f32 %v3549, %v3587
  %v3630 = vadd.f32 %v3550, %v3589
  %v3631 = vadd.f32 %v3551, %v3591
  %v3632 = vadd.f32 %v3552, %v3593
  %v3633 = vadd.f32 %v3553, %v3595
  %v3634 = vadd.f32 %v3554, %v3597
  %v3635 = vadd.f32 %v3555, %v3599
  %v3636 = vadd.f32 %v3556, %v3601
  %v3637 = vadd.f32 %v3557, %v3603
  %v3638 = vadd.f32 %v3558, %v3605
  %v3639 = vadd.f32 %v3559, %v3607
  %v3640 = vmax.f32 %v3624, 0.0
  %v3641 = vmax.f32 %v3625, 0.0
  %v3642 = vmax.f32 %v3626, 0.0
  %v3643 = vmax.f32 %v3627, 0.0
  %v3644 = vmax.f32 %v3628, 0.0
  %v3645 = vmax.f32 %v3629, 0.0
  %v3646 = vmax.f32 %v3630, 0.0
  %v3647 = vmax.f32 %v3631, 0.0
  %v3648 = vmax.f32 %v3632, 0.0
  %v3649 = vmax.f32 %v3633, 0.0
  %v3650 = vmax.f32 %v3634, 0.0
  %v3651 = vmax.f32 %v3635, 0.0
  %v3652 = vmax.f32 %v3636, 0.0
  %v3653 = vmax.f32 %v3637, 0.0
  %v3654 = vmax.f32 %v3638, 0.0
  %v3655 = vmax.f32 %v3639, 0.0
  %3656 = vst.msk [vmem:[%s9] sm:$0xff] %vm1503, %v3640
  %3657 = vst.msk [vmem:[%s9 + $0x8] sm:$0xff] %vm1503, %v3641
  %3658 = vst.msk [vmem:[%s9 + $0x10] sm:$0xff] %vm1503, %v3642
  %3659 = vst.msk [vmem:[%s9 + $0x18] sm:$0xff] %vm1503, %v3643
  %3660 = vst.msk [vmem:[%s9 + $0x20] sm:$0xff] %vm1503, %v3644
  %3661 = vst.msk [vmem:[%s9 + $0x28] sm:$0xff] %vm1503, %v3645
  %3662 = vst.msk [vmem:[%s9 + $0x30] sm:$0xff] %vm1503, %v3646
  %3663 = vst.msk [vmem:[%s9 + $0x38] sm:$0xff] %vm1503, %v3647
  %3664 = vst.msk [vmem:[%s9 + $0x40] sm:$0xff] %vm1503, %v3648
  %3665 = vst.msk [vmem:[%s9 + $0x48] sm:$0xff] %vm1503, %v3649
  %3666 = vst.msk [vmem:[%s9 + $0x50] sm:$0xff] %vm1503, %v3650
  %3667 = vst.msk [vmem:[%s9 + $0x58] sm:$0xff] %vm1503, %v3651
  %3668 = vst.msk [vmem:[%s9 + $0x60] sm:$0xff] %vm1503, %v3652
  %3669 = vst.msk [vmem:[%s9 + $0x68] sm:$0xff] %vm1503, %v3653
  %3670 = vst.msk [vmem:[%s9 + $0x70] sm:$0xff] %vm1503, %v3654
  %3671 = vst.msk [vmem:[%s9 + $0x78] sm:$0xff] %vm1503, %v3655
  // Predicated region
  $region38: #{tpu_custom_call.1} parent=0 // pred_check
    _
  $region39: #{tpu_custom_call.1} parent=0 // pred_check_branch
    %3673 = sbr.rel (0) target = $region41
  $region40: #{tpu_custom_call.1} parent=0 // pred_region
    _
  $region41: #{tpu_custom_call.1} parent=0 // pred_fallthru
    _
  // Predicated region
  $region42: #{tpu_custom_call.1} parent=0 // pred_check
    _
  $region43: #{tpu_custom_call.1} parent=0 // pred_check_branch
    %3675 = sbr.rel (0) target = $region45
  $region44: #{tpu_custom_call.1} parent=0 // pred_region
    _
  $region45: #{tpu_custom_call.1} parent=0 // pred_fallthru
    _

</llo_original>
